<compile_context>
chip_gen: v6e
topology: v6e:2x2x1
jax: 0.10.0
libtpu: 0.0.40
codegen_flags: <defaults>
</compile_context>

<pallas_src>
import math
import functools

import numpy as np
import jax
import jax.numpy as jnp
from jax import lax
from jax.experimental import pallas as pl
from jax.experimental.pallas import tpu as pltpu


# ----------------------------------------------------------------------------
# Sinusoid positional-encoding table (same formula as FastSpeech)
# ----------------------------------------------------------------------------
def get_sinusoid_encoding_table(n_position, d_hid):
    pos = np.arange(n_position, dtype=np.float64)[:, None]
    i = np.arange(d_hid, dtype=np.float64)[None, :]
    angle = pos / np.power(10000.0, 2.0 * (np.floor(i / 2.0)) / d_hid)
    table = np.zeros((n_position, d_hid), dtype=np.float64)
    table[:, 0::2] = np.sin(angle[:, 0::2])
    table[:, 1::2] = np.cos(angle[:, 1::2])
    return jnp.asarray(table, dtype=jnp.float32)


def _round_up(x, m):
    return ((x + m - 1) // m) * m


# ----------------------------------------------------------------------------
# One FFT block per grid step: grid = (batch, layer)
# ----------------------------------------------------------------------------
def _decoder_layer_kernel(len_ref,                       # scalar prefetch (B,)
                          x_ref, pos_ref,
                          wqkv_ref, bqkv_ref, wo_ref, bo_ref,
                          g1_ref, be1_ref,
                          c1w_ref, c1b_ref, c2w_ref, c2b_ref,
                          g2_ref, be2_ref,
                          o_ref,
                          x_scr, y_scr,
                          *, d_real, n_head, kernel_sizes, q_chunk):
    b = pl.program_id(0)
    l = pl.program_id(1)
    n_layers = pl.num_programs(1)

    length = len_ref[b]                                  # valid sequence length
    S, D = x_scr.shape                                   # padded (S_pad, D_pad)
    d_k = d_real // n_head
    scale = 1.0 / math.sqrt(d_k)
    inv_d = 1.0 / d_real
    k1, k2 = kernel_sizes
    pad1 = (k1 - 1) // 2
    pad2 = (k2 - 1) // 2
    n_chunks = S // q_chunk

    # lane mask only needed when the feature dim was padded to 128
    if D != d_real:
        lane_ok = (lax.broadcasted_iota(jnp.int32, (1, D), 1)
                   < d_real).astype(jnp.float32)
    else:
        lane_ok = None

    def layer_norm(v, gamma, beta, eps=1e-5):
        if lane_ok is not None:
            v = v * lane_ok
        mu = jnp.sum(v, axis=-1, keepdims=True) * inv_d
        diff = v - mu
        if lane_ok is not None:
            diff = diff * lane_ok
        var = jnp.sum(diff * diff, axis=-1, keepdims=True) * inv_d
        return diff * lax.rsqrt(var + eps) * gamma + beta

    # masks rebuilt in-kernel from the scalar length (no lane-sparse DMAs)
    col_idx = lax.broadcasted_iota(jnp.int32, (1, S), 1)
    attn_bias = jnp.where(col_idx < length, 0.0, -1e9).astype(jnp.float32)
    row_idx = lax.broadcasted_iota(jnp.int32, (S, 1), 0)
    m_row = (row_idx < length).astype(jnp.float32)       # (S, 1)

    # first layer: load activations + fused positional-encoding add
    @pl.when(l == 0)
    def _():
        x_scr[...] = x_ref[0].astype(jnp.float32) + pos_ref[...]

    # current layer weights (streamed in by the layer grid axis)
    wqkv = wqkv_ref[0]                                   # (D, 3D) bf16
    bqkv = bqkv_ref[0]                                   # (1, 3D) f32
    wo = wo_ref[0]                                       # (D, D) bf16
    bo = bo_ref[0]                                       # (1, D) f32
    g1, be1 = g1_ref[0], be1_ref[0]
    c1b = c1b_ref[0]                                     # (1, Dc) f32
    c2b = c2b_ref[0]                                     # (1, D) f32
    g2, be2 = g2_ref[0], be2_ref[0]

    x = x_scr[...]                                       # (S, D) f32

    # ---- multi-head self-attention (fused QKV, per-head W_o accumulation) --
    qkv = jnp.dot(x.astype(jnp.bfloat16), wqkv,
                  preferred_element_type=jnp.float32) + bqkv       # (S, 3D)
    q_all = (qkv[:, 0:D] * scale).astype(jnp.bfloat16)  # scale folded into q
    kv = qkv[:, D:].astype(jnp.bfloat16)                 # single cast for K,V
    k_all = kv[:, 0:D]
    v_all = kv[:, D:]

    for c in range(n_chunks):                            # query-row tiling
        rows = slice(c * q_chunk, (c + 1) * q_chunk)
        q_c = q_all[rows]
        acc = jnp.zeros((q_chunk, D), jnp.float32)
        for h in range(n_head):
            hs = slice(h * d_k, (h + 1) * d_k)
            s = lax.dot_general(q_c[:, hs], k_all[:, hs],
                                (((1,), (1,)), ((), ())),
                                preferred_element_type=jnp.float32)  # (qt, S)
            s = s + attn_bias
            p = jnp.exp(s - jnp.max(s, axis=-1, keepdims=True))
            inv = pl.reciprocal(jnp.sum(p, axis=-1, keepdims=True),
                                approx=True)
            pv = jnp.dot((p * inv).astype(jnp.bfloat16), v_all[:, hs],
                         preferred_element_type=jnp.float32)        # (qt, dk)
            # head folded straight through its row-slice of W_o (no concat)
            acc = acc + jnp.dot(pv.astype(jnp.bfloat16), wo[hs, :],
                                preferred_element_type=jnp.float32)
        acc = acc + bo + x_scr[rows, :]                  # proj bias + residual
        y_scr[rows, :] = layer_norm(acc, g1, be1) * m_row[rows, :]

    # ---- position-wise FFN: Conv1d(k1) -> ReLU -> Conv1d(k2) ---------------
    # per-tap matmul accumulation (no im2col lane concatenation)
    y = y_scr[...]                                       # (S, D) f32
    y_b = y.astype(jnp.bfloat16)
    if k1 > 1:
        zpad = jnp.zeros((pad1, D), jnp.bfloat16)
        y_padded = jnp.concatenate([zpad, y_b, zpad], axis=0)
    else:
        y_padded = y_b
    h1 = jnp.dot(y_padded[0:S], c1w_ref[0, 0],
                 preferred_element_type=jnp.float32)
    for t in range(1, k1):
        h1 = h1 + jnp.dot(y_padded[t:t + S], c1w_ref[0, t],
                          preferred_element_type=jnp.float32)
    h1 = jnp.maximum(h1 + c1b, 0.0).astype(jnp.bfloat16)            # (S, Dc)

    Dc = h1.shape[-1]
    if k2 > 1:
        zpad2 = jnp.zeros((pad2, Dc), jnp.bfloat16)
        h1_padded = jnp.concatenate([zpad2, h1, zpad2], axis=0)
    else:
        h1_padded = h1
    y2 = jnp.dot(h1_padded[0:S], c2w_ref[0, 0],
                 preferred_element_type=jnp.float32)
    for t in range(1, k2):
        y2 = y2 + jnp.dot(h1_padded[t:t + S], c2w_ref[0, t],
                          preferred_element_type=jnp.float32)
    y2 = y2 + c2b                                                    # (S, D)

    x_new = layer_norm(y2 + y, g2, be2) * m_row
    x_scr[...] = x_new                                   # carry to next layer

    @pl.when(l == n_layers - 1)
    def _():
        o_ref[0] = x_new.astype(o_ref.dtype)


# ----------------------------------------------------------------------------
# Wrapper: pad to (8/128)-aligned shapes, stream layers via grid axis
# ----------------------------------------------------------------------------
def _wspec(shape):
    ndim = len(shape)
    block = (1,) + tuple(shape[1:])

    def imap(b, l, lens, _n=ndim):
        return (l,) + (0,) * (_n - 1)

    return pl.BlockSpec(block, imap)


def _prep_weights(params, D, D_pad, Dc, Dc_pad):
    L = params["wo"].shape[0]
    dD = D_pad - D
    dC = Dc_pad - Dc

    def pad_last2(a, r, c):
        cfg = [(0, 0)] * (a.ndim - 2) + [(0, r), (0, c)]
        return jnp.pad(a, cfg)

    def pad_vec(a, c):
        return jnp.pad(a, [(0, 0), (0, c)]).reshape(L, 1, -1)

    # fused QKV: (L, 3, D, D) -> (L, D_pad, 3*D_pad), zero-padded
    wqkv = pad_last2(params["wqkv"], dD, dD)
    wqkv = jnp.transpose(wqkv, (0, 2, 1, 3)).reshape(L, D_pad, 3 * D_pad)
    bqkv = jnp.pad(params["bqkv"], [(0, 0), (0, 0), (0, dD)]
                   ).reshape(L, 1, 3 * D_pad)

    return [
        wqkv.astype(jnp.bfloat16),
        bqkv,
        pad_last2(params["wo"], dD, dD).astype(jnp.bfloat16),
        pad_vec(params["bo"], dD),
        pad_vec(params["ln1_g"], dD),       # gamma pads with 0 -> pad lanes 0
        pad_vec(params["ln1_b"], dD),
        pad_last2(params["c1w"], dD, dC).astype(jnp.bfloat16),
        pad_vec(params["c1b"], dC),
        pad_last2(params["c2w"], dC, dD).astype(jnp.bfloat16),
        pad_vec(params["c2b"], dD),
        pad_vec(params["ln2_g"], dD),
        pad_vec(params["ln2_b"], dD),
    ]


def decoder_forward(enc_seq, mask, pos_table, params, n_head, kernel_sizes):
    """enc_seq: (B, S, D) f32; mask: (B, S) bool, True = padded (trailing)."""
    B, S, D = enc_seq.shape
    n_layers = params["wo"].shape[0]
    Dc = params["c1b"].shape[-1]

    D_pad = _round_up(D, 128)
    Dc_pad = _round_up(Dc, 128)
    if S <= 128:
        S_pad = _round_up(S, 8)
        q_chunk = S_pad
    else:
        S_pad = _round_up(S, 128)
        q_chunk = 256 if S_pad % 256 == 0 else 128

    # trailing-padding mel mask -> per-sequence valid lengths (SMEM prefetch)
    lengths = jnp.sum((~mask).astype(jnp.int32), axis=-1).astype(jnp.int32)

    if pos_table.shape[0] < S:            # same fallback as the PyTorch module
        pos_table = get_sinusoid_encoding_table(S, D)

    x_p = jnp.pad(enc_seq, [(0, 0), (0, S_pad - S), (0, D_pad - D)])
    pos_p = jnp.pad(pos_table[:S, :], [(0, S_pad - S), (0, D_pad - D)])
    weights = _prep_weights(params, D, D_pad, Dc, Dc_pad)

    kernel = functools.partial(
        _decoder_layer_kernel,
        d_real=D, n_head=n_head,
        kernel_sizes=tuple(kernel_sizes), q_chunk=q_chunk)

    grid_spec = pltpu.PrefetchScalarGridSpec(
        num_scalar_prefetch=1,
        grid=(B, n_layers),
        in_specs=[
            pl.BlockSpec((1, S_pad, D_pad), lambda b, l, lens: (b, 0, 0)),
            pl.BlockSpec((S_pad, D_pad), lambda b, l, lens: (0, 0)),
        ] + [_wspec(w.shape) for w in weights],
        out_specs=pl.BlockSpec((1, S_pad, D_pad), lambda b, l, lens: (b, 0, 0)),
        scratch_shapes=[
            pltpu.VMEM((S_pad, D_pad), jnp.float32),   # layer carry x
            pltpu.VMEM((S_pad, D_pad), jnp.float32),   # post-attention y
        ],
    )

    out = pl.pallas_call(
        kernel,
        out_shape=jax.ShapeDtypeStruct((B, S_pad, D_pad), enc_seq.dtype),
        grid_spec=grid_spec,
        compiler_params=pltpu.CompilerParams(
            dimension_semantics=("parallel", "arbitrary"),
            vmem_limit_bytes=48 * 1024 * 1024),
    )(lengths, x_p, pos_p, *weights)
    return out[:, :S, :D]


# ----------------------------------------------------------------------------
# Deterministic parameter init (shapes follow the PyTorch module), stacked
# over layers so weights can be streamed by the layer grid axis.
# Conv weights stored per-tap: c1w[l, t] == PyTorch conv1.weight[:, :, t].T
# ----------------------------------------------------------------------------
def init_decoder_params(key, n_layers, d_model, n_head, d_conv, kernel_sizes):
    k1, k2 = kernel_sizes
    keys = jax.random.split(key, 4)

    def w(kk, shape, scale=0.02):
        return scale * jax.random.normal(kk, shape, dtype=jnp.float32)

    return dict(
        wqkv=w(keys[0], (n_layers, 3, d_model, d_model)),
        bqkv=jnp.zeros((n_layers, 3, d_model), jnp.float32),
        wo=w(keys[1], (n_layers, d_model, d_model)),
        bo=jnp.zeros((n_layers, d_model), jnp.float32),
        ln1_g=jnp.ones((n_layers, d_model), jnp.float32),
        ln1_b=jnp.zeros((n_layers, d_model), jnp.float32),
        c1w=w(keys[2], (n_layers, k1, d_model, d_conv)),
        c1b=jnp.zeros((n_layers, d_conv), jnp.float32),
        c2w=w(keys[3], (n_layers, k2, d_conv, d_model)),
        c2b=jnp.zeros((n_layers, d_model), jnp.float32),
        ln2_g=jnp.ones((n_layers, d_model), jnp.float32),
        ln2_b=jnp.zeros((n_layers, d_model), jnp.float32),
    )


# ----------------------------------------------------------------------------
# Demo
# ----------------------------------------------------------------------------
if __name__ == "__main__":
    batch = 2
    seq_len = 16
    max_seq_len = 32
    d_model = 32
    n_head = 2
    n_layers = 2
    d_conv = 64
    kernel_sizes = (9, 1)

    key = jax.random.PRNGKey(0)
    k_in, k_par = jax.random.split(key)

    enc_seq = jax.random.normal(k_in, (batch, seq_len, d_model),
                                dtype=jnp.float32)
    lengths = jnp.array([16, 12], dtype=jnp.int32)
    mask = jnp.arange(seq_len)[None, :] >= lengths[:, None]   # True = padded

    pos_table = get_sinusoid_encoding_table(max_seq_len + 1, d_model)
    params = init_decoder_params(k_par, n_layers, d_model, n_head,
                                 d_conv, kernel_sizes)

    out = decoder_forward(enc_seq, mask, pos_table, params, n_head,
                          kernel_sizes)
    out = jax.block_until_ready(out)

    assert out.shape == (batch, seq_len, d_model)
    assert bool(jnp.all(jnp.isfinite(out)))
    # padded rows must be zeroed by the mask
    assert bool(jnp.all(out[1, 12:, :] == 0.0))
    print("KERNEL_OK")
</pallas_src>

<mosaic_0001>
module attributes {stable_mosaic.version = 11 : i64} {
  func.func @_decoder_layer_kernel(%arg0: i32, %arg1: i32, %arg2: memref<2xi32, #tpu.memory_space<smem>>, %arg3: memref<1x16x128xf32, #tpu.memory_space<vmem>>, %arg4: memref<16x128xf32, #tpu.memory_space<vmem>>, %arg5: memref<1x128x384xbf16, #tpu.memory_space<vmem>>, %arg6: memref<1x1x384xf32, #tpu.memory_space<vmem>>, %arg7: memref<1x128x128xbf16, #tpu.memory_space<vmem>>, %arg8: memref<1x1x128xf32, #tpu.memory_space<vmem>>, %arg9: memref<1x1x128xf32, #tpu.memory_space<vmem>>, %arg10: memref<1x1x128xf32, #tpu.memory_space<vmem>>, %arg11: memref<1x9x128x128xbf16, #tpu.memory_space<vmem>>, %arg12: memref<1x1x128xf32, #tpu.memory_space<vmem>>, %arg13: memref<1x1x128x128xbf16, #tpu.memory_space<vmem>>, %arg14: memref<1x1x128xf32, #tpu.memory_space<vmem>>, %arg15: memref<1x1x128xf32, #tpu.memory_space<vmem>>, %arg16: memref<1x1x128xf32, #tpu.memory_space<vmem>>, %arg17: memref<1x16x128xf32, #tpu.memory_space<vmem>>, %arg18: memref<16x128xf32, #tpu.memory_space<vmem>>, %arg19: memref<16x128xf32, #tpu.memory_space<vmem>>) attributes {dimension_semantics = [#tpu.dimension_semantics<parallel>, #tpu.dimension_semantics<arbitrary>], iteration_bounds = array<i64: 2, 2>, scalar_prefetch = 1 : i64, scratch_operands = 2 : i64, tpu.core_type = #tpu.core_type<tc>, window_params = [{transform_indices = @transform_0, window_bounds = array<i64: 1, 16, 128>}, {pipeline_mode = #tpu.pipeline_mode<synchronous>, transform_indices = @transform_1, window_bounds = array<i64: 16, 128>}, {transform_indices = @transform_2, window_bounds = array<i64: 1, 128, 384>}, {transform_indices = @transform_3, window_bounds = array<i64: 1, 1, 384>}, {transform_indices = @transform_4, window_bounds = array<i64: 1, 128, 128>}, {transform_indices = @transform_5, window_bounds = array<i64: 1, 1, 128>}, {transform_indices = @transform_6, window_bounds = array<i64: 1, 1, 128>}, {transform_indices = @transform_7, window_bounds = array<i64: 1, 1, 128>}, {transform_indices = @transform_8, window_bounds = array<i64: 1, 9, 128, 128>}, {transform_indices = @transform_9, window_bounds = array<i64: 1, 1, 128>}, {transform_indices = @transform_10, window_bounds = array<i64: 1, 1, 128, 128>}, {transform_indices = @transform_11, window_bounds = array<i64: 1, 1, 128>}, {transform_indices = @transform_12, window_bounds = array<i64: 1, 1, 128>}, {transform_indices = @transform_13, window_bounds = array<i64: 1, 1, 128>}, {transform_indices = @transform_14, window_bounds = array<i64: 1, 16, 128>}]} {
    %0 = arith.index_cast %arg0 : i32 to index
    %1 = memref.load %arg2[%0] : memref<2xi32, #tpu.memory_space<smem>>
    %2 = tpu.iota {dimensions = array<i32: 1>} : vector<1x128xi32>
    %c32_i32 = arith.constant 32 : i32
    %3 = vector.broadcast %c32_i32 : i32 to vector<1x128xi32>
    %4 = arith.cmpi slt, %2, %3 : vector<1x128xi32>
    %5 = arith.extui %4 : vector<1x128xi1> to vector<1x128xi32>
    %6 = arith.sitofp %5 : vector<1x128xi32> to vector<1x128xf32>
    %7 = tpu.iota {dimensions = array<i32: 1>} : vector<1x16xi32>
    %8 = vector.broadcast %1 : i32 to vector<1x16xi32>
    %9 = arith.cmpi slt, %7, %8 : vector<1x16xi32>
    %cst = arith.constant 0.000000e+00 : f32
    %cst_0 = arith.constant -1.000000e+09 : f32
    %10 = vector.broadcast %cst : f32 to vector<1x16xf32>
    %11 = vector.broadcast %cst_0 : f32 to vector<1x16xf32>
    %12 = arith.select %9, %10, %11 : vector<1x16xi1>, vector<1x16xf32>
    %13 = tpu.iota {dimensions = array<i32: 0>} : vector<16x1xi32>
    %14 = vector.broadcast %1 : i32 to vector<16x1xi32>
    %15 = arith.cmpi slt, %13, %14 : vector<16x1xi32>
    %16 = arith.extui %15 : vector<16x1xi1> to vector<16x1xi32>
    %17 = arith.sitofp %16 : vector<16x1xi32> to vector<16x1xf32>
    %c0_i32 = arith.constant 0 : i32
    %18 = arith.cmpi eq, %arg1, %c0_i32 : i32
    %19 = arith.extui %18 : i1 to i32
    %c0_i32_1 = arith.constant 0 : i32
    %20 = arith.cmpi ne, %19, %c0_i32_1 : i32
    scf.if %20 {
      %c0_109 = arith.constant 0 : index
      %c0_110 = arith.constant 0 : index
      %c0_111 = arith.constant 0 : index
      %219 = vector.load %arg3[%c0_109, %c0_110, %c0_111] : memref<1x16x128xf32, #tpu.memory_space<vmem>>, vector<1x16x128xf32>
      %220 = vector.shape_cast %219 : vector<1x16x128xf32> to vector<16x128xf32>
      %c0_112 = arith.constant 0 : index
      %c0_113 = arith.constant 0 : index
      %221 = vector.load %arg4[%c0_112, %c0_113] : memref<16x128xf32, #tpu.memory_space<vmem>>, vector<16x128xf32>
      %222 = arith.addf %220, %221 : vector<16x128xf32>
      %c0_114 = arith.constant 0 : index
      %c0_115 = arith.constant 0 : index
      %223 = vector.load %arg18[%c0_114, %c0_115] : memref<16x128xf32, #tpu.memory_space<vmem>>, vector<16x128xf32>
      tpu.vector_store %arg18[%c0_114, %c0_115], %222 {strides = array<i32>} : memref<16x128xf32, #tpu.memory_space<vmem>>, vector<16x128xf32>,
    } else {
    }
    %c0 = arith.constant 0 : index
    %c0_2 = arith.constant 0 : index
    %c0_3 = arith.constant 0 : index
    %21 = vector.load %arg5[%c0, %c0_2, %c0_3] : memref<1x128x384xbf16, #tpu.memory_space<vmem>>, vector<1x128x384xbf16>
    %22 = vector.shape_cast %21 : vector<1x128x384xbf16> to vector<128x384xbf16>
    %c0_4 = arith.constant 0 : index
    %c0_5 = arith.constant 0 : index
    %c0_6 = arith.constant 0 : index
    %23 = vector.load %arg6[%c0_4, %c0_5, %c0_6] : memref<1x1x384xf32, #tpu.memory_space<vmem>>, vector<1x1x384xf32>
    %24 = vector.shape_cast %23 : vector<1x1x384xf32> to vector<1x384xf32>
    %c0_7 = arith.constant 0 : index
    %c0_8 = arith.constant 0 : index
    %c0_9 = arith.constant 0 : index
    %25 = vector.load %arg7[%c0_7, %c0_8, %c0_9] : memref<1x128x128xbf16, #tpu.memory_space<vmem>>, vector<1x128x128xbf16>
    %26 = vector.shape_cast %25 : vector<1x128x128xbf16> to vector<128x128xbf16>
    %c0_10 = arith.constant 0 : index
    %c0_11 = arith.constant 0 : index
    %c0_12 = arith.constant 0 : index
    %27 = vector.load %arg8[%c0_10, %c0_11, %c0_12] : memref<1x1x128xf32, #tpu.memory_space<vmem>>, vector<1x1x128xf32>
    %28 = vector.shape_cast %27 : vector<1x1x128xf32> to vector<1x128xf32>
    %c0_13 = arith.constant 0 : index
    %c0_14 = arith.constant 0 : index
    %c0_15 = arith.constant 0 : index
    %29 = vector.load %arg9[%c0_13, %c0_14, %c0_15] : memref<1x1x128xf32, #tpu.memory_space<vmem>>, vector<1x1x128xf32>
    %30 = vector.shape_cast %29 : vector<1x1x128xf32> to vector<1x128xf32>
    %c0_16 = arith.constant 0 : index
    %c0_17 = arith.constant 0 : index
    %c0_18 = arith.constant 0 : index
    %31 = vector.load %arg10[%c0_16, %c0_17, %c0_18] : memref<1x1x128xf32, #tpu.memory_space<vmem>>, vector<1x1x128xf32>
    %32 = vector.shape_cast %31 : vector<1x1x128xf32> to vector<1x128xf32>
    %c0_19 = arith.constant 0 : index
    %c0_20 = arith.constant 0 : index
    %c0_21 = arith.constant 0 : index
    %33 = vector.load %arg12[%c0_19, %c0_20, %c0_21] : memref<1x1x128xf32, #tpu.memory_space<vmem>>, vector<1x1x128xf32>
    %34 = vector.shape_cast %33 : vector<1x1x128xf32> to vector<1x128xf32>
    %c0_22 = arith.constant 0 : index
    %c0_23 = arith.constant 0 : index
    %c0_24 = arith.constant 0 : index
    %35 = vector.load %arg14[%c0_22, %c0_23, %c0_24] : memref<1x1x128xf32, #tpu.memory_space<vmem>>, vector<1x1x128xf32>
    %36 = vector.shape_cast %35 : vector<1x1x128xf32> to vector<1x128xf32>
    %c0_25 = arith.constant 0 : index
    %c0_26 = arith.constant 0 : index
    %c0_27 = arith.constant 0 : index
    %37 = vector.load %arg15[%c0_25, %c0_26, %c0_27] : memref<1x1x128xf32, #tpu.memory_space<vmem>>, vector<1x1x128xf32>
    %38 = vector.shape_cast %37 : vector<1x1x128xf32> to vector<1x128xf32>
    %c0_28 = arith.constant 0 : index
    %c0_29 = arith.constant 0 : index
    %c0_30 = arith.constant 0 : index
    %39 = vector.load %arg16[%c0_28, %c0_29, %c0_30] : memref<1x1x128xf32, #tpu.memory_space<vmem>>, vector<1x1x128xf32>
    %40 = vector.shape_cast %39 : vector<1x1x128xf32> to vector<1x128xf32>
    %c0_31 = arith.constant 0 : index
    %c0_32 = arith.constant 0 : index
    %41 = vector.load %arg18[%c0_31, %c0_32] : memref<16x128xf32, #tpu.memory_space<vmem>>, vector<16x128xf32>
    %42 = arith.truncf %41 : vector<16x128xf32> to vector<16x128xbf16>
    %cst_33 = arith.constant dense<0.000000e+00> : vector<16x384xf32>
    %43 = tpu.matmul %42, %22, %cst_33 {dimension_numbers = #tpu.dot_dimension_numbers<[1], [0], [0], [1], [0, 0, 1, 1], [], []>} : vector<16x128xbf16>, vector<128x384xbf16>, vector<16x384xf32> -> vector<16x384xf32>
    %44 = vector.broadcast %24 : vector<1x384xf32> to vector<16x384xf32>
    %45 = arith.addf %43, %44 : vector<16x384xf32>
    %46 = vector.extract_strided_slice %45 {offsets = [0, 0], sizes = [16, 128], strides = [1, 1]} : vector<16x384xf32> to vector<16x128xf32>
    %cst_34 = arith.constant 2.500000e-01 : f32
    %47 = vector.broadcast %cst_34 : f32 to vector<16x128xf32>
    %48 = arith.mulf %46, %47 : vector<16x128xf32>
    %49 = arith.truncf %48 : vector<16x128xf32> to vector<16x128xbf16>
    %50 = vector.extract_strided_slice %45 {offsets = [0, 128], sizes = [16, 256], strides = [1, 1]} : vector<16x384xf32> to vector<16x256xf32>
    %51 = arith.truncf %50 : vector<16x256xf32> to vector<16x256xbf16>
    %52 = vector.extract_strided_slice %51 {offsets = [0, 0], sizes = [16, 128], strides = [1, 1]} : vector<16x256xbf16> to vector<16x128xbf16>
    %53 = vector.extract_strided_slice %51 {offsets = [0, 128], sizes = [16, 128], strides = [1, 1]} : vector<16x256xbf16> to vector<16x128xbf16>
    %cst_35 = arith.constant 0.000000e+00 : f32
    %54 = vector.broadcast %cst_35 : f32 to vector<16x128xf32>
    %55 = vector.extract_strided_slice %49 {offsets = [0, 0], sizes = [16, 16], strides = [1, 1]} : vector<16x128xbf16> to vector<16x16xbf16>
    %56 = vector.extract_strided_slice %52 {offsets = [0, 0], sizes = [16, 16], strides = [1, 1]} : vector<16x128xbf16> to vector<16x16xbf16>
    %cst_36 = arith.constant dense<0.000000e+00> : vector<16x16xf32>
    %57 = tpu.matmul %55, %56, %cst_36 {dimension_numbers = #tpu.dot_dimension_numbers<[1], [1], [0], [0], [0, 0, 1, 0], [], []>} : vector<16x16xbf16>, vector<16x16xbf16>, vector<16x16xf32> -> vector<16x16xf32>
    %58 = vector.broadcast %12 : vector<1x16xf32> to vector<16x16xf32>
    %59 = arith.addf %57, %58 : vector<16x16xf32>
    %cst_37 = arith.constant dense<0xFF800000> : vector<16xf32>
    %60 = vector.multi_reduction <maximumf>, %59, %cst_37 [1] : vector<16x16xf32> to vector<16xf32>
    %61 = vector.shape_cast %60 : vector<16xf32> to vector<16x1xf32>
    %62 = vector.broadcast %61 : vector<16x1xf32> to vector<16x16xf32>
    %63 = arith.subf %59, %62 : vector<16x16xf32>
    %64 = math.exp %63 : vector<16x16xf32>
    %cst_38 = arith.constant dense<0.000000e+00> : vector<16xf32>
    %65 = vector.multi_reduction <add>, %64, %cst_38 [1] : vector<16x16xf32> to vector<16xf32>
    %66 = vector.shape_cast %65 : vector<16xf32> to vector<16x1xf32>
    %67 = tpu.reciprocal %66 {approx = true} : vector<16x1xf32> -> vector<16x1xf32>
    %68 = vector.broadcast %67 : vector<16x1xf32> to vector<16x16xf32>
    %69 = arith.mulf %64, %68 : vector<16x16xf32>
    %70 = arith.truncf %69 : vector<16x16xf32> to vector<16x16xbf16>
    %71 = vector.extract_strided_slice %53 {offsets = [0, 0], sizes = [16, 16], strides = [1, 1]} : vector<16x128xbf16> to vector<16x16xbf16>
    %cst_39 = arith.constant dense<0.000000e+00> : vector<16x16xf32>
    %72 = tpu.matmul %70, %71, %cst_39 {dimension_numbers = #tpu.dot_dimension_numbers<[1], [0], [0], [1], [0, 0, 1, 1], [], []>} : vector<16x16xbf16>, vector<16x16xbf16>, vector<16x16xf32> -> vector<16x16xf32>
    %73 = arith.truncf %72 : vector<16x16xf32> to vector<16x16xbf16>
    %74 = vector.extract_strided_slice %26 {offsets = [0, 0], sizes = [16, 128], strides = [1, 1]} : vector<128x128xbf16> to vector<16x128xbf16>
    %cst_40 = arith.constant dense<0.000000e+00> : vector<16x128xf32>
    %75 = tpu.matmul %73, %74, %cst_40 {dimension_numbers = #tpu.dot_dimension_numbers<[1], [0], [0], [1], [0, 0, 1, 1], [], []>} : vector<16x16xbf16>, vector<16x128xbf16>, vector<16x128xf32> -> vector<16x128xf32>
    %76 = arith.addf %54, %75 : vector<16x128xf32>
    %77 = vector.extract_strided_slice %49 {offsets = [0, 16], sizes = [16, 16], strides = [1, 1]} : vector<16x128xbf16> to vector<16x16xbf16>
    %78 = vector.extract_strided_slice %52 {offsets = [0, 16], sizes = [16, 16], strides = [1, 1]} : vector<16x128xbf16> to vector<16x16xbf16>
    %cst_41 = arith.constant dense<0.000000e+00> : vector<16x16xf32>
    %79 = tpu.matmul %77, %78, %cst_41 {dimension_numbers = #tpu.dot_dimension_numbers<[1], [1], [0], [0], [0, 0, 1, 0], [], []>} : vector<16x16xbf16>, vector<16x16xbf16>, vector<16x16xf32> -> vector<16x16xf32>
    %80 = vector.broadcast %12 : vector<1x16xf32> to vector<16x16xf32>
    %81 = arith.addf %79, %80 : vector<16x16xf32>
    %cst_42 = arith.constant dense<0xFF800000> : vector<16xf32>
    %82 = vector.multi_reduction <maximumf>, %81, %cst_42 [1] : vector<16x16xf32> to vector<16xf32>
    %83 = vector.shape_cast %82 : vector<16xf32> to vector<16x1xf32>
    %84 = vector.broadcast %83 : vector<16x1xf32> to vector<16x16xf32>
    %85 = arith.subf %81, %84 : vector<16x16xf32>
    %86 = math.exp %85 : vector<16x16xf32>
    %cst_43 = arith.constant dense<0.000000e+00> : vector<16xf32>
    %87 = vector.multi_reduction <add>, %86, %cst_43 [1] : vector<16x16xf32> to vector<16xf32>
    %88 = vector.shape_cast %87 : vector<16xf32> to vector<16x1xf32>
    %89 = tpu.reciprocal %88 {approx = true} : vector<16x1xf32> -> vector<16x1xf32>
    %90 = vector.broadcast %89 : vector<16x1xf32> to vector<16x16xf32>
    %91 = arith.mulf %86, %90 : vector<16x16xf32>
    %92 = arith.truncf %91 : vector<16x16xf32> to vector<16x16xbf16>
    %93 = vector.extract_strided_slice %53 {offsets = [0, 16], sizes = [16, 16], strides = [1, 1]} : vector<16x128xbf16> to vector<16x16xbf16>
    %cst_44 = arith.constant dense<0.000000e+00> : vector<16x16xf32>
    %94 = tpu.matmul %92, %93, %cst_44 {dimension_numbers = #tpu.dot_dimension_numbers<[1], [0], [0], [1], [0, 0, 1, 1], [], []>} : vector<16x16xbf16>, vector<16x16xbf16>, vector<16x16xf32> -> vector<16x16xf32>
    %95 = arith.truncf %94 : vector<16x16xf32> to vector<16x16xbf16>
    %96 = vector.extract_strided_slice %26 {offsets = [16, 0], sizes = [16, 128], strides = [1, 1]} : vector<128x128xbf16> to vector<16x128xbf16>
    %cst_45 = arith.constant dense<0.000000e+00> : vector<16x128xf32>
    %97 = tpu.matmul %95, %96, %cst_45 {dimension_numbers = #tpu.dot_dimension_numbers<[1], [0], [0], [1], [0, 0, 1, 1], [], []>} : vector<16x16xbf16>, vector<16x128xbf16>, vector<16x128xf32> -> vector<16x128xf32>
    %98 = arith.addf %76, %97 : vector<16x128xf32>
    %99 = vector.broadcast %28 : vector<1x128xf32> to vector<16x128xf32>
    %100 = arith.addf %98, %99 : vector<16x128xf32>
    %c0_46 = arith.constant 0 : index
    %c0_47 = arith.constant 0 : index
    %101 = vector.load %arg18[%c0_46, %c0_47] : memref<16x128xf32, #tpu.memory_space<vmem>>, vector<16x128xf32>
    %102 = arith.addf %100, %101 : vector<16x128xf32>
    %103 = vector.broadcast %6 : vector<1x128xf32> to vector<16x128xf32>
    %104 = arith.mulf %102, %103 : vector<16x128xf32>
    %cst_48 = arith.constant dense<0.000000e+00> : vector<16xf32>
    %105 = vector.multi_reduction <add>, %104, %cst_48 [1] : vector<16x128xf32> to vector<16xf32>
    %106 = vector.shape_cast %105 : vector<16xf32> to vector<16x1xf32>
    %cst_49 = arith.constant 3.125000e-02 : f32
    %107 = vector.broadcast %cst_49 : f32 to vector<16x1xf32>
    %108 = arith.mulf %106, %107 : vector<16x1xf32>
    %109 = vector.broadcast %108 : vector<16x1xf32> to vector<16x128xf32>
    %110 = arith.subf %104, %109 : vector<16x128xf32>
    %111 = vector.broadcast %6 : vector<1x128xf32> to vector<16x128xf32>
    %112 = arith.mulf %110, %111 : vector<16x128xf32>
    %113 = arith.mulf %112, %112 : vector<16x128xf32>
    %cst_50 = arith.constant dense<0.000000e+00> : vector<16xf32>
    %114 = vector.multi_reduction <add>, %113, %cst_50 [1] : vector<16x128xf32> to vector<16xf32>
    %115 = vector.shape_cast %114 : vector<16xf32> to vector<16x1xf32>
    %cst_51 = arith.constant 3.125000e-02 : f32
    %116 = vector.broadcast %cst_51 : f32 to vector<16x1xf32>
    %117 = arith.mulf %115, %116 : vector<16x1xf32>
    %cst_52 = arith.constant 9.99999974E-6 : f32
    %118 = vector.broadcast %cst_52 : f32 to vector<16x1xf32>
    %119 = arith.addf %117, %118 : vector<16x1xf32>
    %120 = math.rsqrt %119 : vector<16x1xf32>
    %121 = vector.broadcast %120 : vector<16x1xf32> to vector<16x128xf32>
    %122 = arith.mulf %112, %121 : vector<16x128xf32>
    %123 = vector.broadcast %30 : vector<1x128xf32> to vector<16x128xf32>
    %124 = arith.mulf %122, %123 : vector<16x128xf32>
    %125 = vector.broadcast %32 : vector<1x128xf32> to vector<16x128xf32>
    %126 = arith.addf %124, %125 : vector<16x128xf32>
    %127 = vector.broadcast %17 : vector<16x1xf32> to vector<16x128xf32>
    %128 = arith.mulf %126, %127 : vector<16x128xf32>
    %c0_53 = arith.constant 0 : index
    %c0_54 = arith.constant 0 : index
    %129 = vector.load %arg19[%c0_53, %c0_54] : memref<16x128xf32, #tpu.memory_space<vmem>>, vector<16x128xf32>
    tpu.vector_store %arg19[%c0_53, %c0_54], %128 {strides = array<i32>} : memref<16x128xf32, #tpu.memory_space<vmem>>, vector<16x128xf32>,
    %c0_55 = arith.constant 0 : index
    %c0_56 = arith.constant 0 : index
    %130 = vector.load %arg19[%c0_55, %c0_56] : memref<16x128xf32, #tpu.memory_space<vmem>>, vector<16x128xf32>
    %131 = arith.truncf %130 : vector<16x128xf32> to vector<16x128xbf16>
    %cst_57 = arith.constant 0.000000e+00 : bf16
    %132 = vector.broadcast %cst_57 : bf16 to vector<4x128xbf16>
    %133 = tpu.concatenate %132, %131, %132 in 0 : vector<4x128xbf16>, vector<16x128xbf16>, vector<4x128xbf16> -> vector<24x128xbf16>
    %134 = vector.extract_strided_slice %133 {offsets = [0, 0], sizes = [16, 128], strides = [1, 1]} : vector<24x128xbf16> to vector<16x128xbf16>
    %c0_58 = arith.constant 0 : index
    %c0_59 = arith.constant 0 : index
    %c0_60 = arith.constant 0 : index
    %c0_61 = arith.constant 0 : index
    %135 = vector.load %arg11[%c0_58, %c0_59, %c0_60, %c0_61] : memref<1x9x128x128xbf16, #tpu.memory_space<vmem>>, vector<1x1x128x128xbf16>
    %136 = vector.shape_cast %135 : vector<1x1x128x128xbf16> to vector<128x128xbf16>
    %cst_62 = arith.constant dense<0.000000e+00> : vector<16x128xf32>
    %137 = tpu.matmul %134, %136, %cst_62 {dimension_numbers = #tpu.dot_dimension_numbers<[1], [0], [0], [1], [0, 0, 1, 1], [], []>} : vector<16x128xbf16>, vector<128x128xbf16>, vector<16x128xf32> -> vector<16x128xf32>
    %138 = vector.extract_strided_slice %133 {offsets = [1, 0], sizes = [16, 128], strides = [1, 1]} : vector<24x128xbf16> to vector<16x128xbf16>
    %c0_63 = arith.constant 0 : index
    %c1 = arith.constant 1 : index
    %c0_64 = arith.constant 0 : index
    %c0_65 = arith.constant 0 : index
    %139 = vector.load %arg11[%c0_63, %c1, %c0_64, %c0_65] : memref<1x9x128x128xbf16, #tpu.memory_space<vmem>>, vector<1x1x128x128xbf16>
    %140 = vector.shape_cast %139 : vector<1x1x128x128xbf16> to vector<128x128xbf16>
    %cst_66 = arith.constant dense<0.000000e+00> : vector<16x128xf32>
    %141 = tpu.matmul %138, %140, %cst_66 {dimension_numbers = #tpu.dot_dimension_numbers<[1], [0], [0], [1], [0, 0, 1, 1], [], []>} : vector<16x128xbf16>, vector<128x128xbf16>, vector<16x128xf32> -> vector<16x128xf32>
    %142 = arith.addf %137, %141 : vector<16x128xf32>
    %143 = vector.extract_strided_slice %133 {offsets = [2, 0], sizes = [16, 128], strides = [1, 1]} : vector<24x128xbf16> to vector<16x128xbf16>
    %c0_67 = arith.constant 0 : index
    %c2 = arith.constant 2 : index
    %c0_68 = arith.constant 0 : index
    %c0_69 = arith.constant 0 : index
    %144 = vector.load %arg11[%c0_67, %c2, %c0_68, %c0_69] : memref<1x9x128x128xbf16, #tpu.memory_space<vmem>>, vector<1x1x128x128xbf16>
    %145 = vector.shape_cast %144 : vector<1x1x128x128xbf16> to vector<128x128xbf16>
    %cst_70 = arith.constant dense<0.000000e+00> : vector<16x128xf32>
    %146 = tpu.matmul %143, %145, %cst_70 {dimension_numbers = #tpu.dot_dimension_numbers<[1], [0], [0], [1], [0, 0, 1, 1], [], []>} : vector<16x128xbf16>, vector<128x128xbf16>, vector<16x128xf32> -> vector<16x128xf32>
    %147 = arith.addf %142, %146 : vector<16x128xf32>
    %148 = vector.extract_strided_slice %133 {offsets = [3, 0], sizes = [16, 128], strides = [1, 1]} : vector<24x128xbf16> to vector<16x128xbf16>
    %c0_71 = arith.constant 0 : index
    %c3 = arith.constant 3 : index
    %c0_72 = arith.constant 0 : index
    %c0_73 = arith.constant 0 : index
    %149 = vector.load %arg11[%c0_71, %c3, %c0_72, %c0_73] : memref<1x9x128x128xbf16, #tpu.memory_space<vmem>>, vector<1x1x128x128xbf16>
    %150 = vector.shape_cast %149 : vector<1x1x128x128xbf16> to vector<128x128xbf16>
    %cst_74 = arith.constant dense<0.000000e+00> : vector<16x128xf32>
    %151 = tpu.matmul %148, %150, %cst_74 {dimension_numbers = #tpu.dot_dimension_numbers<[1], [0], [0], [1], [0, 0, 1, 1], [], []>} : vector<16x128xbf16>, vector<128x128xbf16>, vector<16x128xf32> -> vector<16x128xf32>
    %152 = arith.addf %147, %151 : vector<16x128xf32>
    %153 = vector.extract_strided_slice %133 {offsets = [4, 0], sizes = [16, 128], strides = [1, 1]} : vector<24x128xbf16> to vector<16x128xbf16>
    %c0_75 = arith.constant 0 : index
    %c4 = arith.constant 4 : index
    %c0_76 = arith.constant 0 : index
    %c0_77 = arith.constant 0 : index
    %154 = vector.load %arg11[%c0_75, %c4, %c0_76, %c0_77] : memref<1x9x128x128xbf16, #tpu.memory_space<vmem>>, vector<1x1x128x128xbf16>
    %155 = vector.shape_cast %154 : vector<1x1x128x128xbf16> to vector<128x128xbf16>
    %cst_78 = arith.constant dense<0.000000e+00> : vector<16x128xf32>
    %156 = tpu.matmul %153, %155, %cst_78 {dimension_numbers = #tpu.dot_dimension_numbers<[1], [0], [0], [1], [0, 0, 1, 1], [], []>} : vector<16x128xbf16>, vector<128x128xbf16>, vector<16x128xf32> -> vector<16x128xf32>
    %157 = arith.addf %152, %156 : vector<16x128xf32>
    %158 = vector.extract_strided_slice %133 {offsets = [5, 0], sizes = [16, 128], strides = [1, 1]} : vector<24x128xbf16> to vector<16x128xbf16>
    %c0_79 = arith.constant 0 : index
    %c5 = arith.constant 5 : index
    %c0_80 = arith.constant 0 : index
    %c0_81 = arith.constant 0 : index
    %159 = vector.load %arg11[%c0_79, %c5, %c0_80, %c0_81] : memref<1x9x128x128xbf16, #tpu.memory_space<vmem>>, vector<1x1x128x128xbf16>
    %160 = vector.shape_cast %159 : vector<1x1x128x128xbf16> to vector<128x128xbf16>
    %cst_82 = arith.constant dense<0.000000e+00> : vector<16x128xf32>
    %161 = tpu.matmul %158, %160, %cst_82 {dimension_numbers = #tpu.dot_dimension_numbers<[1], [0], [0], [1], [0, 0, 1, 1], [], []>} : vector<16x128xbf16>, vector<128x128xbf16>, vector<16x128xf32> -> vector<16x128xf32>
    %162 = arith.addf %157, %161 : vector<16x128xf32>
    %163 = vector.extract_strided_slice %133 {offsets = [6, 0], sizes = [16, 128], strides = [1, 1]} : vector<24x128xbf16> to vector<16x128xbf16>
    %c0_83 = arith.constant 0 : index
    %c6 = arith.constant 6 : index
    %c0_84 = arith.constant 0 : index
    %c0_85 = arith.constant 0 : index
    %164 = vector.load %arg11[%c0_83, %c6, %c0_84, %c0_85] : memref<1x9x128x128xbf16, #tpu.memory_space<vmem>>, vector<1x1x128x128xbf16>
    %165 = vector.shape_cast %164 : vector<1x1x128x128xbf16> to vector<128x128xbf16>
    %cst_86 = arith.constant dense<0.000000e+00> : vector<16x128xf32>
    %166 = tpu.matmul %163, %165, %cst_86 {dimension_numbers = #tpu.dot_dimension_numbers<[1], [0], [0], [1], [0, 0, 1, 1], [], []>} : vector<16x128xbf16>, vector<128x128xbf16>, vector<16x128xf32> -> vector<16x128xf32>
    %167 = arith.addf %162, %166 : vector<16x128xf32>
    %168 = vector.extract_strided_slice %133 {offsets = [7, 0], sizes = [16, 128], strides = [1, 1]} : vector<24x128xbf16> to vector<16x128xbf16>
    %c0_87 = arith.constant 0 : index
    %c7 = arith.constant 7 : index
    %c0_88 = arith.constant 0 : index
    %c0_89 = arith.constant 0 : index
    %169 = vector.load %arg11[%c0_87, %c7, %c0_88, %c0_89] : memref<1x9x128x128xbf16, #tpu.memory_space<vmem>>, vector<1x1x128x128xbf16>
    %170 = vector.shape_cast %169 : vector<1x1x128x128xbf16> to vector<128x128xbf16>
    %cst_90 = arith.constant dense<0.000000e+00> : vector<16x128xf32>
    %171 = tpu.matmul %168, %170, %cst_90 {dimension_numbers = #tpu.dot_dimension_numbers<[1], [0], [0], [1], [0, 0, 1, 1], [], []>} : vector<16x128xbf16>, vector<128x128xbf16>, vector<16x128xf32> -> vector<16x128xf32>
    %172 = arith.addf %167, %171 : vector<16x128xf32>
    %173 = vector.extract_strided_slice %133 {offsets = [8, 0], sizes = [16, 128], strides = [1, 1]} : vector<24x128xbf16> to vector<16x128xbf16>
    %c0_91 = arith.constant 0 : index
    %c8 = arith.constant 8 : index
    %c0_92 = arith.constant 0 : index
    %c0_93 = arith.constant 0 : index
    %174 = vector.load %arg11[%c0_91, %c8, %c0_92, %c0_93] : memref<1x9x128x128xbf16, #tpu.memory_space<vmem>>, vector<1x1x128x128xbf16>
    %175 = vector.shape_cast %174 : vector<1x1x128x128xbf16> to vector<128x128xbf16>
    %cst_94 = arith.constant dense<0.000000e+00> : vector<16x128xf32>
    %176 = tpu.matmul %173, %175, %cst_94 {dimension_numbers = #tpu.dot_dimension_numbers<[1], [0], [0], [1], [0, 0, 1, 1], [], []>} : vector<16x128xbf16>, vector<128x128xbf16>, vector<16x128xf32> -> vector<16x128xf32>
    %177 = arith.addf %172, %176 : vector<16x128xf32>
    %178 = vector.broadcast %34 : vector<1x128xf32> to vector<16x128xf32>
    %179 = arith.addf %177, %178 : vector<16x128xf32>
    %cst_95 = arith.constant 0.000000e+00 : f32
    %180 = vector.broadcast %cst_95 : f32 to vector<16x128xf32>
    %181 = arith.maximumf %179, %180 : vector<16x128xf32>
    %182 = arith.truncf %181 : vector<16x128xf32> to vector<16x128xbf16>
    %c0_96 = arith.constant 0 : index
    %c0_97 = arith.constant 0 : index
    %c0_98 = arith.constant 0 : index
    %c0_99 = arith.constant 0 : index
    %183 = vector.load %arg13[%c0_96, %c0_97, %c0_98, %c0_99] : memref<1x1x128x128xbf16, #tpu.memory_space<vmem>>, vector<1x1x128x128xbf16>
    %184 = vector.shape_cast %183 : vector<1x1x128x128xbf16> to vector<128x128xbf16>
    %cst_100 = arith.constant dense<0.000000e+00> : vector<16x128xf32>
    %185 = tpu.matmul %182, %184, %cst_100 {dimension_numbers = #tpu.dot_dimension_numbers<[1], [0], [0], [1], [0, 0, 1, 1], [], []>} : vector<16x128xbf16>, vector<128x128xbf16>, vector<16x128xf32> -> vector<16x128xf32>
    %186 = vector.broadcast %36 : vector<1x128xf32> to vector<16x128xf32>
    %187 = arith.addf %185, %186 : vector<16x128xf32>
    %188 = arith.addf %187, %130 : vector<16x128xf32>
    %189 = vector.broadcast %6 : vector<1x128xf32> to vector<16x128xf32>
    %190 = arith.mulf %188, %189 : vector<16x128xf32>
    %cst_101 = arith.constant dense<0.000000e+00> : vector<16xf32>
    %191 = vector.multi_reduction <add>, %190, %cst_101 [1] : vector<16x128xf32> to vector<16xf32>
    %192 = vector.shape_cast %191 : vector<16xf32> to vector<16x1xf32>
    %cst_102 = arith.constant 3.125000e-02 : f32
    %193 = vector.broadcast %cst_102 : f32 to vector<16x1xf32>
    %194 = arith.mulf %192, %193 : vector<16x1xf32>
    %195 = vector.broadcast %194 : vector<16x1xf32> to vector<16x128xf32>
    %196 = arith.subf %190, %195 : vector<16x128xf32>
    %197 = vector.broadcast %6 : vector<1x128xf32> to vector<16x128xf32>
    %198 = arith.mulf %196, %197 : vector<16x128xf32>
    %199 = arith.mulf %198, %198 : vector<16x128xf32>
    %cst_103 = arith.constant dense<0.000000e+00> : vector<16xf32>
    %200 = vector.multi_reduction <add>, %199, %cst_103 [1] : vector<16x128xf32> to vector<16xf32>
    %201 = vector.shape_cast %200 : vector<16xf32> to vector<16x1xf32>
    %cst_104 = arith.constant 3.125000e-02 : f32
    %202 = vector.broadcast %cst_104 : f32 to vector<16x1xf32>
    %203 = arith.mulf %201, %202 : vector<16x1xf32>
    %cst_105 = arith.constant 9.99999974E-6 : f32
    %204 = vector.broadcast %cst_105 : f32 to vector<16x1xf32>
    %205 = arith.addf %203, %204 : vector<16x1xf32>
    %206 = math.rsqrt %205 : vector<16x1xf32>
    %207 = vector.broadcast %206 : vector<16x1xf32> to vector<16x128xf32>
    %208 = arith.mulf %198, %207 : vector<16x128xf32>
    %209 = vector.broadcast %38 : vector<1x128xf32> to vector<16x128xf32>
    %210 = arith.mulf %208, %209 : vector<16x128xf32>
    %211 = vector.broadcast %40 : vector<1x128xf32> to vector<16x128xf32>
    %212 = arith.addf %210, %211 : vector<16x128xf32>
    %213 = vector.broadcast %17 : vector<16x1xf32> to vector<16x128xf32>
    %214 = arith.mulf %212, %213 : vector<16x128xf32>
    %c0_106 = arith.constant 0 : index
    %c0_107 = arith.constant 0 : index
    %215 = vector.load %arg18[%c0_106, %c0_107] : memref<16x128xf32, #tpu.memory_space<vmem>>, vector<16x128xf32>
    tpu.vector_store %arg18[%c0_106, %c0_107], %214 {strides = array<i32>} : memref<16x128xf32, #tpu.memory_space<vmem>>, vector<16x128xf32>,
    %c1_i32 = arith.constant 1 : i32
    %216 = arith.cmpi eq, %arg1, %c1_i32 : i32
    %217 = arith.extui %216 : i1 to i32
    %c0_i32_108 = arith.constant 0 : i32
    %218 = arith.cmpi ne, %217, %c0_i32_108 : i32
    scf.if %218 {
      %c0_109 = arith.constant 0 : index
      %c0_110 = arith.constant 0 : index
      %c0_111 = arith.constant 0 : index
      %219 = vector.load %arg17[%c0_109, %c0_110, %c0_111] : memref<1x16x128xf32, #tpu.memory_space<vmem>>, vector<1x16x128xf32>
      %220 = vector.shape_cast %219 : vector<1x16x128xf32> to vector<16x128xf32>
      %221 = vector.shape_cast %214 : vector<16x128xf32> to vector<1x16x128xf32>
      tpu.vector_store %arg17[%c0_109, %c0_110, %c0_111], %221 {strides = array<i32>} : memref<1x16x128xf32, #tpu.memory_space<vmem>>, vector<1x16x128xf32>,
    } else {
    }
    return
  }
  func.func @transform_0(%arg0: i32, %arg1: i32, %arg2: memref<2xi32, #tpu.memory_space<smem>>) -> (i32, i32, i32) {
    %c0_i32 = arith.constant 0 : i32
    %c0_i32_0 = arith.constant 0 : i32
    %c0_i32_1 = arith.constant 0 : i32
    return %arg0, %c0_i32, %c0_i32_0 : i32, i32, i32
  }
  func.func @transform_1(%arg0: i32, %arg1: i32, %arg2: memref<2xi32, #tpu.memory_space<smem>>) -> (i32, i32) {
    %c0_i32 = arith.constant 0 : i32
    %c0_i32_0 = arith.constant 0 : i32
    %c0_i32_1 = arith.constant 0 : i32
    return %c0_i32, %c0_i32_0 : i32, i32
  }
  func.func @transform_2(%arg0: i32, %arg1: i32, %arg2: memref<2xi32, #tpu.memory_space<smem>>) -> (i32, i32, i32) {
    %c0_i32 = arith.constant 0 : i32
    %c0_i32_0 = arith.constant 0 : i32
    %c0_i32_1 = arith.constant 0 : i32
    return %arg1, %c0_i32, %c0_i32_0 : i32, i32, i32
  }
  func.func @transform_3(%arg0: i32, %arg1: i32, %arg2: memref<2xi32, #tpu.memory_space<smem>>) -> (i32, i32, i32) {
    %c0_i32 = arith.constant 0 : i32
    %c0_i32_0 = arith.constant 0 : i32
    %c0_i32_1 = arith.constant 0 : i32
    return %arg1, %c0_i32, %c0_i32_0 : i32, i32, i32
  }
  func.func @transform_4(%arg0: i32, %arg1: i32, %arg2: memref<2xi32, #tpu.memory_space<smem>>) -> (i32, i32, i32) {
    %c0_i32 = arith.constant 0 : i32
    %c0_i32_0 = arith.constant 0 : i32
    %c0_i32_1 = arith.constant 0 : i32
    return %arg1, %c0_i32, %c0_i32_0 : i32, i32, i32
  }
  func.func @transform_5(%arg0: i32, %arg1: i32, %arg2: memref<2xi32, #tpu.memory_space<smem>>) -> (i32, i32, i32) {
    %c0_i32 = arith.constant 0 : i32
    %c0_i32_0 = arith.constant 0 : i32
    %c0_i32_1 = arith.constant 0 : i32
    return %arg1, %c0_i32, %c0_i32_0 : i32, i32, i32
  }
  func.func @transform_6(%arg0: i32, %arg1: i32, %arg2: memref<2xi32, #tpu.memory_space<smem>>) -> (i32, i32, i32) {
    %c0_i32 = arith.constant 0 : i32
    %c0_i32_0 = arith.constant 0 : i32
    %c0_i32_1 = arith.constant 0 : i32
    return %arg1, %c0_i32, %c0_i32_0 : i32, i32, i32
  }
  func.func @transform_7(%arg0: i32, %arg1: i32, %arg2: memref<2xi32, #tpu.memory_space<smem>>) -> (i32, i32, i32) {
    %c0_i32 = arith.constant 0 : i32
    %c0_i32_0 = arith.constant 0 : i32
    %c0_i32_1 = arith.constant 0 : i32
    return %arg1, %c0_i32, %c0_i32_0 : i32, i32, i32
  }
  func.func @transform_8(%arg0: i32, %arg1: i32, %arg2: memref<2xi32, #tpu.memory_space<smem>>) -> (i32, i32, i32, i32) {
    %c0_i32 = arith.constant 0 : i32
    %c0_i32_0 = arith.constant 0 : i32
    %c0_i32_1 = arith.constant 0 : i32
    %c0_i32_2 = arith.constant 0 : i32
    return %arg1, %c0_i32, %c0_i32_0, %c0_i32_1 : i32, i32, i32, i32
  }
  func.func @transform_9(%arg0: i32, %arg1: i32, %arg2: memref<2xi32, #tpu.memory_space<smem>>) -> (i32, i32, i32) {
    %c0_i32 = arith.constant 0 : i32
    %c0_i32_0 = arith.constant 0 : i32
    %c0_i32_1 = arith.constant 0 : i32
    return %arg1, %c0_i32, %c0_i32_0 : i32, i32, i32
  }
  func.func @transform_10(%arg0: i32, %arg1: i32, %arg2: memref<2xi32, #tpu.memory_space<smem>>) -> (i32, i32, i32, i32) {
    %c0_i32 = arith.constant 0 : i32
    %c0_i32_0 = arith.constant 0 : i32
    %c0_i32_1 = arith.constant 0 : i32
    %c0_i32_2 = arith.constant 0 : i32
    return %arg1, %c0_i32, %c0_i32_0, %c0_i32_1 : i32, i32, i32, i32
  }
  func.func @transform_11(%arg0: i32, %arg1: i32, %arg2: memref<2xi32, #tpu.memory_space<smem>>) -> (i32, i32, i32) {
    %c0_i32 = arith.constant 0 : i32
    %c0_i32_0 = arith.constant 0 : i32
    %c0_i32_1 = arith.constant 0 : i32
    return %arg1, %c0_i32, %c0_i32_0 : i32, i32, i32
  }
  func.func @transform_12(%arg0: i32, %arg1: i32, %arg2: memref<2xi32, #tpu.memory_space<smem>>) -> (i32, i32, i32) {
    %c0_i32 = arith.constant 0 : i32
    %c0_i32_0 = arith.constant 0 : i32
    %c0_i32_1 = arith.constant 0 : i32
    return %arg1, %c0_i32, %c0_i32_0 : i32, i32, i32
  }
  func.func @transform_13(%arg0: i32, %arg1: i32, %arg2: memref<2xi32, #tpu.memory_space<smem>>) -> (i32, i32, i32) {
    %c0_i32 = arith.constant 0 : i32
    %c0_i32_0 = arith.constant 0 : i32
    %c0_i32_1 = arith.constant 0 : i32
    return %arg1, %c0_i32, %c0_i32_0 : i32, i32, i32
  }
  func.func @transform_14(%arg0: i32, %arg1: i32, %arg2: memref<2xi32, #tpu.memory_space<smem>>) -> (i32, i32, i32) {
    %c0_i32 = arith.constant 0 : i32
    %c0_i32_0 = arith.constant 0 : i32
    %c0_i32_1 = arith.constant 0 : i32
    return %arg0, %c0_i32, %c0_i32_0 : i32, i32, i32
  }
}

</mosaic_0001>

<llo_original>
// kernel: tpu_custom_call.1
$region0: #{tpu_custom_call.1}
  #allocation0 [shape = 'u32[]', space=smem, size = 0x4, offset = 0x4, fixed_abs, tag = 'smem constant byte address 0x4 - core index']
  #allocation1 [shape = 'u32[144,128]{1,0:T(1,128)}', space=vmem, size = 0x12000, scoped, tag = 'internal scratch']
  #allocation2 [shape = 'f32[16,128]{1,0:T(8,128)}', space=vmem, size = 0x2000, scoped, tag = 'scratch operand']
  #allocation3 [shape = 'f32[16,128]{1,0:T(8,128)}', space=vmem, size = 0x2000, scoped, tag = 'scratch operand']
  #allocation4 [shape = 's32[1]{0}', space=sflag, size = 0x4, scoped, tag = 'scoped memory for tpu_custom_call.1']
  #allocation5 [shape = 'u8[512]{0}', space=smem, size = 0x200, scoped, tag = 'prefetched SMEM operand 0']
  %s0 = inlined_call_operand.hbm [shape: s32[2], index: 0, kind: input, shape index: {}]
  %s1 = inlined_call_operand.hbm [shape: f32[2,16,128], index: 1, kind: input, shape index: {}]
  %s2 = inlined_call_operand.hbm [shape: f32[16,128], index: 2, kind: input, shape index: {}]
  %s3 = inlined_call_operand.hbm [shape: bf16[2,128,384], index: 3, kind: input, shape index: {}]
  %s4 = inlined_call_operand.vmem [shape: f32[2,1,384], index: 4, kind: input, shape index: {}]
  %s5 = inlined_call_operand.hbm [shape: bf16[2,128,128], index: 5, kind: input, shape index: {}]
  %s6 = inlined_call_operand.vmem [shape: f32[2,1,128], index: 6, kind: input, shape index: {}]
  %s7 = inlined_call_operand.vmem [shape: f32[2,1,128], index: 7, kind: input, shape index: {}]
  %s8 = inlined_call_operand.vmem [shape: f32[2,1,128], index: 8, kind: input, shape index: {}]
  %s9 = inlined_call_operand.hbm [shape: bf16[2,9,128,128], index: 9, kind: input, shape index: {}]
  %s10 = inlined_call_operand.vmem [shape: f32[2,1,128], index: 10, kind: input, shape index: {}]
  %s11 = inlined_call_operand.hbm [shape: bf16[2,1,128,128], index: 11, kind: input, shape index: {}]
  %s12 = inlined_call_operand.vmem [shape: f32[2,1,128], index: 12, kind: input, shape index: {}]
  %s13 = inlined_call_operand.vmem [shape: f32[2,1,128], index: 13, kind: input, shape index: {}]
  %s14 = inlined_call_operand.vmem [shape: f32[2,1,128], index: 14, kind: input, shape index: {}]
  %s15 = inlined_call_operand.hbm [shape: f32[2,16,128], index: 15, kind: output, shape index: {}]
  %s16 = sld [smem:[#allocation0]]
  $region121: #{tpu_custom_call.1} parent=0
    _
  %s18 = ssub.s32 1, %s16
  %s19 = scalar_select 0, %s18, %s16
  %21 = dma.hbm_to_smem %s0, 16, [#allocation5], [#allocation4]
  %22 = dma.done [#allocation4], 16
  %23 = sfence
  $region1: #{tpu_custom_call.1} parent=0
    #allocation6 [shape = 'u8[16384]{0}', space=vmem, size = 0x4000, scoped, tag = 'input window, operand 1']
    #allocation7 [shape = 's32[2]{0}', space=sflag, size = 0x8, scoped, tag = 'scoped memory for tpu_custom_call.1']
    #allocation8 [shape = 's32[2]{0}', space=sflag, size = 0x8, scoped, tag = 'scoped memory for tpu_custom_call.1']
    #allocation9 [shape = 'u8[8192]{0}', space=vmem, size = 0x2000, scoped, tag = 'input window, operand 2, single buffered']
    #allocation10 [shape = 's32[1]{0}', space=sflag, size = 0x4, scoped, tag = 'scoped memory for tpu_custom_call.1']
    #allocation11 [shape = 'u8[196608]{0}', space=vmem, size = 0x30000, scoped, tag = 'input window, operand 3']
    #allocation12 [shape = 'u8[65536]{0}', space=vmem, size = 0x10000, scoped, tag = 'input window, operand 5']
    #allocation13 [shape = 'u8[589824]{0}', space=vmem, size = 0x90000, scoped, tag = 'input window, operand 9']
    #allocation14 [shape = 'u8[65536]{0}', space=vmem, size = 0x10000, scoped, tag = 'input window, operand 11']
    #allocation15 [shape = 'u8[16384]{0}', space=vmem, size = 0x4000, scoped, tag = 'output window, operand 0']
    %24 = vsyncpa [#allocation7], 0
    %s25 = scalar_lea.sflag [#allocation7], 1
    %26 = vsyncpa %s25, 0
    %27 = vsyncpa [#allocation10], 0
    %28 = vsyncpa [#allocation8], 0
    %s29 = scalar_lea.sflag [#allocation8], 1
    %30 = vsyncpa %s29, 0
    loop: start=0, step=1, limit=6
    $region2: #{tpu_custom_call.1} parent=1 // loop_pre_header
      _
    $region3: #{tpu_custom_call.1} parent=1 // loop_header
      %s32 = sphi 0, %s36
      %p33 = scmp.ge.s32.totalorder %s32, 6
      %s39 = sphi 0, %s51
      %s40 = sphi 0, %s47
      %s41 = sphi 0, %s39
      %s42 = sphi 0, %s40
      %s43 = sphi 0, %s41
      %s44 = sphi 0, %s42
      %s54 = sphi 0, %s56
      %s57 = sphi 0, %s54
      %s58 = sphi 0, %s57
      %s74 = sphi 0, %s58
      %s78 = sphi 0, %s78
      %s80 = sphi 0, %s78
      %s81 = sphi 0, %s80
      %s95 = sphi 0, %s81
      %s101 = sphi 0, %s103
      %s104 = sphi 0, %s101
      %s105 = sphi 0, %s104
      %s121 = sphi 0, %s105
      %s127 = sphi 0, %s129
      %s130 = sphi 0, %s127
      %s131 = sphi 0, %s130
      %s147 = sphi 0, %s131
      %s153 = sphi 0, %s155
      %s156 = sphi 0, %s153
      %s157 = sphi 0, %s156
      %s173 = sphi 0, %s157
      %s179 = sphi 0, %s181
      %s182 = sphi 0, %s179
      %s183 = sphi 0, %s182
      %s199 = sphi 0, %s183
      %s205 = sphi 0, %s207
      %s208 = sphi 0, %s205
      %s209 = sphi 0, %s208
      %s225 = sphi 0, %s209
      %s231 = sphi 0, %s233
      %s234 = sphi 0, %s231
      %s235 = sphi 0, %s234
      %s251 = sphi 0, %s235
      %s257 = sphi 0, %s259
      %s260 = sphi 0, %s257
      %s261 = sphi 0, %s260
      %s277 = sphi 0, %s261
      %s283 = sphi 0, %s285
      %s286 = sphi 0, %s283
      %s287 = sphi 0, %s286
      %s303 = sphi 0, %s287
      %s309 = sphi 0, %s311
      %s312 = sphi 0, %s309
      %s313 = sphi 0, %s312
      %s329 = sphi 0, %s313
      %s335 = sphi 0, %s337
      %s338 = sphi 0, %s335
      %s339 = sphi 0, %s338
      %s355 = sphi 0, %s339
      %s361 = sphi 0, %s363
      %s364 = sphi 0, %s361
      %s365 = sphi 0, %s364
      %s381 = sphi 0, %s365
      %s387 = sphi 0, %s389
      %s390 = sphi 0, %s387
      %s391 = sphi 0, %s390
      %s407 = sphi 0, %s391
      %s413 = sphi 0, %s415
      %s416 = sphi 0, %s413
      %s417 = sphi 0, %s416
      %s433 = sphi 0, %s417
    $region4: #{tpu_custom_call.1} parent=1 // loop_header_branch
      %35 = sbr.rel (%p33) target = $region8
    $region5: #{tpu_custom_call.1} parent=1 // loop_body
      %s37 = ssub.s32 %s32, 1
      %s38 = ssub.s32 %s32, 2
      %s45 = sadd.s32 1, %s40
      %p46 = scmp.ge.s32.totalorder %s45, 2
      %s47 = scalar_select %p46, 0, %s45
      %s48 = sadd.s32 1, %s39
      %s49 = scalar_select %p46, %s48, %s39
      %p50 = scmp.ge.s32.totalorder %s49, 2
      %s51 = scalar_select %p50, 0, %s49
      %s52 = ssub.s32 %s39, %s51
      %p53 = scmp.eq.s32.totalorder %s52, 0
      %s55 = sadd.s32 %s54, 1
      %s56 = scalar_select %p53, %s54, %s55
      %p59 = pneg %p53
      %p60 = scmp.eq.s32.totalorder %s32, 3
      %p61 = por %p59, %p60
      %p62 = scmp.ne.s32.totalorder %s54, %s57
      %p63 = scmp.eq.s32.totalorder %s32, 0
      %p64 = por %p62, %p63
      %p65 = scmp.ne.s32.totalorder %s54, %s57
      %p66 = scmp.eq.s32.totalorder %s37, 3
      %p67 = por %p65, %p66
      %p68 = scmp.ne.s32.totalorder %s57, %s58
      %p69 = scmp.eq.s32.totalorder %s37, 0
      %p70 = por %p68, %p69
      %p71 = scmp.ne.s32.totalorder %s57, %s58
      %p72 = scmp.eq.s32.totalorder %s38, 3
      %p73 = por %p71, %p72
      %p75 = scmp.ne.s32.totalorder %s58, %s74
      %p76 = scmp.eq.s32.totalorder %s38, 0
      %p77 = por %p75, %p76
      %s79 = sadd.s32 %s78, 1
      %p82 = scmp.eq.s32.totalorder %s32, 3
      %p83 = scmp.ne.s32.totalorder %s78, %s80
      %p84 = scmp.eq.s32.totalorder %s32, 0
      %p85 = por %p83, %p84
      %p86 = scmp.ne.s32.totalorder %s78, %s80
      %p87 = scmp.eq.s32.totalorder %s37, 3
      %p88 = por %p86, %p87
      %p89 = scmp.ne.s32.totalorder %s80, %s81
      %p90 = scmp.eq.s32.totalorder %s37, 0
      %p91 = por %p89, %p90
      %p92 = scmp.ne.s32.totalorder %s80, %s81
      %p93 = scmp.eq.s32.totalorder %s38, 3
      %p94 = por %p92, %p93
      %p96 = scmp.ne.s32.totalorder %s81, %s95
      %p97 = scmp.eq.s32.totalorder %s38, 0
      %p98 = por %p96, %p97
      %s99 = ssub.s32 %s40, %s47
      %p100 = scmp.eq.s32.totalorder %s99, 0
      %s102 = sadd.s32 %s101, 1
      %s103 = scalar_select %p100, %s101, %s102
      %p106 = pneg %p100
      %p107 = scmp.eq.s32.totalorder %s32, 3
      %p108 = por %p106, %p107
      %p109 = scmp.ne.s32.totalorder %s101, %s104
      %p110 = scmp.eq.s32.totalorder %s32, 0
      %p111 = por %p109, %p110
      %p112 = scmp.ne.s32.totalorder %s101, %s104
      %p113 = scmp.eq.s32.totalorder %s37, 3
      %p114 = por %p112, %p113
      %p115 = scmp.ne.s32.totalorder %s104, %s105
      %p116 = scmp.eq.s32.totalorder %s37, 0
      %p117 = por %p115, %p116
      %p118 = scmp.ne.s32.totalorder %s104, %s105
      %p119 = scmp.eq.s32.totalorder %s38, 3
      %p120 = por %p118, %p119
      %p122 = scmp.ne.s32.totalorder %s105, %s121
      %p123 = scmp.eq.s32.totalorder %s38, 0
      %p124 = por %p122, %p123
      %s125 = ssub.s32 %s40, %s47
      %p126 = scmp.eq.s32.totalorder %s125, 0
      %s128 = sadd.s32 %s127, 1
      %s129 = scalar_select %p126, %s127, %s128
      %p132 = pneg %p126
      %p133 = scmp.eq.s32.totalorder %s32, 3
      %p134 = por %p132, %p133
      %p135 = scmp.ne.s32.totalorder %s127, %s130
      %p136 = scmp.eq.s32.totalorder %s32, 0
      %p137 = por %p135, %p136
      %p138 = scmp.ne.s32.totalorder %s127, %s130
      %p139 = scmp.eq.s32.totalorder %s37, 3
      %p140 = por %p138, %p139
      %p141 = scmp.ne.s32.totalorder %s130, %s131
      %p142 = scmp.eq.s32.totalorder %s37, 0
      %p143 = por %p141, %p142
      %p144 = scmp.ne.s32.totalorder %s130, %s131
      %p145 = scmp.eq.s32.totalorder %s38, 3
      %p146 = por %p144, %p145
      %p148 = scmp.ne.s32.totalorder %s131, %s147
      %p149 = scmp.eq.s32.totalorder %s38, 0
      %p150 = por %p148, %p149
      %s151 = ssub.s32 %s40, %s47
      %p152 = scmp.eq.s32.totalorder %s151, 0
      %s154 = sadd.s32 %s153, 1
      %s155 = scalar_select %p152, %s153, %s154
      %p158 = pneg %p152
      %p159 = scmp.eq.s32.totalorder %s32, 3
      %p160 = por %p158, %p159
      %p161 = scmp.ne.s32.totalorder %s153, %s156
      %p162 = scmp.eq.s32.totalorder %s32, 0
      %p163 = por %p161, %p162
      %p164 = scmp.ne.s32.totalorder %s153, %s156
      %p165 = scmp.eq.s32.totalorder %s37, 3
      %p166 = por %p164, %p165
      %p167 = scmp.ne.s32.totalorder %s156, %s157
      %p168 = scmp.eq.s32.totalorder %s37, 0
      %p169 = por %p167, %p168
      %p170 = scmp.ne.s32.totalorder %s156, %s157
      %p171 = scmp.eq.s32.totalorder %s38, 3
      %p172 = por %p170, %p171
      %p174 = scmp.ne.s32.totalorder %s157, %s173
      %p175 = scmp.eq.s32.totalorder %s38, 0
      %p176 = por %p174, %p175
      %s177 = ssub.s32 %s40, %s47
      %p178 = scmp.eq.s32.totalorder %s177, 0
      %s180 = sadd.s32 %s179, 1
      %s181 = scalar_select %p178, %s179, %s180
      %p184 = pneg %p178
      %p185 = scmp.eq.s32.totalorder %s32, 3
      %p186 = por %p184, %p185
      %p187 = scmp.ne.s32.totalorder %s179, %s182
      %p188 = scmp.eq.s32.totalorder %s32, 0
      %p189 = por %p187, %p188
      %p190 = scmp.ne.s32.totalorder %s179, %s182
      %p191 = scmp.eq.s32.totalorder %s37, 3
      %p192 = por %p190, %p191
      %p193 = scmp.ne.s32.totalorder %s182, %s183
      %p194 = scmp.eq.s32.totalorder %s37, 0
      %p195 = por %p193, %p194
      %p196 = scmp.ne.s32.totalorder %s182, %s183
      %p197 = scmp.eq.s32.totalorder %s38, 3
      %p198 = por %p196, %p197
      %p200 = scmp.ne.s32.totalorder %s183, %s199
      %p201 = scmp.eq.s32.totalorder %s38, 0
      %p202 = por %p200, %p201
      %s203 = ssub.s32 %s40, %s47
      %p204 = scmp.eq.s32.totalorder %s203, 0
      %s206 = sadd.s32 %s205, 1
      %s207 = scalar_select %p204, %s205, %s206
      %p210 = pneg %p204
      %p211 = scmp.eq.s32.totalorder %s32, 3
      %p212 = por %p210, %p211
      %p213 = scmp.ne.s32.totalorder %s205, %s208
      %p214 = scmp.eq.s32.totalorder %s32, 0
      %p215 = por %p213, %p214
      %p216 = scmp.ne.s32.totalorder %s205, %s208
      %p217 = scmp.eq.s32.totalorder %s37, 3
      %p218 = por %p216, %p217
      %p219 = scmp.ne.s32.totalorder %s208, %s209
      %p220 = scmp.eq.s32.totalorder %s37, 0
      %p221 = por %p219, %p220
      %p222 = scmp.ne.s32.totalorder %s208, %s209
      %p223 = scmp.eq.s32.totalorder %s38, 3
      %p224 = por %p222, %p223
      %p226 = scmp.ne.s32.totalorder %s209, %s225
      %p227 = scmp.eq.s32.totalorder %s38, 0
      %p228 = por %p226, %p227
      %s229 = ssub.s32 %s40, %s47
      %p230 = scmp.eq.s32.totalorder %s229, 0
      %s232 = sadd.s32 %s231, 1
      %s233 = scalar_select %p230, %s231, %s232
      %p236 = pneg %p230
      %p237 = scmp.eq.s32.totalorder %s32, 3
      %p238 = por %p236, %p237
      %p239 = scmp.ne.s32.totalorder %s231, %s234
      %p240 = scmp.eq.s32.totalorder %s32, 0
      %p241 = por %p239, %p240
      %p242 = scmp.ne.s32.totalorder %s231, %s234
      %p243 = scmp.eq.s32.totalorder %s37, 3
      %p244 = por %p242, %p243
      %p245 = scmp.ne.s32.totalorder %s234, %s235
      %p246 = scmp.eq.s32.totalorder %s37, 0
      %p247 = por %p245, %p246
      %p248 = scmp.ne.s32.totalorder %s234, %s235
      %p249 = scmp.eq.s32.totalorder %s38, 3
      %p250 = por %p248, %p249
      %p252 = scmp.ne.s32.totalorder %s235, %s251
      %p253 = scmp.eq.s32.totalorder %s38, 0
      %p254 = por %p252, %p253
      %s255 = ssub.s32 %s40, %s47
      %p256 = scmp.eq.s32.totalorder %s255, 0
      %s258 = sadd.s32 %s257, 1
      %s259 = scalar_select %p256, %s257, %s258
      %p262 = pneg %p256
      %p263 = scmp.eq.s32.totalorder %s32, 3
      %p264 = por %p262, %p263
      %p265 = scmp.ne.s32.totalorder %s257, %s260
      %p266 = scmp.eq.s32.totalorder %s32, 0
      %p267 = por %p265, %p266
      %p268 = scmp.ne.s32.totalorder %s257, %s260
      %p269 = scmp.eq.s32.totalorder %s37, 3
      %p270 = por %p268, %p269
      %p271 = scmp.ne.s32.totalorder %s260, %s261
      %p272 = scmp.eq.s32.totalorder %s37, 0
      %p273 = por %p271, %p272
      %p274 = scmp.ne.s32.totalorder %s260, %s261
      %p275 = scmp.eq.s32.totalorder %s38, 3
      %p276 = por %p274, %p275
      %p278 = scmp.ne.s32.totalorder %s261, %s277
      %p279 = scmp.eq.s32.totalorder %s38, 0
      %p280 = por %p278, %p279
      %s281 = ssub.s32 %s40, %s47
      %p282 = scmp.eq.s32.totalorder %s281, 0
      %s284 = sadd.s32 %s283, 1
      %s285 = scalar_select %p282, %s283, %s284
      %p288 = pneg %p282
      %p289 = scmp.eq.s32.totalorder %s32, 3
      %p290 = por %p288, %p289
      %p291 = scmp.ne.s32.totalorder %s283, %s286
      %p292 = scmp.eq.s32.totalorder %s32, 0
      %p293 = por %p291, %p292
      %p294 = scmp.ne.s32.totalorder %s283, %s286
      %p295 = scmp.eq.s32.totalorder %s37, 3
      %p296 = por %p294, %p295
      %p297 = scmp.ne.s32.totalorder %s286, %s287
      %p298 = scmp.eq.s32.totalorder %s37, 0
      %p299 = por %p297, %p298
      %p300 = scmp.ne.s32.totalorder %s286, %s287
      %p301 = scmp.eq.s32.totalorder %s38, 3
      %p302 = por %p300, %p301
      %p304 = scmp.ne.s32.totalorder %s287, %s303
      %p305 = scmp.eq.s32.totalorder %s38, 0
      %p306 = por %p304, %p305
      %s307 = ssub.s32 %s40, %s47
      %p308 = scmp.eq.s32.totalorder %s307, 0
      %s310 = sadd.s32 %s309, 1
      %s311 = scalar_select %p308, %s309, %s310
      %p314 = pneg %p308
      %p315 = scmp.eq.s32.totalorder %s32, 3
      %p316 = por %p314, %p315
      %p317 = scmp.ne.s32.totalorder %s309, %s312
      %p318 = scmp.eq.s32.totalorder %s32, 0
      %p319 = por %p317, %p318
      %p320 = scmp.ne.s32.totalorder %s309, %s312
      %p321 = scmp.eq.s32.totalorder %s37, 3
      %p322 = por %p320, %p321
      %p323 = scmp.ne.s32.totalorder %s312, %s313
      %p324 = scmp.eq.s32.totalorder %s37, 0
      %p325 = por %p323, %p324
      %p326 = scmp.ne.s32.totalorder %s312, %s313
      %p327 = scmp.eq.s32.totalorder %s38, 3
      %p328 = por %p326, %p327
      %p330 = scmp.ne.s32.totalorder %s313, %s329
      %p331 = scmp.eq.s32.totalorder %s38, 0
      %p332 = por %p330, %p331
      %s333 = ssub.s32 %s40, %s47
      %p334 = scmp.eq.s32.totalorder %s333, 0
      %s336 = sadd.s32 %s335, 1
      %s337 = scalar_select %p334, %s335, %s336
      %p340 = pneg %p334
      %p341 = scmp.eq.s32.totalorder %s32, 3
      %p342 = por %p340, %p341
      %p343 = scmp.ne.s32.totalorder %s335, %s338
      %p344 = scmp.eq.s32.totalorder %s32, 0
      %p345 = por %p343, %p344
      %p346 = scmp.ne.s32.totalorder %s335, %s338
      %p347 = scmp.eq.s32.totalorder %s37, 3
      %p348 = por %p346, %p347
      %p349 = scmp.ne.s32.totalorder %s338, %s339
      %p350 = scmp.eq.s32.totalorder %s37, 0
      %p351 = por %p349, %p350
      %p352 = scmp.ne.s32.totalorder %s338, %s339
      %p353 = scmp.eq.s32.totalorder %s38, 3
      %p354 = por %p352, %p353
      %p356 = scmp.ne.s32.totalorder %s339, %s355
      %p357 = scmp.eq.s32.totalorder %s38, 0
      %p358 = por %p356, %p357
      %s359 = ssub.s32 %s40, %s47
      %p360 = scmp.eq.s32.totalorder %s359, 0
      %s362 = sadd.s32 %s361, 1
      %s363 = scalar_select %p360, %s361, %s362
      %p366 = pneg %p360
      %p367 = scmp.eq.s32.totalorder %s32, 3
      %p368 = por %p366, %p367
      %p369 = scmp.ne.s32.totalorder %s361, %s364
      %p370 = scmp.eq.s32.totalorder %s32, 0
      %p371 = por %p369, %p370
      %p372 = scmp.ne.s32.totalorder %s361, %s364
      %p373 = scmp.eq.s32.totalorder %s37, 3
      %p374 = por %p372, %p373
      %p375 = scmp.ne.s32.totalorder %s364, %s365
      %p376 = scmp.eq.s32.totalorder %s37, 0
      %p377 = por %p375, %p376
      %p378 = scmp.ne.s32.totalorder %s364, %s365
      %p379 = scmp.eq.s32.totalorder %s38, 3
      %p380 = por %p378, %p379
      %p382 = scmp.ne.s32.totalorder %s365, %s381
      %p383 = scmp.eq.s32.totalorder %s38, 0
      %p384 = por %p382, %p383
      %s385 = ssub.s32 %s40, %s47
      %p386 = scmp.eq.s32.totalorder %s385, 0
      %s388 = sadd.s32 %s387, 1
      %s389 = scalar_select %p386, %s387, %s388
      %p392 = pneg %p386
      %p393 = scmp.eq.s32.totalorder %s32, 3
      %p394 = por %p392, %p393
      %p395 = scmp.ne.s32.totalorder %s387, %s390
      %p396 = scmp.eq.s32.totalorder %s32, 0
      %p397 = por %p395, %p396
      %p398 = scmp.ne.s32.totalorder %s387, %s390
      %p399 = scmp.eq.s32.totalorder %s37, 3
      %p400 = por %p398, %p399
      %p401 = scmp.ne.s32.totalorder %s390, %s391
      %p402 = scmp.eq.s32.totalorder %s37, 0
      %p403 = por %p401, %p402
      %p404 = scmp.ne.s32.totalorder %s390, %s391
      %p405 = scmp.eq.s32.totalorder %s38, 3
      %p406 = por %p404, %p405
      %p408 = scmp.ne.s32.totalorder %s391, %s407
      %p409 = scmp.eq.s32.totalorder %s38, 0
      %p410 = por %p408, %p409
      %s411 = ssub.s32 %s39, %s51
      %p412 = scmp.eq.s32.totalorder %s411, 0
      %s414 = sadd.s32 %s413, 1
      %s415 = scalar_select %p412, %s413, %s414
      %p418 = pneg %p412
      %p419 = scmp.eq.s32.totalorder %s32, 3
      %p420 = por %p418, %p419
      %p421 = scmp.ne.s32.totalorder %s413, %s416
      %p422 = scmp.eq.s32.totalorder %s32, 0
      %p423 = por %p421, %p422
      %p424 = scmp.ne.s32.totalorder %s413, %s416
      %p425 = scmp.eq.s32.totalorder %s37, 3
      %p426 = por %p424, %p425
      %p427 = scmp.ne.s32.totalorder %s416, %s417
      %p428 = scmp.eq.s32.totalorder %s37, 0
      %p429 = por %p427, %p428
      %p430 = scmp.ne.s32.totalorder %s416, %s417
      %p431 = scmp.eq.s32.totalorder %s38, 3
      %p432 = por %p430, %p431
      %p434 = scmp.ne.s32.totalorder %s417, %s433
      %p435 = scmp.eq.s32.totalorder %s38, 0
      %p436 = por %p434, %p435
      %p437 = scmp.le.s32.totalorder 1, %s32
      %p438 = scmp.lt.s32.totalorder %s32, 5
      %p439 = pnand %p437, %p438
      %p440 = pneg %p439
      // Predicated region
      $region9: #{tpu_custom_call.1} parent=5 // pred_check
        _
      $region10: #{tpu_custom_call.1} parent=5 // pred_check_branch
        %442 = sbr.rel (%p439) target = $region12
      $region11: #{tpu_custom_call.1} parent=5 // pred_region
        %s443 = ssub.s32 %s32, 1
        // Predicated region
        $region13: #{tpu_custom_call.1} parent=11 // pred_check
          %p444 = pneg %p91
        $region14: #{tpu_custom_call.1} parent=11 // pred_check_branch
          %446 = sbr.rel (%p444) target = $region16
        $region15: #{tpu_custom_call.1} parent=11 // pred_region
          %s448 = ssub.s32 256, 256
          %449 = vsyncadd [#allocation10], %s448
          %s450 = sshll.u32 [#allocation9], 4
          %s451 = int_to_ptr.vmem [resolvable:$true] %s450
          %456 = dma.hbm_to_vmem [thread:$0]  %s2, 256, %s451, [#allocation10], 128, 128, 8
        $region16: #{tpu_custom_call.1} parent=11 // pred_fallthru
          _
      $region12: #{tpu_custom_call.1} parent=5 // pred_fallthru
        _
      %p457 = scmp.lt.s32.totalorder %s32, 4
      // Predicated region
      $region17: #{tpu_custom_call.1} parent=5 // pred_check
        %p458 = pneg %p457
      $region18: #{tpu_custom_call.1} parent=5 // pred_check_branch
        %460 = sbr.rel (%p458) target = $region20
      $region19: #{tpu_custom_call.1} parent=5 // pred_region
        // Predicated region
        $region21: #{tpu_custom_call.1} parent=19 // pred_check
          %p461 = pneg %p64
        $region22: #{tpu_custom_call.1} parent=19 // pred_check_branch
          %463 = sbr.rel (%p461) target = $region24
        $region23: #{tpu_custom_call.1} parent=19 // pred_region
          %s464 = sand.u32 %s32, 1
          %s465 = scalar_lea.sflag [#allocation7], %s464
          %s466 = sand.u32 %s54, 1
          %s467 = smul.addr %s466, 16
          %s468 = scalar_lea.vmem [#allocation6], %s467
          %s470 = ssub.s32 256, 256
          %471 = vsyncadd %s465, %s470
          %s472 = smul.addr %s39, 2
          %s473 = smul.addr %s472, 128
          %s474 = scalar_lea.hbm %s1, %s473
          %s475 = sshll.u32 %s468, 4
          %s476 = int_to_ptr.vmem [resolvable:$true] %s475
          %481 = dma.hbm_to_vmem [thread:$0]  %s474, 256, %s476, %s465, 128, 128, 8
        $region24: #{tpu_custom_call.1} parent=19 // pred_fallthru
          _
        // Predicated region
        $region25: #{tpu_custom_call.1} parent=19 // pred_check
          %p482 = pneg %p111
        $region26: #{tpu_custom_call.1} parent=19 // pred_check_branch
          %484 = sbr.rel (%p482) target = $region28
        $region27: #{tpu_custom_call.1} parent=19 // pred_region
          %s485 = sand.u32 %s32, 1
          %s486 = scalar_lea.sflag [#allocation7], %s485
          %s487 = sand.u32 %s101, 1
          %s488 = smul.addr %s487, 192
          %s489 = scalar_lea.vmem [#allocation11], %s488
          %s491 = ssub.s32 3072, 3072
          %492 = vsyncadd %s486, %s491
          %s493 = smul.addr %s40, 48
          %s494 = smul.addr %s493, 64
          %s495 = scalar_lea.hbm %s3, %s494
          %s496 = sshll.u32 %s489, 4
          %s497 = int_to_ptr.vmem [resolvable:$true] %s496
          %502 = dma.hbm_to_vmem [thread:$0]  %s495, 3072, %s497, %s486, 192, 192, 12
        $region28: #{tpu_custom_call.1} parent=19 // pred_fallthru
          _
        // Predicated region
        $region29: #{tpu_custom_call.1} parent=19 // pred_check
          %p503 = pneg %p137
        $region30: #{tpu_custom_call.1} parent=19 // pred_check_branch
          %505 = sbr.rel (%p503) target = $region32
        $region31: #{tpu_custom_call.1} parent=19 // pred_region
          %p506 = scmp.lt.s32.totalorder %s40, 1
          %s507 = scalar_select %p506, %s40, 1
          %s508 = smul.addr %s507, 3
          %s509 = scalar_lea.vmem %s4, %s508
        $region32: #{tpu_custom_call.1} parent=19 // pred_fallthru
          _
        // Predicated region
        $region33: #{tpu_custom_call.1} parent=19 // pred_check
          %p510 = pneg %p163
        $region34: #{tpu_custom_call.1} parent=19 // pred_check_branch
          %512 = sbr.rel (%p510) target = $region36
        $region35: #{tpu_custom_call.1} parent=19 // pred_region
          %s513 = sand.u32 %s32, 1
          %s514 = scalar_lea.sflag [#allocation7], %s513
          %s515 = sand.u32 %s153, 1
          %s516 = smul.addr %s515, 64
          %s517 = scalar_lea.vmem [#allocation12], %s516
          %s519 = ssub.s32 1024, 1024
          %520 = vsyncadd %s514, %s519
          %s521 = smul.addr %s40, 16
          %s522 = smul.addr %s521, 64
          %s523 = scalar_lea.hbm %s5, %s522
          %s524 = sshll.u32 %s517, 4
          %s525 = int_to_ptr.vmem [resolvable:$true] %s524
          %530 = dma.hbm_to_vmem [thread:$0]  %s523, 1024, %s525, %s514, 64, 64, 4
        $region36: #{tpu_custom_call.1} parent=19 // pred_fallthru
          _
        // Predicated region
        $region37: #{tpu_custom_call.1} parent=19 // pred_check
          %p531 = pneg %p189
        $region38: #{tpu_custom_call.1} parent=19 // pred_check_branch
          %533 = sbr.rel (%p531) target = $region40
        $region39: #{tpu_custom_call.1} parent=19 // pred_region
          %p534 = scmp.lt.s32.totalorder %s40, 1
          %s535 = scalar_select %p534, %s40, 1
          %s536 = scalar_lea.vmem %s6, %s535
        $region40: #{tpu_custom_call.1} parent=19 // pred_fallthru
          _
        // Predicated region
        $region41: #{tpu_custom_call.1} parent=19 // pred_check
          %p537 = pneg %p215
        $region42: #{tpu_custom_call.1} parent=19 // pred_check_branch
          %539 = sbr.rel (%p537) target = $region44
        $region43: #{tpu_custom_call.1} parent=19 // pred_region
          %p540 = scmp.lt.s32.totalorder %s40, 1
          %s541 = scalar_select %p540, %s40, 1
          %s542 = scalar_lea.vmem %s7, %s541
        $region44: #{tpu_custom_call.1} parent=19 // pred_fallthru
          _
        // Predicated region
        $region45: #{tpu_custom_call.1} parent=19 // pred_check
          %p543 = pneg %p241
        $region46: #{tpu_custom_call.1} parent=19 // pred_check_branch
          %545 = sbr.rel (%p543) target = $region48
        $region47: #{tpu_custom_call.1} parent=19 // pred_region
          %p546 = scmp.lt.s32.totalorder %s40, 1
          %s547 = scalar_select %p546, %s40, 1
          %s548 = scalar_lea.vmem %s8, %s547
        $region48: #{tpu_custom_call.1} parent=19 // pred_fallthru
          _
        // Predicated region
        $region49: #{tpu_custom_call.1} parent=19 // pred_check
          %p549 = pneg %p267
        $region50: #{tpu_custom_call.1} parent=19 // pred_check_branch
          %551 = sbr.rel (%p549) target = $region52
        $region51: #{tpu_custom_call.1} parent=19 // pred_region
          %s552 = sand.u32 %s32, 1
          %s553 = scalar_lea.sflag [#allocation7], %s552
          %s554 = sand.u32 %s257, 1
          %s555 = smul.addr %s554, 576
          %s556 = scalar_lea.vmem [#allocation13], %s555
          %s558 = ssub.s32 9216, 9216
          %559 = vsyncadd %s553, %s558
          %s560 = smul.addr %s40, 144
          %s561 = smul.addr %s560, 64
          %s562 = scalar_lea.hbm %s9, %s561
          %s563 = sshll.u32 %s556, 4
          %s564 = int_to_ptr.vmem [resolvable:$true] %s563
          %569 = dma.hbm_to_vmem [thread:$0]  %s562, 9216, %s564, %s553, 64, 64, 4
        $region52: #{tpu_custom_call.1} parent=19 // pred_fallthru
          _
        // Predicated region
        $region53: #{tpu_custom_call.1} parent=19 // pred_check
          %p570 = pneg %p293
        $region54: #{tpu_custom_call.1} parent=19 // pred_check_branch
          %572 = sbr.rel (%p570) target = $region56
        $region55: #{tpu_custom_call.1} parent=19 // pred_region
          %p573 = scmp.lt.s32.totalorder %s40, 1
          %s574 = scalar_select %p573, %s40, 1
          %s575 = scalar_lea.vmem %s10, %s574
        $region56: #{tpu_custom_call.1} parent=19 // pred_fallthru
          _
        // Predicated region
        $region57: #{tpu_custom_call.1} parent=19 // pred_check
          %p576 = pneg %p319
        $region58: #{tpu_custom_call.1} parent=19 // pred_check_branch
          %578 = sbr.rel (%p576) target = $region60
        $region59: #{tpu_custom_call.1} parent=19 // pred_region
          %s579 = sand.u32 %s32, 1
          %s580 = scalar_lea.sflag [#allocation7], %s579
          %s581 = sand.u32 %s309, 1
          %s582 = smul.addr %s581, 64
          %s583 = scalar_lea.vmem [#allocation14], %s582
          %s585 = ssub.s32 1024, 1024
          %586 = vsyncadd %s580, %s585
          %s587 = smul.addr %s40, 16
          %s588 = smul.addr %s587, 64
          %s589 = scalar_lea.hbm %s11, %s588
          %s590 = sshll.u32 %s583, 4
          %s591 = int_to_ptr.vmem [resolvable:$true] %s590
          %596 = dma.hbm_to_vmem [thread:$0]  %s589, 1024, %s591, %s580, 64, 64, 4
        $region60: #{tpu_custom_call.1} parent=19 // pred_fallthru
          _
        // Predicated region
        $region61: #{tpu_custom_call.1} parent=19 // pred_check
          %p597 = pneg %p345
        $region62: #{tpu_custom_call.1} parent=19 // pred_check_branch
          %599 = sbr.rel (%p597) target = $region64
        $region63: #{tpu_custom_call.1} parent=19 // pred_region
          %p600 = scmp.lt.s32.totalorder %s40, 1
          %s601 = scalar_select %p600, %s40, 1
          %s602 = scalar_lea.vmem %s12, %s601
        $region64: #{tpu_custom_call.1} parent=19 // pred_fallthru
          _
        // Predicated region
        $region65: #{tpu_custom_call.1} parent=19 // pred_check
          %p603 = pneg %p371
        $region66: #{tpu_custom_call.1} parent=19 // pred_check_branch
          %605 = sbr.rel (%p603) target = $region68
        $region67: #{tpu_custom_call.1} parent=19 // pred_region
          %p606 = scmp.lt.s32.totalorder %s40, 1
          %s607 = scalar_select %p606, %s40, 1
          %s608 = scalar_lea.vmem %s13, %s607
        $region68: #{tpu_custom_call.1} parent=19 // pred_fallthru
          _
        // Predicated region
        $region69: #{tpu_custom_call.1} parent=19 // pred_check
          %p609 = pneg %p397
        $region70: #{tpu_custom_call.1} parent=19 // pred_check_branch
          %611 = sbr.rel (%p609) target = $region72
        $region71: #{tpu_custom_call.1} parent=19 // pred_region
          %p612 = scmp.lt.s32.totalorder %s40, 1
          %s613 = scalar_select %p612, %s40, 1
          %s614 = scalar_lea.vmem %s14, %s613
        $region72: #{tpu_custom_call.1} parent=19 // pred_fallthru
          _
      $region20: #{tpu_custom_call.1} parent=5 // pred_fallthru
        _
      %p615 = scmp.le.s32.totalorder 1, %s32
      %p616 = scmp.lt.s32.totalorder %s32, 5
      %p617 = pnand %p615, %p616
      %p618 = pneg %p617
      // Predicated region
      $region73: #{tpu_custom_call.1} parent=5 // pred_check
        _
      $region74: #{tpu_custom_call.1} parent=5 // pred_check_branch
        %620 = sbr.rel (%p617) target = $region76
      $region75: #{tpu_custom_call.1} parent=5 // pred_region
        %s621 = ssub.s32 %s32, 1
        %s622 = sand.u32 %s37, 1
        %s623 = scalar_lea.sflag [#allocation7], %s622
        %s624 = sand.u32 %s57, 1
        %s625 = smul.addr %s624, 16
        %s626 = scalar_lea.vmem [#allocation6], %s625
        // Predicated region
        $region77: #{tpu_custom_call.1} parent=75 // pred_check
          %p627 = pneg %p70
        $region78: #{tpu_custom_call.1} parent=75 // pred_check_branch
          %629 = sbr.rel (%p627) target = $region80
        $region79: #{tpu_custom_call.1} parent=75 // pred_region
          %630 = dma.done %s623, 256
        $region80: #{tpu_custom_call.1} parent=75 // pred_fallthru
          _
        // Predicated region
        $region81: #{tpu_custom_call.1} parent=75 // pred_check
          %p631 = pneg %p91
        $region82: #{tpu_custom_call.1} parent=75 // pred_check_branch
          %633 = sbr.rel (%p631) target = $region84
        $region83: #{tpu_custom_call.1} parent=75 // pred_region
          %634 = dma.done [#allocation10], 256
        $region84: #{tpu_custom_call.1} parent=75 // pred_fallthru
          _
        %s635 = sand.u32 %s37, 1
        %s636 = scalar_lea.sflag [#allocation7], %s635
        %s637 = sand.u32 %s104, 1
        %s638 = smul.addr %s637, 192
        %s639 = scalar_lea.vmem [#allocation11], %s638
        // Predicated region
        $region85: #{tpu_custom_call.1} parent=75 // pred_check
          %p640 = pneg %p117
        $region86: #{tpu_custom_call.1} parent=75 // pred_check_branch
          %642 = sbr.rel (%p640) target = $region88
        $region87: #{tpu_custom_call.1} parent=75 // pred_region
          %643 = dma.done %s636, 3072
        $region88: #{tpu_custom_call.1} parent=75 // pred_fallthru
          _
        %s644 = sand.u32 %s37, 1
        %s645 = scalar_lea.sflag [#allocation7], %s644
        %s646 = sand.u32 %s156, 1
        %s647 = smul.addr %s646, 64
        %s648 = scalar_lea.vmem [#allocation12], %s647
        // Predicated region
        $region89: #{tpu_custom_call.1} parent=75 // pred_check
          %p649 = pneg %p169
        $region90: #{tpu_custom_call.1} parent=75 // pred_check_branch
          %651 = sbr.rel (%p649) target = $region92
        $region91: #{tpu_custom_call.1} parent=75 // pred_region
          %652 = dma.done %s645, 1024
        $region92: #{tpu_custom_call.1} parent=75 // pred_fallthru
          _
        %s653 = sand.u32 %s37, 1
        %s654 = scalar_lea.sflag [#allocation7], %s653
        %s655 = sand.u32 %s260, 1
        %s656 = smul.addr %s655, 576
        %s657 = scalar_lea.vmem [#allocation13], %s656
        // Predicated region
        $region93: #{tpu_custom_call.1} parent=75 // pred_check
          %p658 = pneg %p273
        $region94: #{tpu_custom_call.1} parent=75 // pred_check_branch
          %660 = sbr.rel (%p658) target = $region96
        $region95: #{tpu_custom_call.1} parent=75 // pred_region
          %661 = dma.done %s654, 9216
        $region96: #{tpu_custom_call.1} parent=75 // pred_fallthru
          _
        %s662 = sand.u32 %s37, 1
        %s663 = scalar_lea.sflag [#allocation7], %s662
        %s664 = sand.u32 %s312, 1
        %s665 = smul.addr %s664, 64
        %s666 = scalar_lea.vmem [#allocation14], %s665
        // Predicated region
        $region97: #{tpu_custom_call.1} parent=75 // pred_check
          %p667 = pneg %p325
        $region98: #{tpu_custom_call.1} parent=75 // pred_check_branch
          %669 = sbr.rel (%p667) target = $region100
        $region99: #{tpu_custom_call.1} parent=75 // pred_region
          %670 = dma.done %s663, 1024
        $region100: #{tpu_custom_call.1} parent=75 // pred_fallthru
          _
        %s671 = sand.u32 %s37, 1
        %s672 = scalar_lea.sflag [#allocation7], %s671
        %s673 = sand.u32 %s57, 1
        %s674 = smul.addr %s673, 16
        %s675 = scalar_lea.vmem [#allocation6], %s674
        %p676 = pneg %p70
        %p677 = pneg %p67
        %p678 = pneg %p91
        %p679 = pneg %p88
        %s680 = sand.u32 %s37, 1
        %s681 = scalar_lea.sflag [#allocation7], %s680
        %s682 = sand.u32 %s104, 1
        %s683 = smul.addr %s682, 192
        %s684 = scalar_lea.vmem [#allocation11], %s683
        %p685 = pneg %p117
        %p686 = pneg %p114
        %p687 = scmp.lt.s32.totalorder %s42, 1
        %s688 = scalar_select %p687, %s42, 1
        %s689 = smul.addr %s688, 3
        %s690 = scalar_lea.vmem %s4, %s689
        %p691 = pneg %p143
        %p692 = pneg %p140
        %s693 = sand.u32 %s37, 1
        %s694 = scalar_lea.sflag [#allocation7], %s693
        %s695 = sand.u32 %s156, 1
        %s696 = smul.addr %s695, 64
        %s697 = scalar_lea.vmem [#allocation12], %s696
        %p698 = pneg %p169
        %p699 = pneg %p166
        %p700 = scmp.lt.s32.totalorder %s42, 1
        %s701 = scalar_select %p700, %s42, 1
        %s702 = scalar_lea.vmem %s6, %s701
        %p703 = pneg %p195
        %p704 = pneg %p192
        %p705 = scmp.lt.s32.totalorder %s42, 1
        %s706 = scalar_select %p705, %s42, 1
        %s707 = scalar_lea.vmem %s7, %s706
        %p708 = pneg %p221
        %p709 = pneg %p218
        %p710 = scmp.lt.s32.totalorder %s42, 1
        %s711 = scalar_select %p710, %s42, 1
        %s712 = scalar_lea.vmem %s8, %s711
        %p713 = pneg %p247
        %p714 = pneg %p244
        %s715 = sand.u32 %s37, 1
        %s716 = scalar_lea.sflag [#allocation7], %s715
        %s717 = sand.u32 %s260, 1
        %s718 = smul.addr %s717, 576
        %s719 = scalar_lea.vmem [#allocation13], %s718
        %p720 = pneg %p273
        %p721 = pneg %p270
        %p722 = scmp.lt.s32.totalorder %s42, 1
        %s723 = scalar_select %p722, %s42, 1
        %s724 = scalar_lea.vmem %s10, %s723
        %p725 = pneg %p299
        %p726 = pneg %p296
        %s727 = sand.u32 %s37, 1
        %s728 = scalar_lea.sflag [#allocation7], %s727
        %s729 = sand.u32 %s312, 1
        %s730 = smul.addr %s729, 64
        %s731 = scalar_lea.vmem [#allocation14], %s730
        %p732 = pneg %p325
        %p733 = pneg %p322
        %p734 = scmp.lt.s32.totalorder %s42, 1
        %s735 = scalar_select %p734, %s42, 1
        %s736 = scalar_lea.vmem %s12, %s735
        %p737 = pneg %p351
        %p738 = pneg %p348
        %p739 = scmp.lt.s32.totalorder %s42, 1
        %s740 = scalar_select %p739, %s42, 1
        %s741 = scalar_lea.vmem %s13, %s740
        %p742 = pneg %p377
        %p743 = pneg %p374
        %p744 = scmp.lt.s32.totalorder %s42, 1
        %s745 = scalar_select %p744, %s42, 1
        %s746 = scalar_lea.vmem %s14, %s745
        %p747 = pneg %p403
        %p748 = pneg %p400
        %p749 = pneg %p429
        %p750 = pneg %p426
        %s751 = sand.u32 %s416, 1
        %s752 = scalar_lea.sflag [#allocation8], %s751
        %s753 = sand.u32 %s416, 1
        %s754 = smul.addr %s753, 16
        %s755 = scalar_lea.vmem [#allocation15], %s754
        %p756 = scmp.lt.s32.totalorder %s42, 1
        %s757 = scalar_select %p756, %s42, 1
        %s758 = smul.addr %s757, 3
        %s759 = scalar_lea.vmem %s4, %s758
        %p760 = scmp.lt.s32.totalorder %s42, 1
        %s761 = scalar_select %p760, %s42, 1
        %s762 = scalar_lea.vmem %s6, %s761
        %p763 = scmp.lt.s32.totalorder %s42, 1
        %s764 = scalar_select %p763, %s42, 1
        %s765 = scalar_lea.vmem %s7, %s764
        %p766 = scmp.lt.s32.totalorder %s42, 1
        %s767 = scalar_select %p766, %s42, 1
        %s768 = scalar_lea.vmem %s8, %s767
        %p769 = scmp.lt.s32.totalorder %s42, 1
        %s770 = scalar_select %p769, %s42, 1
        %s771 = scalar_lea.vmem %s10, %s770
        %p772 = scmp.lt.s32.totalorder %s42, 1
        %s773 = scalar_select %p772, %s42, 1
        %s774 = scalar_lea.vmem %s12, %s773
        %p775 = scmp.lt.s32.totalorder %s42, 1
        %s776 = scalar_select %p775, %s42, 1
        %s777 = scalar_lea.vmem %s13, %s776
        %p778 = scmp.lt.s32.totalorder %s42, 1
        %s779 = scalar_select %p778, %s42, 1
        %s780 = scalar_lea.vmem %s14, %s779
        %s782 = sld [smem:[#allocation5 + %s41]]
        %v783 = vlaneseq
        %v784 = vand.u32 %v783, 127
        %vm785 = vcmp.lt.s32.totalorder %v784, 32
        %v786 = vsel %vm785, 1, 0
        %v787 = vcvt.s32.f32 %v786
        %v788 = vstv %s782
        %vm789 = vcmp.lt.s32.totalorder %v784, %v788
        %v790 = vsel %vm789, 0.0, -1e+09
        %v791 = vlaneseq
        %v792 = vshrl.u32 %v791, 7
        %v793 = vadd.s32 %v792, 8
        %vm794 = vcmp.lt.s32.totalorder %v792, %v788
        %vm795 = vcmp.lt.s32.totalorder %v793, %v788
        %v796 = vsel %vm794, 1, 0
        %v797 = vsel %vm795, 1, 0
        %v798 = vcvt.s32.f32 %v796
        %v799 = vcvt.s32.f32 %v797
        %p800 = scmp.eq.s32.totalorder %s42, 0
        // Predicated region
        $region101: #{tpu_custom_call.1} parent=75 // pred_check
          %p801 = pneg %p800
        $region102: #{tpu_custom_call.1} parent=75 // pred_check_branch
          %803 = sbr.rel (%p801) target = $region104
        $region103: #{tpu_custom_call.1} parent=75 // pred_region
          %v804 = vld [vmem:[%s626] sm:$0xff]
          %v805 = vld [vmem:[%s626 + $0x8] sm:$0xff]
          %v806 = vld [vmem:[#allocation9] sm:$0xff]
          %v807 = vld [vmem:[#allocation9 + $0x8] sm:$0xff]
          %v808 = vadd.f32 %v804, %v806
          %v809 = vadd.f32 %v805, %v807
          %810 = vst [vmem:[#allocation2] sm:$0xff] %v808
          %811 = vst [vmem:[#allocation2 + $0x8] sm:$0xff] %v809
        $region104: #{tpu_custom_call.1} parent=75 // pred_fallthru
          _
        %v812 = vld [vmem:[%s639] sm:$0xff]
        %v813 = vld [vmem:[%s639 + $0x8] sm:$0xf]
        %v814 = vld [vmem:[%s639 + $0xc] sm:$0xff]
        %v815 = vld [vmem:[%s639 + $0x14] sm:$0xf]
        %v816 = vld [vmem:[%s639 + $0x18] sm:$0xff]
        %v817 = vld [vmem:[%s639 + $0x20] sm:$0xf]
        %v818 = vld [vmem:[%s639 + $0x24] sm:$0xff]
        %v819 = vld [vmem:[%s639 + $0x2c] sm:$0xf]
        %v820 = vld [vmem:[%s639 + $0x30] sm:$0xff]
        %v821 = vld [vmem:[%s639 + $0x38] sm:$0xf]
        %v822 = vld [vmem:[%s639 + $0x3c] sm:$0xff]
        %v823 = vld [vmem:[%s639 + $0x44] sm:$0xf]
        %v824 = vld [vmem:[%s639 + $0x48] sm:$0xff]
        %v825 = vld [vmem:[%s639 + $0x50] sm:$0xf]
        %v826 = vld [vmem:[%s639 + $0x54] sm:$0xff]
        %v827 = vld [vmem:[%s639 + $0x5c] sm:$0xf]
        %v828 = vld [vmem:[%s639 + $0x60] sm:$0xff]
        %v829 = vld [vmem:[%s639 + $0x68] sm:$0xf]
        %v830 = vld [vmem:[%s639 + $0x6c] sm:$0xff]
        %v831 = vld [vmem:[%s639 + $0x74] sm:$0xf]
        %v832 = vld [vmem:[%s639 + $0x78] sm:$0xff]
        %v833 = vld [vmem:[%s639 + $0x80] sm:$0xf]
        %v834 = vld [vmem:[%s639 + $0x84] sm:$0xff]
        %v835 = vld [vmem:[%s639 + $0x8c] sm:$0xf]
        %v836 = vld [vmem:[%s639 + $0x90] sm:$0xff]
        %v837 = vld [vmem:[%s639 + $0x98] sm:$0xf]
        %v838 = vld [vmem:[%s639 + $0x9c] sm:$0xff]
        %v839 = vld [vmem:[%s639 + $0xa4] sm:$0xf]
        %v840 = vld [vmem:[%s639 + $0xa8] sm:$0xff]
        %v841 = vld [vmem:[%s639 + $0xb0] sm:$0xf]
        %v842 = vld [vmem:[%s639 + $0xb4] sm:$0xff]
        %v843 = vld [vmem:[%s639 + $0xbc] sm:$0xf]
        %v844 = vld [vmem:[%s759] sm:$0x7]
        %v845 = vld [vmem:[%s648] sm:$0xf]
        %v846 = vld [vmem:[%s648 + $0x4] sm:$0xf]
        %v847 = vld [vmem:[%s648 + $0x8] sm:$0xf]
        %v848 = vld [vmem:[%s648 + $0xc] sm:$0xf]
        %v849 = vld [vmem:[%s762] sm:$0x1]
        %v850 = vld [vmem:[%s765] sm:$0x1]
        %v851 = vld [vmem:[%s768] sm:$0x1]
        %v852 = vld [vmem:[%s771] sm:$0x1]
        %v853 = vld [vmem:[%s774] sm:$0x1]
        %v854 = vld [vmem:[%s777] sm:$0x1]
        %v855 = vld [vmem:[%s780] sm:$0x1]
        %v856 = vld [vmem:[#allocation2] sm:$0xff]
        %v857 = vld [vmem:[#allocation2 + $0x8] sm:$0xff]
        %v858 = vpack.c.bf16 %v857, %v856
        %v860 = vlaneseq
        %v861 = vshrl.u32 %v860, 7
        %v862 = vsub.s32 0, %v861
        %v863 = vrot.slane %v844, %v862
        %v864 = vlaneseq
        %v865 = vshrl.u32 %v864, 7
        %v866 = vsub.s32 1, %v865
        %v867 = vrot.slane %v844, %v866
        %v868 = vlaneseq
        %v869 = vshrl.u32 %v868, 7
        %v870 = vsub.s32 2, %v869
        %v871 = vrot.slane %v844, %v870
        %v907 = vunpack.c.l.b16 %v812
        %v908 = vunpack.c.h.b16 %v812
        %v909 = vunpack.c.l.b16 %v813
        %v910 = vunpack.c.l.b16 %v814
        %v911 = vunpack.c.h.b16 %v814
        %v912 = vunpack.c.l.b16 %v815
        %v913 = vunpack.c.l.b16 %v816
        %v914 = vunpack.c.h.b16 %v816
        %v915 = vunpack.c.l.b16 %v817
        %v916 = vunpack.c.l.b16 %v818
        %v917 = vunpack.c.h.b16 %v818
        %v918 = vunpack.c.l.b16 %v819
        %v919 = vunpack.c.l.b16 %v820
        %v920 = vunpack.c.h.b16 %v820
        %v921 = vunpack.c.l.b16 %v821
        %v922 = vunpack.c.l.b16 %v822
        %v923 = vunpack.c.h.b16 %v822
        %v924 = vunpack.c.l.b16 %v823
        %v925 = vunpack.c.l.b16 %v824
        %v926 = vunpack.c.h.b16 %v824
        %v927 = vunpack.c.l.b16 %v825
        %v928 = vunpack.c.l.b16 %v826
        %v929 = vunpack.c.h.b16 %v826
        %v930 = vunpack.c.l.b16 %v827
        %v931 = vunpack.c.l.b16 %v828
        %v932 = vunpack.c.h.b16 %v828
        %v933 = vunpack.c.l.b16 %v829
        %v934 = vunpack.c.l.b16 %v830
        %v935 = vunpack.c.h.b16 %v830
        %v936 = vunpack.c.l.b16 %v831
        %v937 = vunpack.c.l.b16 %v832
        %v938 = vunpack.c.h.b16 %v832
        %v939 = vunpack.c.l.b16 %v833
        %v940 = vunpack.c.l.b16 %v834
        %v941 = vunpack.c.h.b16 %v834
        %v942 = vunpack.c.l.b16 %v835
        %v943 = vunpack.c.l.b16 %v836
        %v944 = vunpack.c.h.b16 %v836
        %v945 = vunpack.c.l.b16 %v837
        %v946 = vunpack.c.l.b16 %v838
        %v947 = vunpack.c.h.b16 %v838
        %v948 = vunpack.c.l.b16 %v839
        %v949 = vunpack.c.l.b16 %v840
        %v950 = vunpack.c.h.b16 %v840
        %v951 = vunpack.c.l.b16 %v841
        %v952 = vunpack.c.l.b16 %v842
        %v953 = vunpack.c.h.b16 %v842
        %v954 = vunpack.c.l.b16 %v843
        %v955 = vpack.c.b16 %v910, %v907
        %v956 = vpack.c.b16 %v911, %v908
        %v957 = vpack.c.b16 %v912, %v909
        %v958 = vpack.c.b16 %v916, %v913
        %v959 = vpack.c.b16 %v917, %v914
        %v960 = vpack.c.b16 %v918, %v915
        %v961 = vpack.c.b16 %v922, %v919
        %v962 = vpack.c.b16 %v923, %v920
        %v963 = vpack.c.b16 %v924, %v921
        %v964 = vpack.c.b16 %v928, %v925
        %v965 = vpack.c.b16 %v929, %v926
        %v966 = vpack.c.b16 %v930, %v927
        %v967 = vpack.c.b16 %v934, %v931
        %v968 = vpack.c.b16 %v935, %v932
        %v969 = vpack.c.b16 %v936, %v933
        %v970 = vpack.c.b16 %v940, %v937
        %v971 = vpack.c.b16 %v941, %v938
        %v972 = vpack.c.b16 %v942, %v939
        %v973 = vpack.c.b16 %v946, %v943
        %v974 = vpack.c.b16 %v947, %v944
        %v975 = vpack.c.b16 %v948, %v945
        %v976 = vpack.c.b16 %v952, %v949
        %v977 = vpack.c.b16 %v953, %v950
        %v978 = vpack.c.b16 %v954, %v951
        %1003 = vmatprep.subr.bf16.mxu0 %v977
        %1004 = vmatpush1.bf16.msra.mxu0 %v976
        %1005 = vmatprep.subr.bf16.mxu0 %v974
        %1006 = vmatpush1.bf16.msra.mxu0 %v973
        %1007 = vmatprep.subr.bf16.mxu0 %v971
        %1008 = vmatpush1.bf16.msra.mxu0 %v970
        %1009 = vmatprep.subr.bf16.mxu0 %v968
        %1010 = vmatpush1.bf16.msra.mxu0 %v967
        %1011 = vmatprep.subr.bf16.mxu0 %v965
        %1012 = vmatpush1.bf16.msra.mxu0 %v964
        %1013 = vmatprep.subr.bf16.mxu0 %v962
        %1014 = vmatpush1.bf16.msra.mxu0 %v961
        %1015 = vmatprep.subr.bf16.mxu0 %v959
        %1016 = vmatpush1.bf16.msra.mxu0 %v958
        %1017 = vmatprep.subr.bf16.mxu0 %v956
        %1018 = vmatpush1.bf16.msra.mxu0 %v955
        %1019 = vmatprep.subr.bf16.mxu0 0
        %1020 = vmatpush2.bf16.msra.mxu0 0
        %1021 = vmatprep.subr.bf16.mxu0 0
        %1022 = vmatpush2.bf16.msra.mxu0 0
        %1023 = vmatprep.subr.bf16.mxu0 0
        %1024 = vmatpush2.bf16.msra.mxu0 0
        %1025 = vmatprep.subr.bf16.mxu0 0
        %1026 = vmatpush2.bf16.msra.mxu0 0
        %1027 = vmatprep.subr.bf16.mxu0 0
        %1028 = vmatpush2.bf16.msra.mxu0 0
        %1029 = vmatprep.subr.bf16.mxu0 0
        %1030 = vmatpush2.bf16.msra.mxu0 0
        %1031 = vmatprep.subr.bf16.mxu0 0
        %1032 = vmatpush2.bf16.msra.mxu0 0
        %1033 = vmatprep.subr.bf16.mxu0 0
        %1034 = vmatpush2.bf16.msra.mxu0 0
        %1035 = vmatprep.mubr.bf16.mxu0 0
        %1036 = vmatmul.mubr.bf16.gmra.mxu0 %v858
        %v1037 = vpop.f32.mrf.mxu0
        %v1038 = vadd.f32 %v863, %v1037
        %v1039 = vpop.f32.mrf.mxu0
        %v1040 = vadd.f32 %v867, %v1039
        %v1041 = vpop.f32.mrf.mxu0
        %v1042 = vadd.f32 %v863, %v1041
        %v1043 = vpop.f32.mrf.mxu0
        %v1044 = vadd.f32 %v867, %v1043
        %1045 = vdwg.mxu0
        %1046 = vmatprep.subr.bf16.mxu0 0
        %1047 = vmatpush1.bf16.msra.mxu0 %v978
        %1048 = vmatprep.subr.bf16.mxu0 0
        %1049 = vmatpush1.bf16.msra.mxu0 %v975
        %1050 = vmatprep.subr.bf16.mxu0 0
        %1051 = vmatpush1.bf16.msra.mxu0 %v972
        %1052 = vmatprep.subr.bf16.mxu0 0
        %1053 = vmatpush1.bf16.msra.mxu0 %v969
        %1054 = vmatprep.subr.bf16.mxu0 0
        %1055 = vmatpush1.bf16.msra.mxu0 %v966
        %1056 = vmatprep.subr.bf16.mxu0 0
        %1057 = vmatpush1.bf16.msra.mxu0 %v963
        %1058 = vmatprep.subr.bf16.mxu0 0
        %1059 = vmatpush1.bf16.msra.mxu0 %v960
        %1060 = vmatprep.subr.bf16.mxu0 0
        %1061 = vmatpush1.bf16.msra.mxu0 %v957
        %1062 = vmatprep.subr.bf16.mxu0 0
        %1063 = vmatpush2.bf16.msra.mxu0 0
        %1064 = vmatprep.subr.bf16.mxu0 0
        %1065 = vmatpush2.bf16.msra.mxu0 0
        %1066 = vmatprep.subr.bf16.mxu0 0
        %1067 = vmatpush2.bf16.msra.mxu0 0
        %1068 = vmatprep.subr.bf16.mxu0 0
        %1069 = vmatpush2.bf16.msra.mxu0 0
        %1070 = vmatprep.subr.bf16.mxu0 0
        %1071 = vmatpush2.bf16.msra.mxu0 0
        %1072 = vmatprep.subr.bf16.mxu0 0
        %1073 = vmatpush2.bf16.msra.mxu0 0
        %1074 = vmatprep.subr.bf16.mxu0 0
        %1075 = vmatpush2.bf16.msra.mxu0 0
        %1076 = vmatprep.subr.bf16.mxu0 0
        %1077 = vmatpush2.bf16.msra.mxu0 0
        %1078 = vmatprep.mubr.bf16.mxu0 0
        %1079 = vmatmul.mubr.bf16.gmra.mxu0 %v858
        %v1080 = vpop.f32.mrf.mxu0
        %v1081 = vadd.f32 %v871, %v1080
        %v1082 = vpop.f32.mrf.mxu0
        %v1083 = vpop.f32.mrf.mxu0
        %v1084 = vadd.f32 %v871, %v1083
        %v1085 = vpop.f32.mrf.mxu0
        %1086 = vdwg.mxu0
        %v1087 = vmul.f32 %v1038, 0.25
        %v1088 = vmul.f32 %v1042, 0.25
        %v1089 = vpack.c.bf16 %v1088, %v1087
        %v1090 = vpack.c.bf16 %v1044, %v1040
        %v1091 = vpack.c.bf16 %v1084, %v1081
        %vm1092 = vcmask 130048
        %v1094 = vsel %vm1092, %v1089, 0
        %v1097 = vsel %vm1092, %v1090, 0
        %1099 = vmatprep.subr.bf16.mxu0 0
        %1100 = vmatpush1.bf16.xpose.msra.mxu0 0
        %1101 = vmatprep.subr.bf16.mxu0 0
        %1102 = vmatpush1.bf16.xpose.msra.mxu0 0
        %1103 = vmatprep.subr.bf16.mxu0 0
        %1104 = vmatpush1.bf16.xpose.msra.mxu0 0
        %1105 = vmatprep.subr.bf16.mxu0 0
        %1106 = vmatpush1.bf16.xpose.msra.mxu0 0
        %1107 = vmatprep.subr.bf16.mxu0 0
        %1108 = vmatpush1.bf16.xpose.msra.mxu0 0
        %1109 = vmatprep.subr.bf16.mxu0 0
        %1110 = vmatpush1.bf16.xpose.msra.mxu0 0
        %1111 = vmatprep.subr.bf16.mxu0 0
        %1112 = vmatpush1.bf16.xpose.msra.mxu0 0
        %1113 = vmatprep.subr.bf16.mxu0 0
        %1114 = vmatpush1.bf16.xpose.msra.mxu0 %v1097
        %1115 = vmatprep.subr.bf16.mxu0 0
        %1116 = vmatpush2.bf16.xpose.msra.mxu0 0
        %1117 = vmatprep.subr.bf16.mxu0 0
        %1118 = vmatpush2.bf16.xpose.msra.mxu0 0
        %1119 = vmatprep.subr.bf16.mxu0 0
        %1120 = vmatpush2.bf16.xpose.msra.mxu0 0
        %1121 = vmatprep.subr.bf16.mxu0 0
        %1122 = vmatpush2.bf16.xpose.msra.mxu0 0
        %1123 = vmatprep.subr.bf16.mxu0 0
        %1124 = vmatpush2.bf16.xpose.msra.mxu0 0
        %1125 = vmatprep.subr.bf16.mxu0 0
        %1126 = vmatpush2.bf16.xpose.msra.mxu0 0
        %1127 = vmatprep.subr.bf16.mxu0 0
        %1128 = vmatpush2.bf16.xpose.msra.mxu0 0
        %1129 = vmatprep.subr.bf16.mxu0 0
        %1130 = vmatpush2.bf16.xpose.msra.mxu0 0
        %1131 = vmatprep.mubr.bf16.mxu0 0
        %1132 = vmatmul.mubr.bf16.gmra.mxu0 %v1094
        %v1133 = vpop.f32.mrf.mxu0
        %v1134 = vadd.f32 %v790, %v1133
        %v1135 = vpop.f32.mrf.mxu0
        %v1136 = vpop.f32.mrf.mxu0
        %v1137 = vadd.f32 %v790, %v1136
        %v1138 = vpop.f32.mrf.mxu0
        %1139 = vdwg.mxu0
        %v1140 = vsel %vm1092, %v1134, -inf
        %1141 = vmax.xlane.f32.xlu0 %v1140
        %v1142 = vpop.xlane.xlu0 %1141
        %v1143 = vsel %vm1092, %v1137, -inf
        %1144 = vmax.xlane.f32.xlu0 %v1143
        %v1145 = vpop.xlane.xlu0 %1144
        %v1146 = vsub.f32 %v1134, %v1142
        %v1147 = vsub.f32 %v1137, %v1145
        %v1148 = vmul.f32 %v1146, 1.442695
        %v1149 = vpow.pop %v1148
        %v1150 = vmul.f32 %v1147, 1.442695
        %v1151 = vpow.pop %v1150
        %v1152 = vsel %vm1092, %v1149, 0.0
        %1153 = vadd.xlane.f32.xlu0 %v1152
        %v1154 = vpop.xlane.xlu0 %1153
        %v1155 = vsel %vm1092, %v1151, 0.0
        %1156 = vadd.xlane.f32.xlu0 %v1155
        %v1157 = vpop.xlane.xlu0 %1156
        %v1158 = vrcp.pop %v1154
        %v1159 = vrcp.pop %v1157
        %v1160 = vmul.f32 %v1149, %v1158
        %v1161 = vmul.f32 %v1151, %v1159
        %v1162 = vpack.c.bf16 %v1161, %v1160
        %v1164 = vsel %vm1092, %v1162, 0
        %1166 = vmatprep.subr.bf16.mxu0 0
        %1167 = vmatpush1.bf16.msra.mxu0 0
        %1168 = vmatprep.subr.bf16.mxu0 0
        %1169 = vmatpush1.bf16.msra.mxu0 0
        %1170 = vmatprep.subr.bf16.mxu0 0
        %1171 = vmatpush1.bf16.msra.mxu0 0
        %1172 = vmatprep.subr.bf16.mxu0 0
        %1173 = vmatpush1.bf16.msra.mxu0 0
        %1174 = vmatprep.subr.bf16.mxu0 0
        %1175 = vmatpush1.bf16.msra.mxu0 0
        %1176 = vmatprep.subr.bf16.mxu0 0
        %1177 = vmatpush1.bf16.msra.mxu0 0
        %1178 = vmatprep.subr.bf16.mxu0 0
        %1179 = vmatpush1.bf16.msra.mxu0 0
        %1180 = vmatprep.subr.bf16.mxu0 0
        %1181 = vmatpush1.bf16.msra.mxu0 %v1091
        %1182 = vmatprep.subr.bf16.mxu0 0
        %1183 = vmatpush2.bf16.msra.mxu0 0
        %1184 = vmatprep.subr.bf16.mxu0 0
        %1185 = vmatpush2.bf16.msra.mxu0 0
        %1186 = vmatprep.subr.bf16.mxu0 0
        %1187 = vmatpush2.bf16.msra.mxu0 0
        %1188 = vmatprep.subr.bf16.mxu0 0
        %1189 = vmatpush2.bf16.msra.mxu0 0
        %1190 = vmatprep.subr.bf16.mxu0 0
        %1191 = vmatpush2.bf16.msra.mxu0 0
        %1192 = vmatprep.subr.bf16.mxu0 0
        %1193 = vmatpush2.bf16.msra.mxu0 0
        %1194 = vmatprep.subr.bf16.mxu0 0
        %1195 = vmatpush2.bf16.msra.mxu0 0
        %1196 = vmatprep.subr.bf16.mxu0 0
        %1197 = vmatpush2.bf16.msra.mxu0 0
        %1198 = vmatprep.mubr.bf16.mxu0 0
        %1199 = vmatmul.mubr.bf16.gmra.mxu0 %v1164
        %v1200 = vpop.f32.mrf.mxu0
        %v1201 = vadd.f32 0.0, %v1200
        %v1202 = vpop.f32.mrf.mxu0
        %v1203 = vpop.f32.mrf.mxu0
        %v1204 = vadd.f32 0.0, %v1203
        %v1205 = vpop.f32.mrf.mxu0
        %1206 = vdwg.mxu0
        %v1207 = vpack.c.bf16 %v1204, %v1201
        %1209 = vrot.lane.b32.xlu0 %v1089, 112
        %v1210 = vpop.permute.xlu0 %1209
        %1212 = vrot.lane.b32.xlu0 %v1090, 112
        %v1213 = vpop.permute.xlu0 %1212
        %v1215 = vsel %vm1092, %v1210, 0
        %v1218 = vsel %vm1092, %v1213, 0
        %1220 = vmatprep.subr.bf16.mxu0 0
        %1221 = vmatpush1.bf16.xpose.msra.mxu0 0
        %1222 = vmatprep.subr.bf16.mxu0 0
        %1223 = vmatpush1.bf16.xpose.msra.mxu0 0
        %1224 = vmatprep.subr.bf16.mxu0 0
        %1225 = vmatpush1.bf16.xpose.msra.mxu0 0
        %1226 = vmatprep.subr.bf16.mxu0 0
        %1227 = vmatpush1.bf16.xpose.msra.mxu0 0
        %1228 = vmatprep.subr.bf16.mxu0 0
        %1229 = vmatpush1.bf16.xpose.msra.mxu0 0
        %1230 = vmatprep.subr.bf16.mxu0 0
        %1231 = vmatpush1.bf16.xpose.msra.mxu0 0
        %1232 = vmatprep.subr.bf16.mxu0 0
        %1233 = vmatpush1.bf16.xpose.msra.mxu0 0
        %1234 = vmatprep.subr.bf16.mxu0 0
        %1235 = vmatpush1.bf16.xpose.msra.mxu0 %v1218
        %1236 = vmatprep.subr.bf16.mxu0 0
        %1237 = vmatpush2.bf16.xpose.msra.mxu0 0
        %1238 = vmatprep.subr.bf16.mxu0 0
        %1239 = vmatpush2.bf16.xpose.msra.mxu0 0
        %1240 = vmatprep.subr.bf16.mxu0 0
        %1241 = vmatpush2.bf16.xpose.msra.mxu0 0
        %1242 = vmatprep.subr.bf16.mxu0 0
        %1243 = vmatpush2.bf16.xpose.msra.mxu0 0
        %1244 = vmatprep.subr.bf16.mxu0 0
        %1245 = vmatpush2.bf16.xpose.msra.mxu0 0
        %1246 = vmatprep.subr.bf16.mxu0 0
        %1247 = vmatpush2.bf16.xpose.msra.mxu0 0
        %1248 = vmatprep.subr.bf16.mxu0 0
        %1249 = vmatpush2.bf16.xpose.msra.mxu0 0
        %1250 = vmatprep.subr.bf16.mxu0 0
        %1251 = vmatpush2.bf16.xpose.msra.mxu0 0
        %1252 = vmatprep.mubr.bf16.mxu0 0
        %1253 = vmatmul.mubr.bf16.gmra.mxu0 %v1215
        %v1254 = vpop.f32.mrf.mxu0
        %v1255 = vadd.f32 %v790, %v1254
        %v1256 = vpop.f32.mrf.mxu0
        %v1257 = vpop.f32.mrf.mxu0
        %v1258 = vadd.f32 %v790, %v1257
        %v1259 = vpop.f32.mrf.mxu0
        %1260 = vdwg.mxu0
        %v1261 = vsel %vm1092, %v1255, -inf
        %1262 = vmax.xlane.f32.xlu0 %v1261
        %v1263 = vpop.xlane.xlu0 %1262
        %v1264 = vsel %vm1092, %v1258, -inf
        %1265 = vmax.xlane.f32.xlu0 %v1264
        %v1266 = vpop.xlane.xlu0 %1265
        %v1267 = vsub.f32 %v1255, %v1263
        %v1268 = vsub.f32 %v1258, %v1266
        %v1269 = vmul.f32 %v1267, 1.442695
        %v1270 = vpow.pop %v1269
        %v1271 = vmul.f32 %v1268, 1.442695
        %v1272 = vpow.pop %v1271
        %v1273 = vsel %vm1092, %v1270, 0.0
        %1274 = vadd.xlane.f32.xlu0 %v1273
        %v1275 = vpop.xlane.xlu0 %1274
        %v1276 = vsel %vm1092, %v1272, 0.0
        %1277 = vadd.xlane.f32.xlu0 %v1276
        %v1278 = vpop.xlane.xlu0 %1277
        %v1279 = vrcp.pop %v1275
        %v1280 = vrcp.pop %v1278
        %v1281 = vmul.f32 %v1270, %v1279
        %v1282 = vmul.f32 %v1272, %v1280
        %v1283 = vpack.c.bf16 %v1282, %v1281
        %1285 = vrot.lane.b32.xlu0 %v1091, 112
        %v1286 = vpop.permute.xlu0 %1285
        %v1289 = vsel %vm1092, %v1283, 0
        %1291 = vmatprep.subr.bf16.mxu0 0
        %1292 = vmatpush1.bf16.msra.mxu0 0
        %1293 = vmatprep.subr.bf16.mxu0 0
        %1294 = vmatpush1.bf16.msra.mxu0 0
        %1295 = vmatprep.subr.bf16.mxu0 0
        %1296 = vmatpush1.bf16.msra.mxu0 0
        %1297 = vmatprep.subr.bf16.mxu0 0
        %1298 = vmatpush1.bf16.msra.mxu0 0
        %1299 = vmatprep.subr.bf16.mxu0 0
        %1300 = vmatpush1.bf16.msra.mxu0 0
        %1301 = vmatprep.subr.bf16.mxu0 0
        %1302 = vmatpush1.bf16.msra.mxu0 0
        %1303 = vmatprep.subr.bf16.mxu0 0
        %1304 = vmatpush1.bf16.msra.mxu0 0
        %1305 = vmatprep.subr.bf16.mxu0 0
        %1306 = vmatpush1.bf16.msra.mxu0 %v1286
        %1307 = vmatprep.subr.bf16.mxu0 0
        %1308 = vmatpush2.bf16.msra.mxu0 0
        %1309 = vmatprep.subr.bf16.mxu0 0
        %1310 = vmatpush2.bf16.msra.mxu0 0
        %1311 = vmatprep.subr.bf16.mxu0 0
        %1312 = vmatpush2.bf16.msra.mxu0 0
        %1313 = vmatprep.subr.bf16.mxu0 0
        %1314 = vmatpush2.bf16.msra.mxu0 0
        %1315 = vmatprep.subr.bf16.mxu0 0
        %1316 = vmatpush2.bf16.msra.mxu0 0
        %1317 = vmatprep.subr.bf16.mxu0 0
        %1318 = vmatpush2.bf16.msra.mxu0 0
        %1319 = vmatprep.subr.bf16.mxu0 0
        %1320 = vmatpush2.bf16.msra.mxu0 0
        %1321 = vmatprep.subr.bf16.mxu0 0
        %1322 = vmatpush2.bf16.msra.mxu0 0
        %1323 = vmatprep.mubr.bf16.mxu0 0
        %1324 = vmatmul.mubr.bf16.gmra.mxu0 %v1289
        %v1325 = vpop.f32.mrf.mxu0
        %v1326 = vadd.f32 0.0, %v1325
        %v1327 = vpop.f32.mrf.mxu0
        %v1328 = vpop.f32.mrf.mxu0
        %v1329 = vadd.f32 0.0, %v1328
        %v1330 = vpop.f32.mrf.mxu0
        %1331 = vdwg.mxu0
        %v1332 = vpack.c.bf16 %v1329, %v1326
        %v1335 = vunpack.c.l.b16 %v847
        %v1336 = vunpack.c.l.b16 %v848
        %v1337 = vpack.c.b16 %v1336, %v1335
        %v1340 = vsel %vm1092, %v1332, 0
        %1342 = vmatprep.subr.bf16.mxu0 0
        %1343 = vmatpush1.bf16.msra.mxu0 0
        %1344 = vmatprep.subr.bf16.mxu0 0
        %1345 = vmatpush1.bf16.msra.mxu0 0
        %1346 = vmatprep.subr.bf16.mxu0 0
        %1347 = vmatpush1.bf16.msra.mxu0 0
        %1348 = vmatprep.subr.bf16.mxu0 0
        %1349 = vmatpush1.bf16.msra.mxu0 0
        %1350 = vmatprep.subr.bf16.mxu0 0
        %1351 = vmatpush1.bf16.msra.mxu0 0
        %1352 = vmatprep.subr.bf16.mxu0 0
        %1353 = vmatpush1.bf16.msra.mxu0 0
        %1354 = vmatprep.subr.bf16.mxu0 0
        %1355 = vmatpush1.bf16.msra.mxu0 0
        %1356 = vmatprep.subr.bf16.mxu0 0
        %1357 = vmatpush1.bf16.msra.mxu0 %v1337
        %1358 = vmatprep.subr.bf16.mxu0 0
        %1359 = vmatpush2.bf16.msra.mxu0 0
        %1360 = vmatprep.subr.bf16.mxu0 0
        %1361 = vmatpush2.bf16.msra.mxu0 0
        %1362 = vmatprep.subr.bf16.mxu0 0
        %1363 = vmatpush2.bf16.msra.mxu0 0
        %1364 = vmatprep.subr.bf16.mxu0 0
        %1365 = vmatpush2.bf16.msra.mxu0 0
        %1366 = vmatprep.subr.bf16.mxu0 0
        %1367 = vmatpush2.bf16.msra.mxu0 0
        %1368 = vmatprep.subr.bf16.mxu0 0
        %1369 = vmatpush2.bf16.msra.mxu0 0
        %1370 = vmatprep.subr.bf16.mxu0 0
        %1371 = vmatpush2.bf16.msra.mxu0 0
        %1372 = vmatprep.subr.bf16.mxu0 0
        %1373 = vmatpush2.bf16.msra.mxu0 0
        %1374 = vmatprep.mubr.bf16.mxu0 0
        %1375 = vmatmul.mubr.bf16.gmra.mxu0 %v1340
        %v1376 = vpop.f32.mrf.mxu0
        %v1377 = vadd.f32 0.0, %v1376
        %v1378 = vpop.f32.mrf.mxu0
        %v1379 = vpop.f32.mrf.mxu0
        %v1380 = vadd.f32 0.0, %v1379
        %v1381 = vpop.f32.mrf.mxu0
        %1382 = vdwg.mxu0
        %v1385 = vunpack.c.l.b16 %v845
        %v1386 = vunpack.c.l.b16 %v846
        %v1387 = vpack.c.b16 %v1386, %v1385
        %v1390 = vsel %vm1092, %v1207, 0
        %1392 = vmatprep.subr.bf16.mxu0 0
        %1393 = vmatpush1.bf16.msra.mxu0 0
        %1394 = vmatprep.subr.bf16.mxu0 0
        %1395 = vmatpush1.bf16.msra.mxu0 0
        %1396 = vmatprep.subr.bf16.mxu0 0
        %1397 = vmatpush1.bf16.msra.mxu0 0
        %1398 = vmatprep.subr.bf16.mxu0 0
        %1399 = vmatpush1.bf16.msra.mxu0 0
        %1400 = vmatprep.subr.bf16.mxu0 0
        %1401 = vmatpush1.bf16.msra.mxu0 0
        %1402 = vmatprep.subr.bf16.mxu0 0
        %1403 = vmatpush1.bf16.msra.mxu0 0
        %1404 = vmatprep.subr.bf16.mxu0 0
        %1405 = vmatpush1.bf16.msra.mxu0 0
        %1406 = vmatprep.subr.bf16.mxu0 0
        %1407 = vmatpush1.bf16.msra.mxu0 %v1387
        %1408 = vmatprep.subr.bf16.mxu0 0
        %1409 = vmatpush2.bf16.msra.mxu0 0
        %1410 = vmatprep.subr.bf16.mxu0 0
        %1411 = vmatpush2.bf16.msra.mxu0 0
        %1412 = vmatprep.subr.bf16.mxu0 0
        %1413 = vmatpush2.bf16.msra.mxu0 0
        %1414 = vmatprep.subr.bf16.mxu0 0
        %1415 = vmatpush2.bf16.msra.mxu0 0
        %1416 = vmatprep.subr.bf16.mxu0 0
        %1417 = vmatpush2.bf16.msra.mxu0 0
        %1418 = vmatprep.subr.bf16.mxu0 0
        %1419 = vmatpush2.bf16.msra.mxu0 0
        %1420 = vmatprep.subr.bf16.mxu0 0
        %1421 = vmatpush2.bf16.msra.mxu0 0
        %1422 = vmatprep.subr.bf16.mxu0 0
        %1423 = vmatpush2.bf16.msra.mxu0 0
        %1424 = vmatprep.mubr.bf16.mxu0 0
        %1425 = vmatmul.mubr.bf16.gmra.mxu0 %v1390
        %v1426 = vpop.f32.mrf.mxu0
        %v1427 = vadd.f32 %v1377, %v1426
        %v1428 = vpop.f32.mrf.mxu0
        %v1429 = vpop.f32.mrf.mxu0
        %v1430 = vadd.f32 %v1380, %v1429
        %v1431 = vpop.f32.mrf.mxu0
        %1432 = vdwg.mxu0
        %v1434 = vlaneseq
        %v1435 = vshrl.u32 %v1434, 7
        %v1436 = vsub.s32 0, %v1435
        %v1437 = vrot.slane %v849, %v1436
        %v1439 = vadd.f32 %v1427, %v1437
        %v1440 = vadd.f32 %v1430, %v1437
        %v1441 = vadd.f32 %v1439, %v856
        %v1442 = vadd.f32 %v1440, %v857
        %v1443 = vmul.f32 %v1441, %v787
        %v1444 = vmul.f32 %v1442, %v787
        %1445 = vadd.xlane.f32.xlu0 %v1443
        %v1446 = vpop.xlane.xlu0 %1445
        %1447 = vadd.xlane.f32.xlu0 %v1444
        %v1448 = vpop.xlane.xlu0 %1447
        %v1449 = vmul.f32 %v1446, 0.03125
        %v1450 = vmul.f32 %v1448, 0.03125
        %v1451 = vsub.f32 %v1443, %v1449
        %v1452 = vsub.f32 %v1444, %v1450
        %v1453 = vmul.f32 %v1451, %v787
        %v1454 = vmul.f32 %v1452, %v787
        %v1455 = vmul.f32 %v1453, %v1453
        %v1456 = vmul.f32 %v1454, %v1454
        %1457 = vadd.xlane.f32.xlu0 %v1455
        %v1458 = vpop.xlane.xlu0 %1457
        %1459 = vadd.xlane.f32.xlu0 %v1456
        %v1460 = vpop.xlane.xlu0 %1459
        %v1461 = vmul.f32 %v1458, 0.03125
        %v1462 = vmul.f32 %v1460, 0.03125
        %v1463 = vadd.f32 %v1461, 1e-05
        %v1464 = vadd.f32 %v1462, 1e-05
        %v1465 = vrsqrt.pop %v1463
        %v1466 = vrsqrt.pop %v1464
        %v1467 = vmul.f32 %v1453, %v1465
        %v1468 = vmul.f32 %v1454, %v1466
        %v1470 = vlaneseq
        %v1471 = vshrl.u32 %v1470, 7
        %v1472 = vsub.s32 0, %v1471
        %v1473 = vrot.slane %v850, %v1472
        %v1475 = vmul.f32 %v1467, %v1473
        %v1476 = vmul.f32 %v1468, %v1473
        %v1478 = vlaneseq
        %v1479 = vshrl.u32 %v1478, 7
        %v1480 = vsub.s32 0, %v1479
        %v1481 = vrot.slane %v851, %v1480
        %v1483 = vadd.f32 %v1475, %v1481
        %v1484 = vadd.f32 %v1476, %v1481
        %v1485 = vmul.f32 %v1483, %v798
        %v1486 = vmul.f32 %v1484, %v799
        %1487 = vst [vmem:[#allocation3] sm:$0xff] %v1485
        %1488 = vst [vmem:[#allocation3 + $0x8] sm:$0xff] %v1486
        %v1489 = vld [vmem:[#allocation3] sm:$0xff]
        %v1490 = vld [vmem:[#allocation3 + $0x8] sm:$0xff]
        %v1491 = vpack.c.bf16 %v1490, %v1489
        %v1493 = vrot.slane %v1491, 6
        %vm1494 = vcmask 1041408
        %v1497 = vsel %vm1494, 0, %v1493
        %v1499 = vsel %vm1494, %v1493, 0
        %v1500 = vld [vmem:[%s657] sm:$0xf]
        %v1501 = vld [vmem:[%s657 + $0x4] sm:$0xf]
        %v1502 = vld [vmem:[%s657 + $0x8] sm:$0xf]
        %v1503 = vld [vmem:[%s657 + $0xc] sm:$0xf]
        %v1504 = vld [vmem:[%s657 + $0x10] sm:$0xf]
        %v1505 = vld [vmem:[%s657 + $0x14] sm:$0xf]
        %v1506 = vld [vmem:[%s657 + $0x18] sm:$0xf]
        %v1507 = vld [vmem:[%s657 + $0x1c] sm:$0xf]
        %v1508 = vld [vmem:[%s657 + $0x20] sm:$0xf]
        %v1509 = vld [vmem:[%s657 + $0x24] sm:$0xf]
        %v1510 = vld [vmem:[%s657 + $0x28] sm:$0xf]
        %v1511 = vld [vmem:[%s657 + $0x2c] sm:$0xf]
        %v1512 = vld [vmem:[%s657 + $0x30] sm:$0xf]
        %v1513 = vld [vmem:[%s657 + $0x34] sm:$0xf]
        %v1514 = vld [vmem:[%s657 + $0x38] sm:$0xf]
        %v1515 = vld [vmem:[%s657 + $0x3c] sm:$0xf]
        %s1516 = scalar_lea.vmem %s657, 64 [#allocation13]
        %v1517 = vld [vmem:[%s1516] sm:$0xf]
        %v1518 = vld [vmem:[%s1516 + $0x4] sm:$0xf]
        %v1519 = vld [vmem:[%s1516 + $0x8] sm:$0xf]
        %v1520 = vld [vmem:[%s1516 + $0xc] sm:$0xf]
        %v1521 = vld [vmem:[%s1516 + $0x10] sm:$0xf]
        %v1522 = vld [vmem:[%s1516 + $0x14] sm:$0xf]
        %v1523 = vld [vmem:[%s1516 + $0x18] sm:$0xf]
        %v1524 = vld [vmem:[%s1516 + $0x1c] sm:$0xf]
        %v1525 = vld [vmem:[%s1516 + $0x20] sm:$0xf]
        %v1526 = vld [vmem:[%s1516 + $0x24] sm:$0xf]
        %v1527 = vld [vmem:[%s1516 + $0x28] sm:$0xf]
        %v1528 = vld [vmem:[%s1516 + $0x2c] sm:$0xf]
        %v1529 = vld [vmem:[%s1516 + $0x30] sm:$0xf]
        %v1530 = vld [vmem:[%s1516 + $0x34] sm:$0xf]
        %v1531 = vld [vmem:[%s1516 + $0x38] sm:$0xf]
        %v1532 = vld [vmem:[%s1516 + $0x3c] sm:$0xf]
        %vm1533 = vsmask.f32 7424
        %v1534 = vshrl.u32 %v1497, 16
        %v1536 = vshll.u32 %v1497, 16
        %v1538 = vrot.slane %v1536, 1
        %v1539 = vor.u32 %v1534, %v1538
        %v1540 = vshll.u32 %v1499, 16
        %v1542 = vrot.slane %v1540, 1
        %v1543 = vsel %vm1533, %v1539, %v1542
        %v1561 = vunpack.c.l.b16 %v1517
        %v1562 = vunpack.c.l.b16 %v1518
        %v1563 = vunpack.c.l.b16 %v1519
        %v1564 = vunpack.c.l.b16 %v1520
        %v1565 = vunpack.c.l.b16 %v1521
        %v1566 = vunpack.c.l.b16 %v1522
        %v1567 = vunpack.c.l.b16 %v1523
        %v1568 = vunpack.c.l.b16 %v1524
        %v1569 = vunpack.c.l.b16 %v1525
        %v1570 = vunpack.c.l.b16 %v1526
        %v1571 = vunpack.c.l.b16 %v1527
        %v1572 = vunpack.c.l.b16 %v1528
        %v1573 = vunpack.c.l.b16 %v1529
        %v1574 = vunpack.c.l.b16 %v1530
        %v1575 = vunpack.c.l.b16 %v1531
        %v1576 = vunpack.c.l.b16 %v1532
        %v1577 = vpack.c.b16 %v1562, %v1561
        %v1578 = vpack.c.b16 %v1564, %v1563
        %v1579 = vpack.c.b16 %v1566, %v1565
        %v1580 = vpack.c.b16 %v1568, %v1567
        %v1581 = vpack.c.b16 %v1570, %v1569
        %v1582 = vpack.c.b16 %v1572, %v1571
        %v1583 = vpack.c.b16 %v1574, %v1573
        %v1584 = vpack.c.b16 %v1576, %v1575
        %1593 = vmatprep.subr.bf16.mxu0 0
        %1594 = vmatpush1.bf16.msra.mxu0 %v1584
        %1595 = vmatprep.subr.bf16.mxu0 0
        %1596 = vmatpush1.bf16.msra.mxu0 %v1583
        %1597 = vmatprep.subr.bf16.mxu0 0
        %1598 = vmatpush1.bf16.msra.mxu0 %v1582
        %1599 = vmatprep.subr.bf16.mxu0 0
        %1600 = vmatpush1.bf16.msra.mxu0 %v1581
        %1601 = vmatprep.subr.bf16.mxu0 0
        %1602 = vmatpush1.bf16.msra.mxu0 %v1580
        %1603 = vmatprep.subr.bf16.mxu0 0
        %1604 = vmatpush1.bf16.msra.mxu0 %v1579
        %1605 = vmatprep.subr.bf16.mxu0 0
        %1606 = vmatpush1.bf16.msra.mxu0 %v1578
        %1607 = vmatprep.subr.bf16.mxu0 0
        %1608 = vmatpush1.bf16.msra.mxu0 %v1577
        %1609 = vmatprep.subr.bf16.mxu0 0
        %1610 = vmatpush2.bf16.msra.mxu0 0
        %1611 = vmatprep.subr.bf16.mxu0 0
        %1612 = vmatpush2.bf16.msra.mxu0 0
        %1613 = vmatprep.subr.bf16.mxu0 0
        %1614 = vmatpush2.bf16.msra.mxu0 0
        %1615 = vmatprep.subr.bf16.mxu0 0
        %1616 = vmatpush2.bf16.msra.mxu0 0
        %1617 = vmatprep.subr.bf16.mxu0 0
        %1618 = vmatpush2.bf16.msra.mxu0 0
        %1619 = vmatprep.subr.bf16.mxu0 0
        %1620 = vmatpush2.bf16.msra.mxu0 0
        %1621 = vmatprep.subr.bf16.mxu0 0
        %1622 = vmatpush2.bf16.msra.mxu0 0
        %1623 = vmatprep.subr.bf16.mxu0 0
        %1624 = vmatpush2.bf16.msra.mxu0 0
        %1625 = vmatprep.mubr.bf16.mxu0 0
        %1626 = vmatmul.mubr.bf16.gmra.mxu0 %v1543
        %v1627 = vpop.f32.mrf.mxu0
        %v1628 = vadd.f32 0.0, %v1627
        %v1629 = vpop.f32.mrf.mxu0
        %v1630 = vpop.f32.mrf.mxu0
        %v1631 = vadd.f32 0.0, %v1630
        %v1632 = vpop.f32.mrf.mxu0
        %1633 = vdwg.mxu0
        %v1650 = vunpack.c.l.b16 %v1500
        %v1651 = vunpack.c.l.b16 %v1501
        %v1652 = vunpack.c.l.b16 %v1502
        %v1653 = vunpack.c.l.b16 %v1503
        %v1654 = vunpack.c.l.b16 %v1504
        %v1655 = vunpack.c.l.b16 %v1505
        %v1656 = vunpack.c.l.b16 %v1506
        %v1657 = vunpack.c.l.b16 %v1507
        %v1658 = vunpack.c.l.b16 %v1508
        %v1659 = vunpack.c.l.b16 %v1509
        %v1660 = vunpack.c.l.b16 %v1510
        %v1661 = vunpack.c.l.b16 %v1511
        %v1662 = vunpack.c.l.b16 %v1512
        %v1663 = vunpack.c.l.b16 %v1513
        %v1664 = vunpack.c.l.b16 %v1514
        %v1665 = vunpack.c.l.b16 %v1515
        %v1666 = vpack.c.b16 %v1651, %v1650
        %v1667 = vpack.c.b16 %v1653, %v1652
        %v1668 = vpack.c.b16 %v1655, %v1654
        %v1669 = vpack.c.b16 %v1657, %v1656
        %v1670 = vpack.c.b16 %v1659, %v1658
        %v1671 = vpack.c.b16 %v1661, %v1660
        %v1672 = vpack.c.b16 %v1663, %v1662
        %v1673 = vpack.c.b16 %v1665, %v1664
        %1682 = vmatprep.subr.bf16.mxu0 0
        %1683 = vmatpush1.bf16.msra.mxu0 %v1673
        %1684 = vmatprep.subr.bf16.mxu0 0
        %1685 = vmatpush1.bf16.msra.mxu0 %v1672
        %1686 = vmatprep.subr.bf16.mxu0 0
        %1687 = vmatpush1.bf16.msra.mxu0 %v1671
        %1688 = vmatprep.subr.bf16.mxu0 0
        %1689 = vmatpush1.bf16.msra.mxu0 %v1670
        %1690 = vmatprep.subr.bf16.mxu0 0
        %1691 = vmatpush1.bf16.msra.mxu0 %v1669
        %1692 = vmatprep.subr.bf16.mxu0 0
        %1693 = vmatpush1.bf16.msra.mxu0 %v1668
        %1694 = vmatprep.subr.bf16.mxu0 0
        %1695 = vmatpush1.bf16.msra.mxu0 %v1667
        %1696 = vmatprep.subr.bf16.mxu0 0
        %1697 = vmatpush1.bf16.msra.mxu0 %v1666
        %1698 = vmatprep.subr.bf16.mxu0 0
        %1699 = vmatpush2.bf16.msra.mxu0 0
        %1700 = vmatprep.subr.bf16.mxu0 0
        %1701 = vmatpush2.bf16.msra.mxu0 0
        %1702 = vmatprep.subr.bf16.mxu0 0
        %1703 = vmatpush2.bf16.msra.mxu0 0
        %1704 = vmatprep.subr.bf16.mxu0 0
        %1705 = vmatpush2.bf16.msra.mxu0 0
        %1706 = vmatprep.subr.bf16.mxu0 0
        %1707 = vmatpush2.bf16.msra.mxu0 0
        %1708 = vmatprep.subr.bf16.mxu0 0
        %1709 = vmatpush2.bf16.msra.mxu0 0
        %1710 = vmatprep.subr.bf16.mxu0 0
        %1711 = vmatpush2.bf16.msra.mxu0 0
        %1712 = vmatprep.subr.bf16.mxu0 0
        %1713 = vmatpush2.bf16.msra.mxu0 0
        %1714 = vmatprep.mubr.bf16.mxu0 0
        %1715 = vmatmul.mubr.bf16.gmra.mxu0 %v1497
        %v1716 = vpop.f32.mrf.mxu0
        %v1717 = vadd.f32 %v1628, %v1716
        %v1718 = vpop.f32.mrf.mxu0
        %v1719 = vpop.f32.mrf.mxu0
        %v1720 = vadd.f32 %v1631, %v1719
        %v1721 = vpop.f32.mrf.mxu0
        %1722 = vdwg.mxu0
        %s1723 = scalar_lea.vmem %s657, 128 [#allocation13]
        %v1724 = vld [vmem:[%s1723] sm:$0xf]
        %v1725 = vld [vmem:[%s1723 + $0x4] sm:$0xf]
        %v1726 = vld [vmem:[%s1723 + $0x8] sm:$0xf]
        %v1727 = vld [vmem:[%s1723 + $0xc] sm:$0xf]
        %v1728 = vld [vmem:[%s1723 + $0x10] sm:$0xf]
        %v1729 = vld [vmem:[%s1723 + $0x14] sm:$0xf]
        %v1730 = vld [vmem:[%s1723 + $0x18] sm:$0xf]
        %v1731 = vld [vmem:[%s1723 + $0x1c] sm:$0xf]
        %v1732 = vld [vmem:[%s1723 + $0x20] sm:$0xf]
        %v1733 = vld [vmem:[%s1723 + $0x24] sm:$0xf]
        %v1734 = vld [vmem:[%s1723 + $0x28] sm:$0xf]
        %v1735 = vld [vmem:[%s1723 + $0x2c] sm:$0xf]
        %v1736 = vld [vmem:[%s1723 + $0x30] sm:$0xf]
        %v1737 = vld [vmem:[%s1723 + $0x34] sm:$0xf]
        %v1738 = vld [vmem:[%s1723 + $0x38] sm:$0xf]
        %v1739 = vld [vmem:[%s1723 + $0x3c] sm:$0xf]
        %vm1742 = vcmask 1046528
        %v1743 = vrot.slane %v1497, 1
        %v1744 = vrot.slane %v1499, 1
        %v1745 = vsel %vm1742, %v1743, %v1744
        %v1763 = vunpack.c.l.b16 %v1724
        %v1764 = vunpack.c.l.b16 %v1725
        %v1765 = vunpack.c.l.b16 %v1726
        %v1766 = vunpack.c.l.b16 %v1727
        %v1767 = vunpack.c.l.b16 %v1728
        %v1768 = vunpack.c.l.b16 %v1729
        %v1769 = vunpack.c.l.b16 %v1730
        %v1770 = vunpack.c.l.b16 %v1731
        %v1771 = vunpack.c.l.b16 %v1732
        %v1772 = vunpack.c.l.b16 %v1733
        %v1773 = vunpack.c.l.b16 %v1734
        %v1774 = vunpack.c.l.b16 %v1735
        %v1775 = vunpack.c.l.b16 %v1736
        %v1776 = vunpack.c.l.b16 %v1737
        %v1777 = vunpack.c.l.b16 %v1738
        %v1778 = vunpack.c.l.b16 %v1739
        %v1779 = vpack.c.b16 %v1764, %v1763
        %v1780 = vpack.c.b16 %v1766, %v1765
        %v1781 = vpack.c.b16 %v1768, %v1767
        %v1782 = vpack.c.b16 %v1770, %v1769
        %v1783 = vpack.c.b16 %v1772, %v1771
        %v1784 = vpack.c.b16 %v1774, %v1773
        %v1785 = vpack.c.b16 %v1776, %v1775
        %v1786 = vpack.c.b16 %v1778, %v1777
        %1795 = vmatprep.subr.bf16.mxu0 0
        %1796 = vmatpush1.bf16.msra.mxu0 %v1786
        %1797 = vmatprep.subr.bf16.mxu0 0
        %1798 = vmatpush1.bf16.msra.mxu0 %v1785
        %1799 = vmatprep.subr.bf16.mxu0 0
        %1800 = vmatpush1.bf16.msra.mxu0 %v1784
        %1801 = vmatprep.subr.bf16.mxu0 0
        %1802 = vmatpush1.bf16.msra.mxu0 %v1783
        %1803 = vmatprep.subr.bf16.mxu0 0
        %1804 = vmatpush1.bf16.msra.mxu0 %v1782
        %1805 = vmatprep.subr.bf16.mxu0 0
        %1806 = vmatpush1.bf16.msra.mxu0 %v1781
        %1807 = vmatprep.subr.bf16.mxu0 0
        %1808 = vmatpush1.bf16.msra.mxu0 %v1780
        %1809 = vmatprep.subr.bf16.mxu0 0
        %1810 = vmatpush1.bf16.msra.mxu0 %v1779
        %1811 = vmatprep.subr.bf16.mxu0 0
        %1812 = vmatpush2.bf16.msra.mxu0 0
        %1813 = vmatprep.subr.bf16.mxu0 0
        %1814 = vmatpush2.bf16.msra.mxu0 0
        %1815 = vmatprep.subr.bf16.mxu0 0
        %1816 = vmatpush2.bf16.msra.mxu0 0
        %1817 = vmatprep.subr.bf16.mxu0 0
        %1818 = vmatpush2.bf16.msra.mxu0 0
        %1819 = vmatprep.subr.bf16.mxu0 0
        %1820 = vmatpush2.bf16.msra.mxu0 0
        %1821 = vmatprep.subr.bf16.mxu0 0
        %1822 = vmatpush2.bf16.msra.mxu0 0
        %1823 = vmatprep.subr.bf16.mxu0 0
        %1824 = vmatpush2.bf16.msra.mxu0 0
        %1825 = vmatprep.subr.bf16.mxu0 0
        %1826 = vmatpush2.bf16.msra.mxu0 0
        %1827 = vmatprep.mubr.bf16.mxu0 0
        %1828 = vmatmul.mubr.bf16.gmra.mxu0 %v1745
        %v1829 = vpop.f32.mrf.mxu0
        %v1830 = vadd.f32 0.0, %v1829
        %v1831 = vpop.f32.mrf.mxu0
        %v1832 = vpop.f32.mrf.mxu0
        %v1833 = vadd.f32 0.0, %v1832
        %v1834 = vpop.f32.mrf.mxu0
        %1835 = vdwg.mxu0
        %v1836 = vadd.f32 %v1717, %v1830
        %v1837 = vadd.f32 %v1720, %v1833
        %s1838 = scalar_lea.vmem %s657, 192 [#allocation13]
        %v1839 = vld [vmem:[%s1838] sm:$0xf]
        %v1840 = vld [vmem:[%s1838 + $0x4] sm:$0xf]
        %v1841 = vld [vmem:[%s1838 + $0x8] sm:$0xf]
        %v1842 = vld [vmem:[%s1838 + $0xc] sm:$0xf]
        %v1843 = vld [vmem:[%s1838 + $0x10] sm:$0xf]
        %v1844 = vld [vmem:[%s1838 + $0x14] sm:$0xf]
        %v1845 = vld [vmem:[%s1838 + $0x18] sm:$0xf]
        %v1846 = vld [vmem:[%s1838 + $0x1c] sm:$0xf]
        %v1847 = vld [vmem:[%s1838 + $0x20] sm:$0xf]
        %v1848 = vld [vmem:[%s1838 + $0x24] sm:$0xf]
        %v1849 = vld [vmem:[%s1838 + $0x28] sm:$0xf]
        %v1850 = vld [vmem:[%s1838 + $0x2c] sm:$0xf]
        %v1851 = vld [vmem:[%s1838 + $0x30] sm:$0xf]
        %v1852 = vld [vmem:[%s1838 + $0x34] sm:$0xf]
        %v1853 = vld [vmem:[%s1838 + $0x38] sm:$0xf]
        %v1854 = vld [vmem:[%s1838 + $0x3c] sm:$0xf]
        %vm1855 = vsmask.f32 6400
        %v1856 = vrot.slane %v1534, 1
        %v1857 = vrot.slane %v1536, 2
        %v1858 = vor.u32 %v1856, %v1857
        %v1859 = vshrl.u32 %v1499, 16
        %v1861 = vrot.slane %v1859, 1
        %v1862 = vrot.slane %v1540, 2
        %v1863 = vor.u32 %v1861, %v1862
        %v1864 = vsel %vm1855, %v1858, %v1863
        %v1882 = vunpack.c.l.b16 %v1839
        %v1883 = vunpack.c.l.b16 %v1840
        %v1884 = vunpack.c.l.b16 %v1841
        %v1885 = vunpack.c.l.b16 %v1842
        %v1886 = vunpack.c.l.b16 %v1843
        %v1887 = vunpack.c.l.b16 %v1844
        %v1888 = vunpack.c.l.b16 %v1845
        %v1889 = vunpack.c.l.b16 %v1846
        %v1890 = vunpack.c.l.b16 %v1847
        %v1891 = vunpack.c.l.b16 %v1848
        %v1892 = vunpack.c.l.b16 %v1849
        %v1893 = vunpack.c.l.b16 %v1850
        %v1894 = vunpack.c.l.b16 %v1851
        %v1895 = vunpack.c.l.b16 %v1852
        %v1896 = vunpack.c.l.b16 %v1853
        %v1897 = vunpack.c.l.b16 %v1854
        %v1898 = vpack.c.b16 %v1883, %v1882
        %v1899 = vpack.c.b16 %v1885, %v1884
        %v1900 = vpack.c.b16 %v1887, %v1886
        %v1901 = vpack.c.b16 %v1889, %v1888
        %v1902 = vpack.c.b16 %v1891, %v1890
        %v1903 = vpack.c.b16 %v1893, %v1892
        %v1904 = vpack.c.b16 %v1895, %v1894
        %v1905 = vpack.c.b16 %v1897, %v1896
        %1914 = vmatprep.subr.bf16.mxu0 0
        %1915 = vmatpush1.bf16.msra.mxu0 %v1905
        %1916 = vmatprep.subr.bf16.mxu0 0
        %1917 = vmatpush1.bf16.msra.mxu0 %v1904
        %1918 = vmatprep.subr.bf16.mxu0 0
        %1919 = vmatpush1.bf16.msra.mxu0 %v1903
        %1920 = vmatprep.subr.bf16.mxu0 0
        %1921 = vmatpush1.bf16.msra.mxu0 %v1902
        %1922 = vmatprep.subr.bf16.mxu0 0
        %1923 = vmatpush1.bf16.msra.mxu0 %v1901
        %1924 = vmatprep.subr.bf16.mxu0 0
        %1925 = vmatpush1.bf16.msra.mxu0 %v1900
        %1926 = vmatprep.subr.bf16.mxu0 0
        %1927 = vmatpush1.bf16.msra.mxu0 %v1899
        %1928 = vmatprep.subr.bf16.mxu0 0
        %1929 = vmatpush1.bf16.msra.mxu0 %v1898
        %1930 = vmatprep.subr.bf16.mxu0 0
        %1931 = vmatpush2.bf16.msra.mxu0 0
        %1932 = vmatprep.subr.bf16.mxu0 0
        %1933 = vmatpush2.bf16.msra.mxu0 0
        %1934 = vmatprep.subr.bf16.mxu0 0
        %1935 = vmatpush2.bf16.msra.mxu0 0
        %1936 = vmatprep.subr.bf16.mxu0 0
        %1937 = vmatpush2.bf16.msra.mxu0 0
        %1938 = vmatprep.subr.bf16.mxu0 0
        %1939 = vmatpush2.bf16.msra.mxu0 0
        %1940 = vmatprep.subr.bf16.mxu0 0
        %1941 = vmatpush2.bf16.msra.mxu0 0
        %1942 = vmatprep.subr.bf16.mxu0 0
        %1943 = vmatpush2.bf16.msra.mxu0 0
        %1944 = vmatprep.subr.bf16.mxu0 0
        %1945 = vmatpush2.bf16.msra.mxu0 0
        %1946 = vmatprep.mubr.bf16.mxu0 0
        %1947 = vmatmul.mubr.bf16.gmra.mxu0 %v1864
        %v1948 = vpop.f32.mrf.mxu0
        %v1949 = vadd.f32 0.0, %v1948
        %v1950 = vpop.f32.mrf.mxu0
        %v1951 = vpop.f32.mrf.mxu0
        %v1952 = vadd.f32 0.0, %v1951
        %v1953 = vpop.f32.mrf.mxu0
        %1954 = vdwg.mxu0
        %v1955 = vadd.f32 %v1836, %v1949
        %v1956 = vadd.f32 %v1837, %v1952
        %s1957 = scalar_lea.vmem %s657, 256 [#allocation13]
        %v1958 = vld [vmem:[%s1957] sm:$0xf]
        %v1959 = vld [vmem:[%s1957 + $0x4] sm:$0xf]
        %v1960 = vld [vmem:[%s1957 + $0x8] sm:$0xf]
        %v1961 = vld [vmem:[%s1957 + $0xc] sm:$0xf]
        %v1962 = vld [vmem:[%s1957 + $0x10] sm:$0xf]
        %v1963 = vld [vmem:[%s1957 + $0x14] sm:$0xf]
        %v1964 = vld [vmem:[%s1957 + $0x18] sm:$0xf]
        %v1965 = vld [vmem:[%s1957 + $0x1c] sm:$0xf]
        %v1966 = vld [vmem:[%s1957 + $0x20] sm:$0xf]
        %v1967 = vld [vmem:[%s1957 + $0x24] sm:$0xf]
        %v1968 = vld [vmem:[%s1957 + $0x28] sm:$0xf]
        %v1969 = vld [vmem:[%s1957 + $0x2c] sm:$0xf]
        %v1970 = vld [vmem:[%s1957 + $0x30] sm:$0xf]
        %v1971 = vld [vmem:[%s1957 + $0x34] sm:$0xf]
        %v1972 = vld [vmem:[%s1957 + $0x38] sm:$0xf]
        %v1973 = vld [vmem:[%s1957 + $0x3c] sm:$0xf]
        %vm1974 = vcmask 1045504
        %v1975 = vrot.slane %v1497, 2
        %v1976 = vrot.slane %v1499, 2
        %v1977 = vsel %vm1974, %v1975, %v1976
        %v1995 = vunpack.c.l.b16 %v1958
        %v1996 = vunpack.c.l.b16 %v1959
        %v1997 = vunpack.c.l.b16 %v1960
        %v1998 = vunpack.c.l.b16 %v1961
        %v1999 = vunpack.c.l.b16 %v1962
        %v2000 = vunpack.c.l.b16 %v1963
        %v2001 = vunpack.c.l.b16 %v1964
        %v2002 = vunpack.c.l.b16 %v1965
        %v2003 = vunpack.c.l.b16 %v1966
        %v2004 = vunpack.c.l.b16 %v1967
        %v2005 = vunpack.c.l.b16 %v1968
        %v2006 = vunpack.c.l.b16 %v1969
        %v2007 = vunpack.c.l.b16 %v1970
        %v2008 = vunpack.c.l.b16 %v1971
        %v2009 = vunpack.c.l.b16 %v1972
        %v2010 = vunpack.c.l.b16 %v1973
        %v2011 = vpack.c.b16 %v1996, %v1995
        %v2012 = vpack.c.b16 %v1998, %v1997
        %v2013 = vpack.c.b16 %v2000, %v1999
        %v2014 = vpack.c.b16 %v2002, %v2001
        %v2015 = vpack.c.b16 %v2004, %v2003
        %v2016 = vpack.c.b16 %v2006, %v2005
        %v2017 = vpack.c.b16 %v2008, %v2007
        %v2018 = vpack.c.b16 %v2010, %v2009
        %2027 = vmatprep.subr.bf16.mxu0 0
        %2028 = vmatpush1.bf16.msra.mxu0 %v2018
        %2029 = vmatprep.subr.bf16.mxu0 0
        %2030 = vmatpush1.bf16.msra.mxu0 %v2017
        %2031 = vmatprep.subr.bf16.mxu0 0
        %2032 = vmatpush1.bf16.msra.mxu0 %v2016
        %2033 = vmatprep.subr.bf16.mxu0 0
        %2034 = vmatpush1.bf16.msra.mxu0 %v2015
        %2035 = vmatprep.subr.bf16.mxu0 0
        %2036 = vmatpush1.bf16.msra.mxu0 %v2014
        %2037 = vmatprep.subr.bf16.mxu0 0
        %2038 = vmatpush1.bf16.msra.mxu0 %v2013
        %2039 = vmatprep.subr.bf16.mxu0 0
        %2040 = vmatpush1.bf16.msra.mxu0 %v2012
        %2041 = vmatprep.subr.bf16.mxu0 0
        %2042 = vmatpush1.bf16.msra.mxu0 %v2011
        %2043 = vmatprep.subr.bf16.mxu0 0
        %2044 = vmatpush2.bf16.msra.mxu0 0
        %2045 = vmatprep.subr.bf16.mxu0 0
        %2046 = vmatpush2.bf16.msra.mxu0 0
        %2047 = vmatprep.subr.bf16.mxu0 0
        %2048 = vmatpush2.bf16.msra.mxu0 0
        %2049 = vmatprep.subr.bf16.mxu0 0
        %2050 = vmatpush2.bf16.msra.mxu0 0
        %2051 = vmatprep.subr.bf16.mxu0 0
        %2052 = vmatpush2.bf16.msra.mxu0 0
        %2053 = vmatprep.subr.bf16.mxu0 0
        %2054 = vmatpush2.bf16.msra.mxu0 0
        %2055 = vmatprep.subr.bf16.mxu0 0
        %2056 = vmatpush2.bf16.msra.mxu0 0
        %2057 = vmatprep.subr.bf16.mxu0 0
        %2058 = vmatpush2.bf16.msra.mxu0 0
        %2059 = vmatprep.mubr.bf16.mxu0 0
        %2060 = vmatmul.mubr.bf16.gmra.mxu0 %v1977
        %v2061 = vpop.f32.mrf.mxu0
        %v2062 = vadd.f32 0.0, %v2061
        %v2063 = vpop.f32.mrf.mxu0
        %v2064 = vpop.f32.mrf.mxu0
        %v2065 = vadd.f32 0.0, %v2064
        %v2066 = vpop.f32.mrf.mxu0
        %2067 = vdwg.mxu0
        %v2068 = vadd.f32 %v1955, %v2062
        %v2069 = vadd.f32 %v1956, %v2065
        %s2070 = scalar_lea.vmem %s657, 320 [#allocation13]
        %v2071 = vld [vmem:[%s2070] sm:$0xf]
        %v2072 = vld [vmem:[%s2070 + $0x4] sm:$0xf]
        %v2073 = vld [vmem:[%s2070 + $0x8] sm:$0xf]
        %v2074 = vld [vmem:[%s2070 + $0xc] sm:$0xf]
        %v2075 = vld [vmem:[%s2070 + $0x10] sm:$0xf]
        %v2076 = vld [vmem:[%s2070 + $0x14] sm:$0xf]
        %v2077 = vld [vmem:[%s2070 + $0x18] sm:$0xf]
        %v2078 = vld [vmem:[%s2070 + $0x1c] sm:$0xf]
        %v2079 = vld [vmem:[%s2070 + $0x20] sm:$0xf]
        %v2080 = vld [vmem:[%s2070 + $0x24] sm:$0xf]
        %v2081 = vld [vmem:[%s2070 + $0x28] sm:$0xf]
        %v2082 = vld [vmem:[%s2070 + $0x2c] sm:$0xf]
        %v2083 = vld [vmem:[%s2070 + $0x30] sm:$0xf]
        %v2084 = vld [vmem:[%s2070 + $0x34] sm:$0xf]
        %v2085 = vld [vmem:[%s2070 + $0x38] sm:$0xf]
        %v2086 = vld [vmem:[%s2070 + $0x3c] sm:$0xf]
        %vm2087 = vsmask.f32 5376
        %v2088 = vrot.slane %v1534, 2
        %v2089 = vrot.slane %v1536, 3
        %v2090 = vor.u32 %v2088, %v2089
        %v2091 = vrot.slane %v1859, 2
        %v2092 = vrot.slane %v1540, 3
        %v2093 = vor.u32 %v2091, %v2092
        %v2094 = vsel %vm2087, %v2090, %v2093
        %v2112 = vunpack.c.l.b16 %v2071
        %v2113 = vunpack.c.l.b16 %v2072
        %v2114 = vunpack.c.l.b16 %v2073
        %v2115 = vunpack.c.l.b16 %v2074
        %v2116 = vunpack.c.l.b16 %v2075
        %v2117 = vunpack.c.l.b16 %v2076
        %v2118 = vunpack.c.l.b16 %v2077
        %v2119 = vunpack.c.l.b16 %v2078
        %v2120 = vunpack.c.l.b16 %v2079
        %v2121 = vunpack.c.l.b16 %v2080
        %v2122 = vunpack.c.l.b16 %v2081
        %v2123 = vunpack.c.l.b16 %v2082
        %v2124 = vunpack.c.l.b16 %v2083
        %v2125 = vunpack.c.l.b16 %v2084
        %v2126 = vunpack.c.l.b16 %v2085
        %v2127 = vunpack.c.l.b16 %v2086
        %v2128 = vpack.c.b16 %v2113, %v2112
        %v2129 = vpack.c.b16 %v2115, %v2114
        %v2130 = vpack.c.b16 %v2117, %v2116
        %v2131 = vpack.c.b16 %v2119, %v2118
        %v2132 = vpack.c.b16 %v2121, %v2120
        %v2133 = vpack.c.b16 %v2123, %v2122
        %v2134 = vpack.c.b16 %v2125, %v2124
        %v2135 = vpack.c.b16 %v2127, %v2126
        %2144 = vmatprep.subr.bf16.mxu0 0
        %2145 = vmatpush1.bf16.msra.mxu0 %v2135
        %2146 = vmatprep.subr.bf16.mxu0 0
        %2147 = vmatpush1.bf16.msra.mxu0 %v2134
        %2148 = vmatprep.subr.bf16.mxu0 0
        %2149 = vmatpush1.bf16.msra.mxu0 %v2133
        %2150 = vmatprep.subr.bf16.mxu0 0
        %2151 = vmatpush1.bf16.msra.mxu0 %v2132
        %2152 = vmatprep.subr.bf16.mxu0 0
        %2153 = vmatpush1.bf16.msra.mxu0 %v2131
        %2154 = vmatprep.subr.bf16.mxu0 0
        %2155 = vmatpush1.bf16.msra.mxu0 %v2130
        %2156 = vmatprep.subr.bf16.mxu0 0
        %2157 = vmatpush1.bf16.msra.mxu0 %v2129
        %2158 = vmatprep.subr.bf16.mxu0 0
        %2159 = vmatpush1.bf16.msra.mxu0 %v2128
        %2160 = vmatprep.subr.bf16.mxu0 0
        %2161 = vmatpush2.bf16.msra.mxu0 0
        %2162 = vmatprep.subr.bf16.mxu0 0
        %2163 = vmatpush2.bf16.msra.mxu0 0
        %2164 = vmatprep.subr.bf16.mxu0 0
        %2165 = vmatpush2.bf16.msra.mxu0 0
        %2166 = vmatprep.subr.bf16.mxu0 0
        %2167 = vmatpush2.bf16.msra.mxu0 0
        %2168 = vmatprep.subr.bf16.mxu0 0
        %2169 = vmatpush2.bf16.msra.mxu0 0
        %2170 = vmatprep.subr.bf16.mxu0 0
        %2171 = vmatpush2.bf16.msra.mxu0 0
        %2172 = vmatprep.subr.bf16.mxu0 0
        %2173 = vmatpush2.bf16.msra.mxu0 0
        %2174 = vmatprep.subr.bf16.mxu0 0
        %2175 = vmatpush2.bf16.msra.mxu0 0
        %2176 = vmatprep.mubr.bf16.mxu0 0
        %2177 = vmatmul.mubr.bf16.gmra.mxu0 %v2094
        %v2178 = vpop.f32.mrf.mxu0
        %v2179 = vadd.f32 0.0, %v2178
        %v2180 = vpop.f32.mrf.mxu0
        %v2181 = vpop.f32.mrf.mxu0
        %v2182 = vadd.f32 0.0, %v2181
        %v2183 = vpop.f32.mrf.mxu0
        %2184 = vdwg.mxu0
        %v2185 = vadd.f32 %v2068, %v2179
        %v2186 = vadd.f32 %v2069, %v2182
        %s2187 = scalar_lea.vmem %s657, 384 [#allocation13]
        %v2188 = vld [vmem:[%s2187] sm:$0xf]
        %v2189 = vld [vmem:[%s2187 + $0x4] sm:$0xf]
        %v2190 = vld [vmem:[%s2187 + $0x8] sm:$0xf]
        %v2191 = vld [vmem:[%s2187 + $0xc] sm:$0xf]
        %v2192 = vld [vmem:[%s2187 + $0x10] sm:$0xf]
        %v2193 = vld [vmem:[%s2187 + $0x14] sm:$0xf]
        %v2194 = vld [vmem:[%s2187 + $0x18] sm:$0xf]
        %v2195 = vld [vmem:[%s2187 + $0x1c] sm:$0xf]
        %v2196 = vld [vmem:[%s2187 + $0x20] sm:$0xf]
        %v2197 = vld [vmem:[%s2187 + $0x24] sm:$0xf]
        %v2198 = vld [vmem:[%s2187 + $0x28] sm:$0xf]
        %v2199 = vld [vmem:[%s2187 + $0x2c] sm:$0xf]
        %v2200 = vld [vmem:[%s2187 + $0x30] sm:$0xf]
        %v2201 = vld [vmem:[%s2187 + $0x34] sm:$0xf]
        %v2202 = vld [vmem:[%s2187 + $0x38] sm:$0xf]
        %v2203 = vld [vmem:[%s2187 + $0x3c] sm:$0xf]
        %vm2204 = vcmask 1044480
        %v2205 = vrot.slane %v1497, 3
        %v2206 = vrot.slane %v1499, 3
        %v2207 = vsel %vm2204, %v2205, %v2206
        %v2225 = vunpack.c.l.b16 %v2188
        %v2226 = vunpack.c.l.b16 %v2189
        %v2227 = vunpack.c.l.b16 %v2190
        %v2228 = vunpack.c.l.b16 %v2191
        %v2229 = vunpack.c.l.b16 %v2192
        %v2230 = vunpack.c.l.b16 %v2193
        %v2231 = vunpack.c.l.b16 %v2194
        %v2232 = vunpack.c.l.b16 %v2195
        %v2233 = vunpack.c.l.b16 %v2196
        %v2234 = vunpack.c.l.b16 %v2197
        %v2235 = vunpack.c.l.b16 %v2198
        %v2236 = vunpack.c.l.b16 %v2199
        %v2237 = vunpack.c.l.b16 %v2200
        %v2238 = vunpack.c.l.b16 %v2201
        %v2239 = vunpack.c.l.b16 %v2202
        %v2240 = vunpack.c.l.b16 %v2203
        %v2241 = vpack.c.b16 %v2226, %v2225
        %v2242 = vpack.c.b16 %v2228, %v2227
        %v2243 = vpack.c.b16 %v2230, %v2229
        %v2244 = vpack.c.b16 %v2232, %v2231
        %v2245 = vpack.c.b16 %v2234, %v2233
        %v2246 = vpack.c.b16 %v2236, %v2235
        %v2247 = vpack.c.b16 %v2238, %v2237
        %v2248 = vpack.c.b16 %v2240, %v2239
        %2257 = vmatprep.subr.bf16.mxu0 0
        %2258 = vmatpush1.bf16.msra.mxu0 %v2248
        %2259 = vmatprep.subr.bf16.mxu0 0
        %2260 = vmatpush1.bf16.msra.mxu0 %v2247
        %2261 = vmatprep.subr.bf16.mxu0 0
        %2262 = vmatpush1.bf16.msra.mxu0 %v2246
        %2263 = vmatprep.subr.bf16.mxu0 0
        %2264 = vmatpush1.bf16.msra.mxu0 %v2245
        %2265 = vmatprep.subr.bf16.mxu0 0
        %2266 = vmatpush1.bf16.msra.mxu0 %v2244
        %2267 = vmatprep.subr.bf16.mxu0 0
        %2268 = vmatpush1.bf16.msra.mxu0 %v2243
        %2269 = vmatprep.subr.bf16.mxu0 0
        %2270 = vmatpush1.bf16.msra.mxu0 %v2242
        %2271 = vmatprep.subr.bf16.mxu0 0
        %2272 = vmatpush1.bf16.msra.mxu0 %v2241
        %2273 = vmatprep.subr.bf16.mxu0 0
        %2274 = vmatpush2.bf16.msra.mxu0 0
        %2275 = vmatprep.subr.bf16.mxu0 0
        %2276 = vmatpush2.bf16.msra.mxu0 0
        %2277 = vmatprep.subr.bf16.mxu0 0
        %2278 = vmatpush2.bf16.msra.mxu0 0
        %2279 = vmatprep.subr.bf16.mxu0 0
        %2280 = vmatpush2.bf16.msra.mxu0 0
        %2281 = vmatprep.subr.bf16.mxu0 0
        %2282 = vmatpush2.bf16.msra.mxu0 0
        %2283 = vmatprep.subr.bf16.mxu0 0
        %2284 = vmatpush2.bf16.msra.mxu0 0
        %2285 = vmatprep.subr.bf16.mxu0 0
        %2286 = vmatpush2.bf16.msra.mxu0 0
        %2287 = vmatprep.subr.bf16.mxu0 0
        %2288 = vmatpush2.bf16.msra.mxu0 0
        %2289 = vmatprep.mubr.bf16.mxu0 0
        %2290 = vmatmul.mubr.bf16.gmra.mxu0 %v2207
        %v2291 = vpop.f32.mrf.mxu0
        %v2292 = vadd.f32 0.0, %v2291
        %v2293 = vpop.f32.mrf.mxu0
        %v2294 = vpop.f32.mrf.mxu0
        %v2295 = vadd.f32 0.0, %v2294
        %v2296 = vpop.f32.mrf.mxu0
        %2297 = vdwg.mxu0
        %v2298 = vadd.f32 %v2185, %v2292
        %v2299 = vadd.f32 %v2186, %v2295
        %s2300 = scalar_lea.vmem %s657, 448 [#allocation13]
        %v2301 = vld [vmem:[%s2300] sm:$0xf]
        %v2302 = vld [vmem:[%s2300 + $0x4] sm:$0xf]
        %v2303 = vld [vmem:[%s2300 + $0x8] sm:$0xf]
        %v2304 = vld [vmem:[%s2300 + $0xc] sm:$0xf]
        %v2305 = vld [vmem:[%s2300 + $0x10] sm:$0xf]
        %v2306 = vld [vmem:[%s2300 + $0x14] sm:$0xf]
        %v2307 = vld [vmem:[%s2300 + $0x18] sm:$0xf]
        %v2308 = vld [vmem:[%s2300 + $0x1c] sm:$0xf]
        %v2309 = vld [vmem:[%s2300 + $0x20] sm:$0xf]
        %v2310 = vld [vmem:[%s2300 + $0x24] sm:$0xf]
        %v2311 = vld [vmem:[%s2300 + $0x28] sm:$0xf]
        %v2312 = vld [vmem:[%s2300 + $0x2c] sm:$0xf]
        %v2313 = vld [vmem:[%s2300 + $0x30] sm:$0xf]
        %v2314 = vld [vmem:[%s2300 + $0x34] sm:$0xf]
        %v2315 = vld [vmem:[%s2300 + $0x38] sm:$0xf]
        %v2316 = vld [vmem:[%s2300 + $0x3c] sm:$0xf]
        %vm2317 = vsmask.f32 4352
        %v2318 = vrot.slane %v1534, 3
        %v2319 = vrot.slane %v1536, 4
        %v2320 = vor.u32 %v2318, %v2319
        %v2321 = vrot.slane %v1859, 3
        %v2322 = vrot.slane %v1540, 4
        %v2323 = vor.u32 %v2321, %v2322
        %v2324 = vsel %vm2317, %v2320, %v2323
        %v2342 = vunpack.c.l.b16 %v2301
        %v2343 = vunpack.c.l.b16 %v2302
        %v2344 = vunpack.c.l.b16 %v2303
        %v2345 = vunpack.c.l.b16 %v2304
        %v2346 = vunpack.c.l.b16 %v2305
        %v2347 = vunpack.c.l.b16 %v2306
        %v2348 = vunpack.c.l.b16 %v2307
        %v2349 = vunpack.c.l.b16 %v2308
        %v2350 = vunpack.c.l.b16 %v2309
        %v2351 = vunpack.c.l.b16 %v2310
        %v2352 = vunpack.c.l.b16 %v2311
        %v2353 = vunpack.c.l.b16 %v2312
        %v2354 = vunpack.c.l.b16 %v2313
        %v2355 = vunpack.c.l.b16 %v2314
        %v2356 = vunpack.c.l.b16 %v2315
        %v2357 = vunpack.c.l.b16 %v2316
        %v2358 = vpack.c.b16 %v2343, %v2342
        %v2359 = vpack.c.b16 %v2345, %v2344
        %v2360 = vpack.c.b16 %v2347, %v2346
        %v2361 = vpack.c.b16 %v2349, %v2348
        %v2362 = vpack.c.b16 %v2351, %v2350
        %v2363 = vpack.c.b16 %v2353, %v2352
        %v2364 = vpack.c.b16 %v2355, %v2354
        %v2365 = vpack.c.b16 %v2357, %v2356
        %2374 = vmatprep.subr.bf16.mxu0 0
        %2375 = vmatpush1.bf16.msra.mxu0 %v2365
        %2376 = vmatprep.subr.bf16.mxu0 0
        %2377 = vmatpush1.bf16.msra.mxu0 %v2364
        %2378 = vmatprep.subr.bf16.mxu0 0
        %2379 = vmatpush1.bf16.msra.mxu0 %v2363
        %2380 = vmatprep.subr.bf16.mxu0 0
        %2381 = vmatpush1.bf16.msra.mxu0 %v2362
        %2382 = vmatprep.subr.bf16.mxu0 0
        %2383 = vmatpush1.bf16.msra.mxu0 %v2361
        %2384 = vmatprep.subr.bf16.mxu0 0
        %2385 = vmatpush1.bf16.msra.mxu0 %v2360
        %2386 = vmatprep.subr.bf16.mxu0 0
        %2387 = vmatpush1.bf16.msra.mxu0 %v2359
        %2388 = vmatprep.subr.bf16.mxu0 0
        %2389 = vmatpush1.bf16.msra.mxu0 %v2358
        %2390 = vmatprep.subr.bf16.mxu0 0
        %2391 = vmatpush2.bf16.msra.mxu0 0
        %2392 = vmatprep.subr.bf16.mxu0 0
        %2393 = vmatpush2.bf16.msra.mxu0 0
        %2394 = vmatprep.subr.bf16.mxu0 0
        %2395 = vmatpush2.bf16.msra.mxu0 0
        %2396 = vmatprep.subr.bf16.mxu0 0
        %2397 = vmatpush2.bf16.msra.mxu0 0
        %2398 = vmatprep.subr.bf16.mxu0 0
        %2399 = vmatpush2.bf16.msra.mxu0 0
        %2400 = vmatprep.subr.bf16.mxu0 0
        %2401 = vmatpush2.bf16.msra.mxu0 0
        %2402 = vmatprep.subr.bf16.mxu0 0
        %2403 = vmatpush2.bf16.msra.mxu0 0
        %2404 = vmatprep.subr.bf16.mxu0 0
        %2405 = vmatpush2.bf16.msra.mxu0 0
        %2406 = vmatprep.mubr.bf16.mxu0 0
        %2407 = vmatmul.mubr.bf16.gmra.mxu0 %v2324
        %v2408 = vpop.f32.mrf.mxu0
        %v2409 = vadd.f32 0.0, %v2408
        %v2410 = vpop.f32.mrf.mxu0
        %v2411 = vpop.f32.mrf.mxu0
        %v2412 = vadd.f32 0.0, %v2411
        %v2413 = vpop.f32.mrf.mxu0
        %2414 = vdwg.mxu0
        %v2415 = vadd.f32 %v2298, %v2409
        %v2416 = vadd.f32 %v2299, %v2412
        %s2417 = scalar_lea.vmem %s657, 512 [#allocation13]
        %v2418 = vld [vmem:[%s2417] sm:$0xf]
        %v2419 = vld [vmem:[%s2417 + $0x4] sm:$0xf]
        %v2420 = vld [vmem:[%s2417 + $0x8] sm:$0xf]
        %v2421 = vld [vmem:[%s2417 + $0xc] sm:$0xf]
        %v2422 = vld [vmem:[%s2417 + $0x10] sm:$0xf]
        %v2423 = vld [vmem:[%s2417 + $0x14] sm:$0xf]
        %v2424 = vld [vmem:[%s2417 + $0x18] sm:$0xf]
        %v2425 = vld [vmem:[%s2417 + $0x1c] sm:$0xf]
        %v2426 = vld [vmem:[%s2417 + $0x20] sm:$0xf]
        %v2427 = vld [vmem:[%s2417 + $0x24] sm:$0xf]
        %v2428 = vld [vmem:[%s2417 + $0x28] sm:$0xf]
        %v2429 = vld [vmem:[%s2417 + $0x2c] sm:$0xf]
        %v2430 = vld [vmem:[%s2417 + $0x30] sm:$0xf]
        %v2431 = vld [vmem:[%s2417 + $0x34] sm:$0xf]
        %v2432 = vld [vmem:[%s2417 + $0x38] sm:$0xf]
        %v2433 = vld [vmem:[%s2417 + $0x3c] sm:$0xf]
        %vm2434 = vcmask 1043456
        %v2435 = vrot.slane %v1497, 4
        %v2436 = vrot.slane %v1499, 4
        %v2437 = vsel %vm2434, %v2435, %v2436
        %v2455 = vunpack.c.l.b16 %v2418
        %v2456 = vunpack.c.l.b16 %v2419
        %v2457 = vunpack.c.l.b16 %v2420
        %v2458 = vunpack.c.l.b16 %v2421
        %v2459 = vunpack.c.l.b16 %v2422
        %v2460 = vunpack.c.l.b16 %v2423
        %v2461 = vunpack.c.l.b16 %v2424
        %v2462 = vunpack.c.l.b16 %v2425
        %v2463 = vunpack.c.l.b16 %v2426
        %v2464 = vunpack.c.l.b16 %v2427
        %v2465 = vunpack.c.l.b16 %v2428
        %v2466 = vunpack.c.l.b16 %v2429
        %v2467 = vunpack.c.l.b16 %v2430
        %v2468 = vunpack.c.l.b16 %v2431
        %v2469 = vunpack.c.l.b16 %v2432
        %v2470 = vunpack.c.l.b16 %v2433
        %v2471 = vpack.c.b16 %v2456, %v2455
        %v2472 = vpack.c.b16 %v2458, %v2457
        %v2473 = vpack.c.b16 %v2460, %v2459
        %v2474 = vpack.c.b16 %v2462, %v2461
        %v2475 = vpack.c.b16 %v2464, %v2463
        %v2476 = vpack.c.b16 %v2466, %v2465
        %v2477 = vpack.c.b16 %v2468, %v2467
        %v2478 = vpack.c.b16 %v2470, %v2469
        %2487 = vmatprep.subr.bf16.mxu0 0
        %2488 = vmatpush1.bf16.msra.mxu0 %v2478
        %2489 = vmatprep.subr.bf16.mxu0 0
        %2490 = vmatpush1.bf16.msra.mxu0 %v2477
        %2491 = vmatprep.subr.bf16.mxu0 0
        %2492 = vmatpush1.bf16.msra.mxu0 %v2476
        %2493 = vmatprep.subr.bf16.mxu0 0
        %2494 = vmatpush1.bf16.msra.mxu0 %v2475
        %2495 = vmatprep.subr.bf16.mxu0 0
        %2496 = vmatpush1.bf16.msra.mxu0 %v2474
        %2497 = vmatprep.subr.bf16.mxu0 0
        %2498 = vmatpush1.bf16.msra.mxu0 %v2473
        %2499 = vmatprep.subr.bf16.mxu0 0
        %2500 = vmatpush1.bf16.msra.mxu0 %v2472
        %2501 = vmatprep.subr.bf16.mxu0 0
        %2502 = vmatpush1.bf16.msra.mxu0 %v2471
        %2503 = vmatprep.subr.bf16.mxu0 0
        %2504 = vmatpush2.bf16.msra.mxu0 0
        %2505 = vmatprep.subr.bf16.mxu0 0
        %2506 = vmatpush2.bf16.msra.mxu0 0
        %2507 = vmatprep.subr.bf16.mxu0 0
        %2508 = vmatpush2.bf16.msra.mxu0 0
        %2509 = vmatprep.subr.bf16.mxu0 0
        %2510 = vmatpush2.bf16.msra.mxu0 0
        %2511 = vmatprep.subr.bf16.mxu0 0
        %2512 = vmatpush2.bf16.msra.mxu0 0
        %2513 = vmatprep.subr.bf16.mxu0 0
        %2514 = vmatpush2.bf16.msra.mxu0 0
        %2515 = vmatprep.subr.bf16.mxu0 0
        %2516 = vmatpush2.bf16.msra.mxu0 0
        %2517 = vmatprep.subr.bf16.mxu0 0
        %2518 = vmatpush2.bf16.msra.mxu0 0
        %2519 = vmatprep.mubr.bf16.mxu0 0
        %2520 = vmatmul.mubr.bf16.gmra.mxu0 %v2437
        %v2521 = vpop.f32.mrf.mxu0
        %v2522 = vadd.f32 0.0, %v2521
        %v2523 = vpop.f32.mrf.mxu0
        %v2524 = vpop.f32.mrf.mxu0
        %v2525 = vadd.f32 0.0, %v2524
        %v2526 = vpop.f32.mrf.mxu0
        %2527 = vdwg.mxu0
        %v2528 = vadd.f32 %v2415, %v2522
        %v2529 = vadd.f32 %v2416, %v2525
        %v2531 = vlaneseq
        %v2532 = vshrl.u32 %v2531, 7
        %v2533 = vsub.s32 0, %v2532
        %v2534 = vrot.slane %v852, %v2533
        %v2536 = vadd.f32 %v2528, %v2534
        %v2537 = vadd.f32 %v2529, %v2534
        %v2538 = vmax.f32 %v2536, 0.0
        %v2539 = vmax.f32 %v2537, 0.0
        %v2540 = vpack.c.bf16 %v2539, %v2538
        %v2541 = vld [vmem:[%s666] sm:$0xf]
        %v2542 = vld [vmem:[%s666 + $0x4] sm:$0xf]
        %v2543 = vld [vmem:[%s666 + $0x8] sm:$0xf]
        %v2544 = vld [vmem:[%s666 + $0xc] sm:$0xf]
        %v2545 = vld [vmem:[%s666 + $0x10] sm:$0xf]
        %v2546 = vld [vmem:[%s666 + $0x14] sm:$0xf]
        %v2547 = vld [vmem:[%s666 + $0x18] sm:$0xf]
        %v2548 = vld [vmem:[%s666 + $0x1c] sm:$0xf]
        %v2549 = vld [vmem:[%s666 + $0x20] sm:$0xf]
        %v2550 = vld [vmem:[%s666 + $0x24] sm:$0xf]
        %v2551 = vld [vmem:[%s666 + $0x28] sm:$0xf]
        %v2552 = vld [vmem:[%s666 + $0x2c] sm:$0xf]
        %v2553 = vld [vmem:[%s666 + $0x30] sm:$0xf]
        %v2554 = vld [vmem:[%s666 + $0x34] sm:$0xf]
        %v2555 = vld [vmem:[%s666 + $0x38] sm:$0xf]
        %v2556 = vld [vmem:[%s666 + $0x3c] sm:$0xf]
        %v2558 = vlaneseq
        %v2559 = vshrl.u32 %v2558, 7
        %v2560 = vsub.s32 0, %v2559
        %v2561 = vrot.slane %v853, %v2560
        %v2579 = vunpack.c.l.b16 %v2541
        %v2580 = vunpack.c.l.b16 %v2542
        %v2581 = vunpack.c.l.b16 %v2543
        %v2582 = vunpack.c.l.b16 %v2544
        %v2583 = vunpack.c.l.b16 %v2545
        %v2584 = vunpack.c.l.b16 %v2546
        %v2585 = vunpack.c.l.b16 %v2547
        %v2586 = vunpack.c.l.b16 %v2548
        %v2587 = vunpack.c.l.b16 %v2549
        %v2588 = vunpack.c.l.b16 %v2550
        %v2589 = vunpack.c.l.b16 %v2551
        %v2590 = vunpack.c.l.b16 %v2552
        %v2591 = vunpack.c.l.b16 %v2553
        %v2592 = vunpack.c.l.b16 %v2554
        %v2593 = vunpack.c.l.b16 %v2555
        %v2594 = vunpack.c.l.b16 %v2556
        %v2595 = vpack.c.b16 %v2580, %v2579
        %v2596 = vpack.c.b16 %v2582, %v2581
        %v2597 = vpack.c.b16 %v2584, %v2583
        %v2598 = vpack.c.b16 %v2586, %v2585
        %v2599 = vpack.c.b16 %v2588, %v2587
        %v2600 = vpack.c.b16 %v2590, %v2589
        %v2601 = vpack.c.b16 %v2592, %v2591
        %v2602 = vpack.c.b16 %v2594, %v2593
        %2611 = vmatprep.subr.bf16.mxu0 0
        %2612 = vmatpush1.bf16.msra.mxu0 %v2602
        %2613 = vmatprep.subr.bf16.mxu0 0
        %2614 = vmatpush1.bf16.msra.mxu0 %v2601
        %2615 = vmatprep.subr.bf16.mxu0 0
        %2616 = vmatpush1.bf16.msra.mxu0 %v2600
        %2617 = vmatprep.subr.bf16.mxu0 0
        %2618 = vmatpush1.bf16.msra.mxu0 %v2599
        %2619 = vmatprep.subr.bf16.mxu0 0
        %2620 = vmatpush1.bf16.msra.mxu0 %v2598
        %2621 = vmatprep.subr.bf16.mxu0 0
        %2622 = vmatpush1.bf16.msra.mxu0 %v2597
        %2623 = vmatprep.subr.bf16.mxu0 0
        %2624 = vmatpush1.bf16.msra.mxu0 %v2596
        %2625 = vmatprep.subr.bf16.mxu0 0
        %2626 = vmatpush1.bf16.msra.mxu0 %v2595
        %2627 = vmatprep.subr.bf16.mxu0 0
        %2628 = vmatpush2.bf16.msra.mxu0 0
        %2629 = vmatprep.subr.bf16.mxu0 0
        %2630 = vmatpush2.bf16.msra.mxu0 0
        %2631 = vmatprep.subr.bf16.mxu0 0
        %2632 = vmatpush2.bf16.msra.mxu0 0
        %2633 = vmatprep.subr.bf16.mxu0 0
        %2634 = vmatpush2.bf16.msra.mxu0 0
        %2635 = vmatprep.subr.bf16.mxu0 0
        %2636 = vmatpush2.bf16.msra.mxu0 0
        %2637 = vmatprep.subr.bf16.mxu0 0
        %2638 = vmatpush2.bf16.msra.mxu0 0
        %2639 = vmatprep.subr.bf16.mxu0 0
        %2640 = vmatpush2.bf16.msra.mxu0 0
        %2641 = vmatprep.subr.bf16.mxu0 0
        %2642 = vmatpush2.bf16.msra.mxu0 0
        %2643 = vmatprep.mubr.bf16.mxu0 0
        %2644 = vmatmul.mubr.bf16.gmra.mxu0 %v2540
        %v2645 = vpop.f32.mrf.mxu0
        %v2646 = vadd.f32 %v2561, %v2645
        %v2647 = vpop.f32.mrf.mxu0
        %v2648 = vpop.f32.mrf.mxu0
        %v2649 = vadd.f32 %v2561, %v2648
        %v2650 = vpop.f32.mrf.mxu0
        %2651 = vdwg.mxu0
        %v2652 = vadd.f32 %v2646, %v1489
        %v2653 = vadd.f32 %v2649, %v1490
        %v2654 = vmul.f32 %v2652, %v787
        %v2655 = vmul.f32 %v2653, %v787
        %2656 = vadd.xlane.f32.xlu0 %v2654
        %v2657 = vpop.xlane.xlu0 %2656
        %2658 = vadd.xlane.f32.xlu0 %v2655
        %v2659 = vpop.xlane.xlu0 %2658
        %v2660 = vmul.f32 %v2657, 0.03125
        %v2661 = vmul.f32 %v2659, 0.03125
        %v2662 = vsub.f32 %v2654, %v2660
        %v2663 = vsub.f32 %v2655, %v2661
        %v2664 = vmul.f32 %v2662, %v787
        %v2665 = vmul.f32 %v2663, %v787
        %v2666 = vmul.f32 %v2664, %v2664
        %v2667 = vmul.f32 %v2665, %v2665
        %2668 = vadd.xlane.f32.xlu0 %v2666
        %v2669 = vpop.xlane.xlu0 %2668
        %2670 = vadd.xlane.f32.xlu0 %v2667
        %v2671 = vpop.xlane.xlu0 %2670
        %v2672 = vmul.f32 %v2669, 0.03125
        %v2673 = vmul.f32 %v2671, 0.03125
        %v2674 = vadd.f32 %v2672, 1e-05
        %v2675 = vadd.f32 %v2673, 1e-05
        %v2676 = vrsqrt.pop %v2674
        %v2677 = vrsqrt.pop %v2675
        %v2678 = vmul.f32 %v2664, %v2676
        %v2679 = vmul.f32 %v2665, %v2677
        %v2681 = vlaneseq
        %v2682 = vshrl.u32 %v2681, 7
        %v2683 = vsub.s32 0, %v2682
        %v2684 = vrot.slane %v854, %v2683
        %v2686 = vmul.f32 %v2678, %v2684
        %v2687 = vmul.f32 %v2679, %v2684
        %v2689 = vlaneseq
        %v2690 = vshrl.u32 %v2689, 7
        %v2691 = vsub.s32 0, %v2690
        %v2692 = vrot.slane %v855, %v2691
        %v2694 = vadd.f32 %v2686, %v2692
        %v2695 = vadd.f32 %v2687, %v2692
        %v2696 = vmul.f32 %v2694, %v798
        %v2697 = vmul.f32 %v2695, %v799
        %2698 = vst [vmem:[#allocation2] sm:$0xff] %v2696
        %2699 = vst [vmem:[#allocation2 + $0x8] sm:$0xff] %v2697
        %p2700 = scmp.eq.s32.totalorder %s42, 1
        // Predicated region
        $region105: #{tpu_custom_call.1} parent=75 // pred_check
          %p2701 = pneg %p2700
        $region106: #{tpu_custom_call.1} parent=75 // pred_check_branch
          %2703 = sbr.rel (%p2701) target = $region108
        $region107: #{tpu_custom_call.1} parent=75 // pred_region
          %2704 = vst [vmem:[%s755] sm:$0xff] %v2696
          %2705 = vst [vmem:[%s755 + $0x8] sm:$0xff] %v2697
        $region108: #{tpu_custom_call.1} parent=75 // pred_fallthru
          _
        %s2706 = sand.u32 %s416, 1
        %s2707 = scalar_lea.sflag [#allocation8], %s2706
        %s2708 = sand.u32 %s416, 1
        %s2709 = smul.addr %s2708, 16
        %s2710 = scalar_lea.vmem [#allocation15], %s2709
        // Predicated region
        $region109: #{tpu_custom_call.1} parent=75 // pred_check
          %p2711 = pneg %p426
        $region110: #{tpu_custom_call.1} parent=75 // pred_check_branch
          %2713 = sbr.rel (%p2711) target = $region112
        $region111: #{tpu_custom_call.1} parent=75 // pred_region
          %s2715 = ssub.s32 256, 256
          %2716 = vsyncadd %s2707, %s2715
          %s2717 = smul.addr %s41, 2
          %s2718 = smul.addr %s2717, 128
          %s2719 = scalar_lea.hbm %s15, %s2718
          %s2720 = sshll.u32 %s2710, 4
          %s2721 = int_to_ptr.vmem [resolvable:$true] %s2720
          %2726 = dma.vmem_to_hbm [thread:$0]  %s2721, 256, %s2719, %s2707, 128, 128, 8
        $region112: #{tpu_custom_call.1} parent=75 // pred_fallthru
          _
      $region76: #{tpu_custom_call.1} parent=5 // pred_fallthru
        _
      %p2727 = scmp.le.s32.totalorder 2, %s32
      // Predicated region
      $region113: #{tpu_custom_call.1} parent=5 // pred_check
        %p2728 = pneg %p2727
      $region114: #{tpu_custom_call.1} parent=5 // pred_check_branch
        %2730 = sbr.rel (%p2728) target = $region116
      $region115: #{tpu_custom_call.1} parent=5 // pred_region
        %s2731 = ssub.s32 %s32, 2
        // Predicated region
        $region117: #{tpu_custom_call.1} parent=115 // pred_check
          %p2732 = pneg %p432
        $region118: #{tpu_custom_call.1} parent=115 // pred_check_branch
          %2734 = sbr.rel (%p2732) target = $region120
        $region119: #{tpu_custom_call.1} parent=115 // pred_region
          %s2735 = sand.u32 %s417, 1
          %s2736 = scalar_lea.sflag [#allocation8], %s2735
          %s2737 = sand.u32 %s417, 1
          %s2738 = smul.addr %s2737, 16
          %s2739 = scalar_lea.vmem [#allocation15], %s2738
          %2740 = dma.done %s2736, 256
        $region120: #{tpu_custom_call.1} parent=115 // pred_fallthru
          _
      $region116: #{tpu_custom_call.1} parent=5 // pred_fallthru
        _
    $region6: #{tpu_custom_call.1} parent=1 // loop_footer
      %s36 = sadd.s32 1, %s32
    $region7: #{tpu_custom_call.1} parent=1 // loop_footer_branch
      %31 = sbr.rel target = $region3
    $region8: #{tpu_custom_call.1} parent=1 // loop_exit
      _
    %2741 = vsyncpa [#allocation7], 1
    %s2742 = scalar_lea.sflag [#allocation7], 1
    %2743 = vsyncpa %s2742, 1
    %2744 = vsyncpa [#allocation10], 1
    %2745 = vsyncpa [#allocation8], 1
    %s2746 = scalar_lea.sflag [#allocation8], 1
    %2747 = vsyncpa %s2746, 1

</llo_original>
